<compile_context>
chip_gen: v6e
topology: v6e:2x2x1
jax: 0.10.0
libtpu: 0.0.40
codegen_flags: <defaults>
</compile_context>

<pallas_src>
import functools

import jax
import jax.numpy as jnp
from jax import lax
from jax.experimental import pallas as pl
from jax.experimental.pallas import tpu as pltpu


# --------------------------------------------------------------------------
# Model configuration (matches the PyTorch Discriminator built from Encoder).
# --------------------------------------------------------------------------
CONV_SHAPES = [(16, 1, 4), (32, 16, 4), (64, 32, 4),
               (128, 64, 4), (512, 128, 4), (1, 512, 10)]   # (C_out, C_in, K)
BN_CHANNELS = (32, 64, 128, 512)
BN_PACK_WIDTH = 512
EPS = 1e-5
NEG_SLOPE = 0.2
K_CONV = 4          # kernel size of the 5 strided convs
STRIDE = 2
PAD = 1


# --------------------------------------------------------------------------
# In-kernel helpers
# --------------------------------------------------------------------------
def _leaky(v):
    return jnp.where(v > 0, v, NEG_SLOPE * v)


def _tap_selector(m_out, m_in, l_out, k, batch):
    """0/1 gather operator (transposed form) for tap k of a stride-2/pad-1/K=4 conv.

    Row i = output position (b * l_out + l); column j = input position.  A single
    1 sits at j = 2*i + k - 1 (the global banded form equals the per-batch form
    because L_in == 2 * L_out), except where that tap crosses a batch boundary /
    the zero padding, in which case the row is all zeros (the pad contribution).
    Generated from iota comparisons: no HBM traffic, no div/mod.
    """
    r = lax.broadcasted_iota(jnp.int32, (m_out, m_in), 0)   # output index i
    c = lax.broadcasted_iota(jnp.int32, (m_out, m_in), 1)   # input index j
    sel = c == 2 * r + (k - PAD)
    if k == 0:                                    # tap reads position -1 of each batch
        for b in range(1, batch):
            sel = jnp.logical_and(sel, r != b * l_out)
    if k == K_CONV - 1:                           # tap reads position L_in of each batch
        for b in range(batch - 1):
            sel = jnp.logical_and(sel, r != b * l_out + l_out - 1)
    return jnp.where(sel, 1.0, 0.0).astype(jnp.bfloat16)


def _conv_stride2(h, w_ref, batch, channels_on_lanes):
    """One stride-2/pad-1/K=4 conv.  Output is (M_out, C_out) (channels on lanes).

    h is the previous activation, either (M_in, C_in) (channels_on_lanes=True) or
    (C_in, M_in).  The 4 taps are gathered with in-kernel generated 0/1 operators
    (exact selection of bf16 values) and stacked along the contraction axis so the
    weights are applied in a single MXU matmul with K*C_in contraction depth.
    """
    if channels_on_lanes:
        m_in, _ = h.shape
    else:
        _, m_in = h.shape
    m_out = m_in // STRIDE
    l_out = m_out // batch
    hb = h.astype(jnp.bfloat16)

    taps = []
    for k in range(K_CONV):
        s = _tap_selector(m_out, m_in, l_out, k, batch)       # (M_out, M_in) bf16
        if channels_on_lanes:
            g = jnp.dot(s, hb, preferred_element_type=jnp.float32)
        else:
            # contract the lane (position) axes of both operands (A @ B^T form)
            g = lax.dot_general(s, hb, (((1,), (1,)), ((), ())),
                                preferred_element_type=jnp.float32)
        taps.append(g.astype(jnp.bfloat16))                   # lossless: 0/1 gather
    g_all = jnp.concatenate(taps, axis=1)                     # (M_out, K*C_in)
    return jnp.dot(g_all, w_ref[...], preferred_element_type=jnp.float32)


def _bn_leaky(y, gamma, beta):
    """Train-mode BatchNorm1d (biased stats over batch x positions) + LeakyReLU."""
    inv_m = 1.0 / y.shape[0]
    mean = jnp.sum(y, axis=0, keepdims=True) * inv_m          # (1, C)
    cen = y - mean
    var = jnp.sum(cen * cen, axis=0, keepdims=True) * inv_m
    return _leaky(cen * lax.rsqrt(var + EPS) * gamma + beta)


# --------------------------------------------------------------------------
# The fused Pallas kernel: whole forward pass, everything VMEM resident.
# --------------------------------------------------------------------------
def _fused_forward_kernel(xc_ref, w1_ref, w2_ref, w3_ref, w4_ref, w5_ref,
                          w6_ref, bn_ref, feat_ref, cls_ref, *, batch):
    f32 = jnp.float32

    # ---- conv1 (im2col built in the wrapper) + LeakyReLU:  (16, N*160) --------
    h1 = _leaky(jnp.dot(w1_ref[...], xc_ref[...], preferred_element_type=f32))

    # ---- conv2..conv5 in channels-on-lanes (M, C) layout -----------------------
    y2 = _conv_stride2(h1, w2_ref, batch, channels_on_lanes=False)   # (N*80, 32)
    h2 = _bn_leaky(y2, bn_ref[0:1, 0:32], bn_ref[1:2, 0:32])
    y3 = _conv_stride2(h2, w3_ref, batch, channels_on_lanes=True)    # (N*40, 64)
    h3 = _bn_leaky(y3, bn_ref[2:3, 0:64], bn_ref[3:4, 0:64])
    y4 = _conv_stride2(h3, w4_ref, batch, channels_on_lanes=True)    # (N*20, 128)
    h4 = _bn_leaky(y4, bn_ref[4:5, 0:128], bn_ref[5:6, 0:128])
    y5 = _conv_stride2(h4, w5_ref, batch, channels_on_lanes=True)    # (N*10, 512)
    feat = _bn_leaky(y5, bn_ref[6:7, 0:512], bn_ref[7:8, 0:512])

    # ---- lane-dense feature store (wrapper reshapes to (N, 512, 10)) ----------
    feat_ref[...] = feat

    # ---- classifier: K=10 conv == per-batch <feat, w6>, sigmoid, one store ----
    m5 = feat.shape[0]                                          # N * 10
    l_f = m5 // batch
    w6_tiled = jnp.concatenate([w6_ref[...]] * batch, axis=0)   # (N*10, 512)
    prod = feat * w6_tiled
    rr = lax.broadcasted_iota(jnp.int32, (batch, m5), 0)
    cc = lax.broadcasted_iota(jnp.int32, (batch, m5), 1)
    pool = jnp.where(jnp.logical_and(cc >= rr * l_f, cc < (rr + 1) * l_f),
                     1.0, 0.0)                                  # (N, N*10) batch pooling
    bsum = jnp.dot(pool, prod, preferred_element_type=f32)      # (N, 512)
    logits = jnp.sum(bsum, axis=1, keepdims=True)               # (N, 1)
    cls_ref[...] = 1.0 / (1.0 + jnp.exp(-logits))


# --------------------------------------------------------------------------
# Wrapper / parameter handling
# --------------------------------------------------------------------------
def init_params(key):
    keys = jax.random.split(key, len(CONV_SHAPES))
    convs = [0.02 * jax.random.normal(k, s, jnp.float32)
             for k, s in zip(keys, CONV_SHAPES)]
    bns = [(jnp.ones((c,), jnp.float32), jnp.zeros((c,), jnp.float32))
           for c in BN_CHANNELS]
    return {"convs": convs, "bns": bns}


def discriminator_forward(params, x):
    """Returns (classifier (N,), features (N, 512, L/32)) — PyTorch module semantics."""
    n, c_in, l0 = x.shape
    assert c_in == 1
    l_f = l0 // 32
    assert l0 % 32 == 0 and l_f == CONV_SHAPES[-1][2], "classifier conv needs L = 320"

    convs = params["convs"]
    bns = params["bns"]

    # conv1 im2col on the raw input (only layer whose input lives outside the kernel).
    l1 = l0 // STRIDE
    xp = jnp.pad(x[:, 0, :], ((0, 0), (PAD, PAD)))                 # (N, L + 2)
    taps = [xp[:, k:k + STRIDE * l1:STRIDE] for k in range(K_CONV)]
    x_cols = jnp.stack(taps, axis=0).reshape(K_CONV, n * l1).astype(jnp.bfloat16)

    # conv1 weights as (16, K); conv2..5 as (K*C_in, C_out) with row = k*C_in + c_in.
    w1p = convs[0].reshape(CONV_SHAPES[0][0], K_CONV).astype(jnp.bfloat16)

    def repack_t(w):
        c_out, ci, k = w.shape
        return jnp.transpose(w, (2, 1, 0)).reshape(k * ci, c_out).astype(jnp.bfloat16)

    w2p, w3p, w4p, w5p = (repack_t(w) for w in convs[1:5])
    w6t = jnp.transpose(convs[5][0], (1, 0))                       # (10, 512) f32

    # all BN gammas/betas packed into one lane-dense (8, 512) f32 array.
    bn_rows = []
    for g, b in bns:
        bn_rows.append(jnp.pad(g, (0, BN_PACK_WIDTH - g.shape[0])))
        bn_rows.append(jnp.pad(b, (0, BN_PACK_WIDTH - b.shape[0])))
    bn_packed = jnp.stack(bn_rows, axis=0)                         # (8, 512)

    m5 = n * l_f
    kernel = functools.partial(_fused_forward_kernel, batch=n)
    vmem_spec = pl.BlockSpec(memory_space=pltpu.MemorySpace.VMEM)
    feat_t, cls = pl.pallas_call(
        kernel,
        out_shape=(jax.ShapeDtypeStruct((m5, 512), jnp.float32),
                   jax.ShapeDtypeStruct((n, 1), jnp.float32)),
        in_specs=[vmem_spec] * 8,
        out_specs=(vmem_spec, vmem_spec),
        cost_estimate=pl.CostEstimate(flops=30_000_000, transcendentals=1_000,
                                      bytes_accessed=800_000),
        compiler_params=pltpu.CompilerParams(vmem_limit_bytes=32 * 1024 * 1024),
    )(x_cols, w1p, w2p, w3p, w4p, w5p, w6t, bn_packed)

    features = feat_t.reshape(n, l_f, 512).transpose(0, 2, 1)      # (N, 512, 10)
    return cls.reshape(-1), features                               # .view(-1,1).squeeze(1)


# --------------------------------------------------------------------------
# Pure-JAX f32 reference (true module semantics, Precision.HIGHEST convs)
# --------------------------------------------------------------------------
def _ref_forward(params, x):
    def conv(h, w, stride, pad):
        return jax.lax.conv_general_dilated(
            h, w, (stride,), [(pad, pad)],
            dimension_numbers=("NCH", "OIH", "NCH"),
            precision=jax.lax.Precision.HIGHEST)

    def bn_lrelu(y, g, b):
        mean = y.mean(axis=(0, 2), keepdims=True)
        var = ((y - mean) ** 2).mean(axis=(0, 2), keepdims=True)
        yn = (y - mean) * jax.lax.rsqrt(var + EPS)
        yn = yn * g.reshape(1, -1, 1) + b.reshape(1, -1, 1)
        return jnp.where(yn > 0, yn, NEG_SLOPE * yn)

    w1, w2, w3, w4, w5, w6 = params["convs"]
    (g2, b2), (g3, b3), (g4, b4), (g5, b5) = params["bns"]
    h = conv(x, w1, 2, 1)
    h = jnp.where(h > 0, h, NEG_SLOPE * h)
    h = bn_lrelu(conv(h, w2, 2, 1), g2, b2)
    h = bn_lrelu(conv(h, w3, 2, 1), g3, b3)
    h = bn_lrelu(conv(h, w4, 2, 1), g4, b4)
    h = bn_lrelu(conv(h, w5, 2, 1), g5, b5)
    cls = jax.nn.sigmoid(conv(h, w6, 1, 0)).reshape(-1)
    return cls, h


# --------------------------------------------------------------------------
# main
# --------------------------------------------------------------------------
if __name__ == "__main__":
    key = jax.random.PRNGKey(0)
    pkey, xkey = jax.random.split(key)
    params = init_params(pkey)

    # Input: (N=2, C=1, L=320).  Five stride-2 convs -> length 10; classifier K=10 -> 1.
    x = jax.random.normal(xkey, (2, 1, 320), jnp.float32)

    fwd = jax.jit(functools.partial(discriminator_forward, params))
    classifier, features = fwd(x)
    jax.block_until_ready((classifier, features))

    assert classifier.shape == (2,), classifier.shape
    assert features.shape == (2, 512, 10), features.shape

    ref_cls, ref_feat = _ref_forward(params, x)
    # Kernel uses bf16 MXU operands with f32 accumulation; reference is f32 HIGHEST,
    # hence bf16-level tolerances (errors compound over 5 BN-normalized layers).
    assert jnp.allclose(classifier, ref_cls, rtol=2e-2, atol=2e-2), \
        float(jnp.max(jnp.abs(classifier - ref_cls)))
    assert jnp.allclose(features, ref_feat, rtol=4e-2, atol=4e-2), \
        float(jnp.max(jnp.abs(features - ref_feat)))

    print("KERNEL_OK")
</pallas_src>

<mosaic_0001>
module attributes {stable_mosaic.version = 11 : i64} {
  func.func @_fused_forward_kernel(%arg0: memref<4x320xbf16, #tpu.memory_space<vmem>>, %arg1: memref<16x4xbf16, #tpu.memory_space<vmem>>, %arg2: memref<64x32xbf16, #tpu.memory_space<vmem>>, %arg3: memref<128x64xbf16, #tpu.memory_space<vmem>>, %arg4: memref<256x128xbf16, #tpu.memory_space<vmem>>, %arg5: memref<512x512xbf16, #tpu.memory_space<vmem>>, %arg6: memref<10x512xf32, #tpu.memory_space<vmem>>, %arg7: memref<8x512xf32, #tpu.memory_space<vmem>>, %arg8: memref<20x512xf32, #tpu.memory_space<vmem>>, %arg9: memref<2x1xf32, #tpu.memory_space<vmem>>) attributes {dimension_semantics = [], scalar_prefetch = 0 : i64, scratch_operands = 0 : i64, tpu.core_type = #tpu.core_type<tc>} {
    %c0 = arith.constant 0 : index
    %c0_0 = arith.constant 0 : index
    %0 = vector.load %arg1[%c0, %c0_0] : memref<16x4xbf16, #tpu.memory_space<vmem>>, vector<16x4xbf16>
    %c0_1 = arith.constant 0 : index
    %c0_2 = arith.constant 0 : index
    %1 = vector.load %arg0[%c0_1, %c0_2] : memref<4x320xbf16, #tpu.memory_space<vmem>>, vector<4x320xbf16>
    %cst = arith.constant dense<0.000000e+00> : vector<16x320xf32>
    %2 = tpu.matmul %0, %1, %cst {dimension_numbers = #tpu.dot_dimension_numbers<[1], [0], [0], [1], [0, 0, 1, 1], [], []>} : vector<16x4xbf16>, vector<4x320xbf16>, vector<16x320xf32> -> vector<16x320xf32>
    %cst_3 = arith.constant 0.000000e+00 : f32
    %3 = vector.broadcast %cst_3 : f32 to vector<16x320xf32>
    %4 = arith.cmpf ogt, %2, %3 : vector<16x320xf32>
    %cst_4 = arith.constant 2.000000e-01 : f32
    %5 = vector.broadcast %cst_4 : f32 to vector<16x320xf32>
    %6 = arith.mulf %5, %2 : vector<16x320xf32>
    %7 = arith.select %4, %2, %6 : vector<16x320xi1>, vector<16x320xf32>
    %8 = arith.truncf %7 : vector<16x320xf32> to vector<16x320xbf16>
    %9 = tpu.iota {dimensions = array<i32: 0>} : vector<160x320xi32>
    %10 = tpu.iota {dimensions = array<i32: 1>} : vector<160x320xi32>
    %c2_i32 = arith.constant 2 : i32
    %11 = vector.broadcast %c2_i32 : i32 to vector<160x320xi32>
    %12 = arith.muli %11, %9 : vector<160x320xi32>
    %c-1_i32 = arith.constant -1 : i32
    %13 = vector.broadcast %c-1_i32 : i32 to vector<160x320xi32>
    %14 = arith.addi %12, %13 : vector<160x320xi32>
    %15 = arith.cmpi eq, %10, %14 : vector<160x320xi32>
    %c80_i32 = arith.constant 80 : i32
    %16 = vector.broadcast %c80_i32 : i32 to vector<160x320xi32>
    %17 = arith.cmpi ne, %9, %16 : vector<160x320xi32>
    %18 = arith.andi %15, %17 : vector<160x320xi1>
    %cst_5 = arith.constant 1.000000e+00 : f32
    %cst_6 = arith.constant 0.000000e+00 : f32
    %19 = vector.broadcast %cst_5 : f32 to vector<160x320xf32>
    %20 = vector.broadcast %cst_6 : f32 to vector<160x320xf32>
    %21 = arith.select %18, %19, %20 : vector<160x320xi1>, vector<160x320xf32>
    %22 = arith.truncf %21 : vector<160x320xf32> to vector<160x320xbf16>
    %cst_7 = arith.constant dense<0.000000e+00> : vector<160x16xf32>
    %23 = tpu.matmul %22, %8, %cst_7 {dimension_numbers = #tpu.dot_dimension_numbers<[1], [1], [0], [0], [0, 0, 1, 0], [], []>} : vector<160x320xbf16>, vector<16x320xbf16>, vector<160x16xf32> -> vector<160x16xf32>
    %24 = arith.truncf %23 : vector<160x16xf32> to vector<160x16xbf16>
    %25 = tpu.iota {dimensions = array<i32: 0>} : vector<160x320xi32>
    %26 = tpu.iota {dimensions = array<i32: 1>} : vector<160x320xi32>
    %c2_i32_8 = arith.constant 2 : i32
    %27 = vector.broadcast %c2_i32_8 : i32 to vector<160x320xi32>
    %28 = arith.muli %27, %25 : vector<160x320xi32>
    %c0_i32 = arith.constant 0 : i32
    %29 = vector.broadcast %c0_i32 : i32 to vector<160x320xi32>
    %30 = arith.addi %28, %29 : vector<160x320xi32>
    %31 = arith.cmpi eq, %26, %30 : vector<160x320xi32>
    %cst_9 = arith.constant 1.000000e+00 : f32
    %cst_10 = arith.constant 0.000000e+00 : f32
    %32 = vector.broadcast %cst_9 : f32 to vector<160x320xf32>
    %33 = vector.broadcast %cst_10 : f32 to vector<160x320xf32>
    %34 = arith.select %31, %32, %33 : vector<160x320xi1>, vector<160x320xf32>
    %35 = arith.truncf %34 : vector<160x320xf32> to vector<160x320xbf16>
    %cst_11 = arith.constant dense<0.000000e+00> : vector<160x16xf32>
    %36 = tpu.matmul %35, %8, %cst_11 {dimension_numbers = #tpu.dot_dimension_numbers<[1], [1], [0], [0], [0, 0, 1, 0], [], []>} : vector<160x320xbf16>, vector<16x320xbf16>, vector<160x16xf32> -> vector<160x16xf32>
    %37 = arith.truncf %36 : vector<160x16xf32> to vector<160x16xbf16>
    %38 = tpu.iota {dimensions = array<i32: 0>} : vector<160x320xi32>
    %39 = tpu.iota {dimensions = array<i32: 1>} : vector<160x320xi32>
    %c2_i32_12 = arith.constant 2 : i32
    %40 = vector.broadcast %c2_i32_12 : i32 to vector<160x320xi32>
    %41 = arith.muli %40, %38 : vector<160x320xi32>
    %c1_i32 = arith.constant 1 : i32
    %42 = vector.broadcast %c1_i32 : i32 to vector<160x320xi32>
    %43 = arith.addi %41, %42 : vector<160x320xi32>
    %44 = arith.cmpi eq, %39, %43 : vector<160x320xi32>
    %cst_13 = arith.constant 1.000000e+00 : f32
    %cst_14 = arith.constant 0.000000e+00 : f32
    %45 = vector.broadcast %cst_13 : f32 to vector<160x320xf32>
    %46 = vector.broadcast %cst_14 : f32 to vector<160x320xf32>
    %47 = arith.select %44, %45, %46 : vector<160x320xi1>, vector<160x320xf32>
    %48 = arith.truncf %47 : vector<160x320xf32> to vector<160x320xbf16>
    %cst_15 = arith.constant dense<0.000000e+00> : vector<160x16xf32>
    %49 = tpu.matmul %48, %8, %cst_15 {dimension_numbers = #tpu.dot_dimension_numbers<[1], [1], [0], [0], [0, 0, 1, 0], [], []>} : vector<160x320xbf16>, vector<16x320xbf16>, vector<160x16xf32> -> vector<160x16xf32>
    %50 = arith.truncf %49 : vector<160x16xf32> to vector<160x16xbf16>
    %51 = tpu.iota {dimensions = array<i32: 0>} : vector<160x320xi32>
    %52 = tpu.iota {dimensions = array<i32: 1>} : vector<160x320xi32>
    %c2_i32_16 = arith.constant 2 : i32
    %53 = vector.broadcast %c2_i32_16 : i32 to vector<160x320xi32>
    %54 = arith.muli %53, %51 : vector<160x320xi32>
    %c2_i32_17 = arith.constant 2 : i32
    %55 = vector.broadcast %c2_i32_17 : i32 to vector<160x320xi32>
    %56 = arith.addi %54, %55 : vector<160x320xi32>
    %57 = arith.cmpi eq, %52, %56 : vector<160x320xi32>
    %c79_i32 = arith.constant 79 : i32
    %58 = vector.broadcast %c79_i32 : i32 to vector<160x320xi32>
    %59 = arith.cmpi ne, %51, %58 : vector<160x320xi32>
    %60 = arith.andi %57, %59 : vector<160x320xi1>
    %cst_18 = arith.constant 1.000000e+00 : f32
    %cst_19 = arith.constant 0.000000e+00 : f32
    %61 = vector.broadcast %cst_18 : f32 to vector<160x320xf32>
    %62 = vector.broadcast %cst_19 : f32 to vector<160x320xf32>
    %63 = arith.select %60, %61, %62 : vector<160x320xi1>, vector<160x320xf32>
    %64 = arith.truncf %63 : vector<160x320xf32> to vector<160x320xbf16>
    %cst_20 = arith.constant dense<0.000000e+00> : vector<160x16xf32>
    %65 = tpu.matmul %64, %8, %cst_20 {dimension_numbers = #tpu.dot_dimension_numbers<[1], [1], [0], [0], [0, 0, 1, 0], [], []>} : vector<160x320xbf16>, vector<16x320xbf16>, vector<160x16xf32> -> vector<160x16xf32>
    %66 = arith.truncf %65 : vector<160x16xf32> to vector<160x16xbf16>
    %67 = tpu.concatenate %24, %37, %50, %66 in 1 : vector<160x16xbf16>, vector<160x16xbf16>, vector<160x16xbf16>, vector<160x16xbf16> -> vector<160x64xbf16>
    %c0_21 = arith.constant 0 : index
    %c0_22 = arith.constant 0 : index
    %68 = vector.load %arg2[%c0_21, %c0_22] : memref<64x32xbf16, #tpu.memory_space<vmem>>, vector<64x32xbf16>
    %cst_23 = arith.constant dense<0.000000e+00> : vector<160x32xf32>
    %69 = tpu.matmul %67, %68, %cst_23 {dimension_numbers = #tpu.dot_dimension_numbers<[1], [0], [0], [1], [0, 0, 1, 1], [], []>} : vector<160x64xbf16>, vector<64x32xbf16>, vector<160x32xf32> -> vector<160x32xf32>
    %c0_24 = arith.constant 0 : index
    %c0_25 = arith.constant 0 : index
    %70 = vector.load %arg7[%c0_24, %c0_25] : memref<8x512xf32, #tpu.memory_space<vmem>>, vector<1x32xf32>
    %c1 = arith.constant 1 : index
    %c0_26 = arith.constant 0 : index
    %71 = vector.load %arg7[%c1, %c0_26] : memref<8x512xf32, #tpu.memory_space<vmem>>, vector<1x32xf32>
    %cst_27 = arith.constant dense<0.000000e+00> : vector<32xf32>
    %72 = vector.multi_reduction <add>, %69, %cst_27 [0] : vector<160x32xf32> to vector<32xf32>
    %73 = vector.shape_cast %72 : vector<32xf32> to vector<1x32xf32>
    %cst_28 = arith.constant 6.250000e-03 : f32
    %74 = vector.broadcast %cst_28 : f32 to vector<1x32xf32>
    %75 = arith.mulf %73, %74 : vector<1x32xf32>
    %76 = vector.broadcast %75 : vector<1x32xf32> to vector<160x32xf32>
    %77 = arith.subf %69, %76 : vector<160x32xf32>
    %78 = arith.mulf %77, %77 : vector<160x32xf32>
    %cst_29 = arith.constant dense<0.000000e+00> : vector<32xf32>
    %79 = vector.multi_reduction <add>, %78, %cst_29 [0] : vector<160x32xf32> to vector<32xf32>
    %80 = vector.shape_cast %79 : vector<32xf32> to vector<1x32xf32>
    %cst_30 = arith.constant 6.250000e-03 : f32
    %81 = vector.broadcast %cst_30 : f32 to vector<1x32xf32>
    %82 = arith.mulf %80, %81 : vector<1x32xf32>
    %cst_31 = arith.constant 9.99999974E-6 : f32
    %83 = vector.broadcast %cst_31 : f32 to vector<1x32xf32>
    %84 = arith.addf %82, %83 : vector<1x32xf32>
    %85 = math.rsqrt %84 : vector<1x32xf32>
    %86 = vector.broadcast %85 : vector<1x32xf32> to vector<160x32xf32>
    %87 = arith.mulf %77, %86 : vector<160x32xf32>
    %88 = vector.broadcast %70 : vector<1x32xf32> to vector<160x32xf32>
    %89 = arith.mulf %87, %88 : vector<160x32xf32>
    %90 = vector.broadcast %71 : vector<1x32xf32> to vector<160x32xf32>
    %91 = arith.addf %89, %90 : vector<160x32xf32>
    %cst_32 = arith.constant 0.000000e+00 : f32
    %92 = vector.broadcast %cst_32 : f32 to vector<160x32xf32>
    %93 = arith.cmpf ogt, %91, %92 : vector<160x32xf32>
    %cst_33 = arith.constant 2.000000e-01 : f32
    %94 = vector.broadcast %cst_33 : f32 to vector<160x32xf32>
    %95 = arith.mulf %94, %91 : vector<160x32xf32>
    %96 = arith.select %93, %91, %95 : vector<160x32xi1>, vector<160x32xf32>
    %97 = arith.truncf %96 : vector<160x32xf32> to vector<160x32xbf16>
    %98 = tpu.iota {dimensions = array<i32: 0>} : vector<80x160xi32>
    %99 = tpu.iota {dimensions = array<i32: 1>} : vector<80x160xi32>
    %c2_i32_34 = arith.constant 2 : i32
    %100 = vector.broadcast %c2_i32_34 : i32 to vector<80x160xi32>
    %101 = arith.muli %100, %98 : vector<80x160xi32>
    %c-1_i32_35 = arith.constant -1 : i32
    %102 = vector.broadcast %c-1_i32_35 : i32 to vector<80x160xi32>
    %103 = arith.addi %101, %102 : vector<80x160xi32>
    %104 = arith.cmpi eq, %99, %103 : vector<80x160xi32>
    %c40_i32 = arith.constant 40 : i32
    %105 = vector.broadcast %c40_i32 : i32 to vector<80x160xi32>
    %106 = arith.cmpi ne, %98, %105 : vector<80x160xi32>
    %107 = arith.andi %104, %106 : vector<80x160xi1>
    %cst_36 = arith.constant 1.000000e+00 : f32
    %cst_37 = arith.constant 0.000000e+00 : f32
    %108 = vector.broadcast %cst_36 : f32 to vector<80x160xf32>
    %109 = vector.broadcast %cst_37 : f32 to vector<80x160xf32>
    %110 = arith.select %107, %108, %109 : vector<80x160xi1>, vector<80x160xf32>
    %111 = arith.truncf %110 : vector<80x160xf32> to vector<80x160xbf16>
    %cst_38 = arith.constant dense<0.000000e+00> : vector<80x32xf32>
    %112 = tpu.matmul %111, %97, %cst_38 {dimension_numbers = #tpu.dot_dimension_numbers<[1], [0], [0], [1], [0, 0, 1, 1], [], []>} : vector<80x160xbf16>, vector<160x32xbf16>, vector<80x32xf32> -> vector<80x32xf32>
    %113 = arith.truncf %112 : vector<80x32xf32> to vector<80x32xbf16>
    %114 = tpu.iota {dimensions = array<i32: 0>} : vector<80x160xi32>
    %115 = tpu.iota {dimensions = array<i32: 1>} : vector<80x160xi32>
    %c2_i32_39 = arith.constant 2 : i32
    %116 = vector.broadcast %c2_i32_39 : i32 to vector<80x160xi32>
    %117 = arith.muli %116, %114 : vector<80x160xi32>
    %c0_i32_40 = arith.constant 0 : i32
    %118 = vector.broadcast %c0_i32_40 : i32 to vector<80x160xi32>
    %119 = arith.addi %117, %118 : vector<80x160xi32>
    %120 = arith.cmpi eq, %115, %119 : vector<80x160xi32>
    %cst_41 = arith.constant 1.000000e+00 : f32
    %cst_42 = arith.constant 0.000000e+00 : f32
    %121 = vector.broadcast %cst_41 : f32 to vector<80x160xf32>
    %122 = vector.broadcast %cst_42 : f32 to vector<80x160xf32>
    %123 = arith.select %120, %121, %122 : vector<80x160xi1>, vector<80x160xf32>
    %124 = arith.truncf %123 : vector<80x160xf32> to vector<80x160xbf16>
    %cst_43 = arith.constant dense<0.000000e+00> : vector<80x32xf32>
    %125 = tpu.matmul %124, %97, %cst_43 {dimension_numbers = #tpu.dot_dimension_numbers<[1], [0], [0], [1], [0, 0, 1, 1], [], []>} : vector<80x160xbf16>, vector<160x32xbf16>, vector<80x32xf32> -> vector<80x32xf32>
    %126 = arith.truncf %125 : vector<80x32xf32> to vector<80x32xbf16>
    %127 = tpu.iota {dimensions = array<i32: 0>} : vector<80x160xi32>
    %128 = tpu.iota {dimensions = array<i32: 1>} : vector<80x160xi32>
    %c2_i32_44 = arith.constant 2 : i32
    %129 = vector.broadcast %c2_i32_44 : i32 to vector<80x160xi32>
    %130 = arith.muli %129, %127 : vector<80x160xi32>
    %c1_i32_45 = arith.constant 1 : i32
    %131 = vector.broadcast %c1_i32_45 : i32 to vector<80x160xi32>
    %132 = arith.addi %130, %131 : vector<80x160xi32>
    %133 = arith.cmpi eq, %128, %132 : vector<80x160xi32>
    %cst_46 = arith.constant 1.000000e+00 : f32
    %cst_47 = arith.constant 0.000000e+00 : f32
    %134 = vector.broadcast %cst_46 : f32 to vector<80x160xf32>
    %135 = vector.broadcast %cst_47 : f32 to vector<80x160xf32>
    %136 = arith.select %133, %134, %135 : vector<80x160xi1>, vector<80x160xf32>
    %137 = arith.truncf %136 : vector<80x160xf32> to vector<80x160xbf16>
    %cst_48 = arith.constant dense<0.000000e+00> : vector<80x32xf32>
    %138 = tpu.matmul %137, %97, %cst_48 {dimension_numbers = #tpu.dot_dimension_numbers<[1], [0], [0], [1], [0, 0, 1, 1], [], []>} : vector<80x160xbf16>, vector<160x32xbf16>, vector<80x32xf32> -> vector<80x32xf32>
    %139 = arith.truncf %138 : vector<80x32xf32> to vector<80x32xbf16>
    %140 = tpu.iota {dimensions = array<i32: 0>} : vector<80x160xi32>
    %141 = tpu.iota {dimensions = array<i32: 1>} : vector<80x160xi32>
    %c2_i32_49 = arith.constant 2 : i32
    %142 = vector.broadcast %c2_i32_49 : i32 to vector<80x160xi32>
    %143 = arith.muli %142, %140 : vector<80x160xi32>
    %c2_i32_50 = arith.constant 2 : i32
    %144 = vector.broadcast %c2_i32_50 : i32 to vector<80x160xi32>
    %145 = arith.addi %143, %144 : vector<80x160xi32>
    %146 = arith.cmpi eq, %141, %145 : vector<80x160xi32>
    %c39_i32 = arith.constant 39 : i32
    %147 = vector.broadcast %c39_i32 : i32 to vector<80x160xi32>
    %148 = arith.cmpi ne, %140, %147 : vector<80x160xi32>
    %149 = arith.andi %146, %148 : vector<80x160xi1>
    %cst_51 = arith.constant 1.000000e+00 : f32
    %cst_52 = arith.constant 0.000000e+00 : f32
    %150 = vector.broadcast %cst_51 : f32 to vector<80x160xf32>
    %151 = vector.broadcast %cst_52 : f32 to vector<80x160xf32>
    %152 = arith.select %149, %150, %151 : vector<80x160xi1>, vector<80x160xf32>
    %153 = arith.truncf %152 : vector<80x160xf32> to vector<80x160xbf16>
    %cst_53 = arith.constant dense<0.000000e+00> : vector<80x32xf32>
    %154 = tpu.matmul %153, %97, %cst_53 {dimension_numbers = #tpu.dot_dimension_numbers<[1], [0], [0], [1], [0, 0, 1, 1], [], []>} : vector<80x160xbf16>, vector<160x32xbf16>, vector<80x32xf32> -> vector<80x32xf32>
    %155 = arith.truncf %154 : vector<80x32xf32> to vector<80x32xbf16>
    %156 = tpu.concatenate %113, %126, %139, %155 in 1 : vector<80x32xbf16>, vector<80x32xbf16>, vector<80x32xbf16>, vector<80x32xbf16> -> vector<80x128xbf16>
    %c0_54 = arith.constant 0 : index
    %c0_55 = arith.constant 0 : index
    %157 = vector.load %arg3[%c0_54, %c0_55] : memref<128x64xbf16, #tpu.memory_space<vmem>>, vector<128x64xbf16>
    %cst_56 = arith.constant dense<0.000000e+00> : vector<80x64xf32>
    %158 = tpu.matmul %156, %157, %cst_56 {dimension_numbers = #tpu.dot_dimension_numbers<[1], [0], [0], [1], [0, 0, 1, 1], [], []>} : vector<80x128xbf16>, vector<128x64xbf16>, vector<80x64xf32> -> vector<80x64xf32>
    %c2 = arith.constant 2 : index
    %c0_57 = arith.constant 0 : index
    %159 = vector.load %arg7[%c2, %c0_57] : memref<8x512xf32, #tpu.memory_space<vmem>>, vector<1x64xf32>
    %c3 = arith.constant 3 : index
    %c0_58 = arith.constant 0 : index
    %160 = vector.load %arg7[%c3, %c0_58] : memref<8x512xf32, #tpu.memory_space<vmem>>, vector<1x64xf32>
    %cst_59 = arith.constant dense<0.000000e+00> : vector<64xf32>
    %161 = vector.multi_reduction <add>, %158, %cst_59 [0] : vector<80x64xf32> to vector<64xf32>
    %162 = vector.shape_cast %161 : vector<64xf32> to vector<1x64xf32>
    %cst_60 = arith.constant 1.250000e-02 : f32
    %163 = vector.broadcast %cst_60 : f32 to vector<1x64xf32>
    %164 = arith.mulf %162, %163 : vector<1x64xf32>
    %165 = vector.broadcast %164 : vector<1x64xf32> to vector<80x64xf32>
    %166 = arith.subf %158, %165 : vector<80x64xf32>
    %167 = arith.mulf %166, %166 : vector<80x64xf32>
    %cst_61 = arith.constant dense<0.000000e+00> : vector<64xf32>
    %168 = vector.multi_reduction <add>, %167, %cst_61 [0] : vector<80x64xf32> to vector<64xf32>
    %169 = vector.shape_cast %168 : vector<64xf32> to vector<1x64xf32>
    %cst_62 = arith.constant 1.250000e-02 : f32
    %170 = vector.broadcast %cst_62 : f32 to vector<1x64xf32>
    %171 = arith.mulf %169, %170 : vector<1x64xf32>
    %cst_63 = arith.constant 9.99999974E-6 : f32
    %172 = vector.broadcast %cst_63 : f32 to vector<1x64xf32>
    %173 = arith.addf %171, %172 : vector<1x64xf32>
    %174 = math.rsqrt %173 : vector<1x64xf32>
    %175 = vector.broadcast %174 : vector<1x64xf32> to vector<80x64xf32>
    %176 = arith.mulf %166, %175 : vector<80x64xf32>
    %177 = vector.broadcast %159 : vector<1x64xf32> to vector<80x64xf32>
    %178 = arith.mulf %176, %177 : vector<80x64xf32>
    %179 = vector.broadcast %160 : vector<1x64xf32> to vector<80x64xf32>
    %180 = arith.addf %178, %179 : vector<80x64xf32>
    %cst_64 = arith.constant 0.000000e+00 : f32
    %181 = vector.broadcast %cst_64 : f32 to vector<80x64xf32>
    %182 = arith.cmpf ogt, %180, %181 : vector<80x64xf32>
    %cst_65 = arith.constant 2.000000e-01 : f32
    %183 = vector.broadcast %cst_65 : f32 to vector<80x64xf32>
    %184 = arith.mulf %183, %180 : vector<80x64xf32>
    %185 = arith.select %182, %180, %184 : vector<80x64xi1>, vector<80x64xf32>
    %186 = arith.truncf %185 : vector<80x64xf32> to vector<80x64xbf16>
    %187 = tpu.iota {dimensions = array<i32: 0>} : vector<40x80xi32>
    %188 = tpu.iota {dimensions = array<i32: 1>} : vector<40x80xi32>
    %c2_i32_66 = arith.constant 2 : i32
    %189 = vector.broadcast %c2_i32_66 : i32 to vector<40x80xi32>
    %190 = arith.muli %189, %187 : vector<40x80xi32>
    %c-1_i32_67 = arith.constant -1 : i32
    %191 = vector.broadcast %c-1_i32_67 : i32 to vector<40x80xi32>
    %192 = arith.addi %190, %191 : vector<40x80xi32>
    %193 = arith.cmpi eq, %188, %192 : vector<40x80xi32>
    %c20_i32 = arith.constant 20 : i32
    %194 = vector.broadcast %c20_i32 : i32 to vector<40x80xi32>
    %195 = arith.cmpi ne, %187, %194 : vector<40x80xi32>
    %196 = arith.andi %193, %195 : vector<40x80xi1>
    %cst_68 = arith.constant 1.000000e+00 : f32
    %cst_69 = arith.constant 0.000000e+00 : f32
    %197 = vector.broadcast %cst_68 : f32 to vector<40x80xf32>
    %198 = vector.broadcast %cst_69 : f32 to vector<40x80xf32>
    %199 = arith.select %196, %197, %198 : vector<40x80xi1>, vector<40x80xf32>
    %200 = arith.truncf %199 : vector<40x80xf32> to vector<40x80xbf16>
    %cst_70 = arith.constant dense<0.000000e+00> : vector<40x64xf32>
    %201 = tpu.matmul %200, %186, %cst_70 {dimension_numbers = #tpu.dot_dimension_numbers<[1], [0], [0], [1], [0, 0, 1, 1], [], []>} : vector<40x80xbf16>, vector<80x64xbf16>, vector<40x64xf32> -> vector<40x64xf32>
    %202 = arith.truncf %201 : vector<40x64xf32> to vector<40x64xbf16>
    %203 = tpu.iota {dimensions = array<i32: 0>} : vector<40x80xi32>
    %204 = tpu.iota {dimensions = array<i32: 1>} : vector<40x80xi32>
    %c2_i32_71 = arith.constant 2 : i32
    %205 = vector.broadcast %c2_i32_71 : i32 to vector<40x80xi32>
    %206 = arith.muli %205, %203 : vector<40x80xi32>
    %c0_i32_72 = arith.constant 0 : i32
    %207 = vector.broadcast %c0_i32_72 : i32 to vector<40x80xi32>
    %208 = arith.addi %206, %207 : vector<40x80xi32>
    %209 = arith.cmpi eq, %204, %208 : vector<40x80xi32>
    %cst_73 = arith.constant 1.000000e+00 : f32
    %cst_74 = arith.constant 0.000000e+00 : f32
    %210 = vector.broadcast %cst_73 : f32 to vector<40x80xf32>
    %211 = vector.broadcast %cst_74 : f32 to vector<40x80xf32>
    %212 = arith.select %209, %210, %211 : vector<40x80xi1>, vector<40x80xf32>
    %213 = arith.truncf %212 : vector<40x80xf32> to vector<40x80xbf16>
    %cst_75 = arith.constant dense<0.000000e+00> : vector<40x64xf32>
    %214 = tpu.matmul %213, %186, %cst_75 {dimension_numbers = #tpu.dot_dimension_numbers<[1], [0], [0], [1], [0, 0, 1, 1], [], []>} : vector<40x80xbf16>, vector<80x64xbf16>, vector<40x64xf32> -> vector<40x64xf32>
    %215 = arith.truncf %214 : vector<40x64xf32> to vector<40x64xbf16>
    %216 = tpu.iota {dimensions = array<i32: 0>} : vector<40x80xi32>
    %217 = tpu.iota {dimensions = array<i32: 1>} : vector<40x80xi32>
    %c2_i32_76 = arith.constant 2 : i32
    %218 = vector.broadcast %c2_i32_76 : i32 to vector<40x80xi32>
    %219 = arith.muli %218, %216 : vector<40x80xi32>
    %c1_i32_77 = arith.constant 1 : i32
    %220 = vector.broadcast %c1_i32_77 : i32 to vector<40x80xi32>
    %221 = arith.addi %219, %220 : vector<40x80xi32>
    %222 = arith.cmpi eq, %217, %221 : vector<40x80xi32>
    %cst_78 = arith.constant 1.000000e+00 : f32
    %cst_79 = arith.constant 0.000000e+00 : f32
    %223 = vector.broadcast %cst_78 : f32 to vector<40x80xf32>
    %224 = vector.broadcast %cst_79 : f32 to vector<40x80xf32>
    %225 = arith.select %222, %223, %224 : vector<40x80xi1>, vector<40x80xf32>
    %226 = arith.truncf %225 : vector<40x80xf32> to vector<40x80xbf16>
    %cst_80 = arith.constant dense<0.000000e+00> : vector<40x64xf32>
    %227 = tpu.matmul %226, %186, %cst_80 {dimension_numbers = #tpu.dot_dimension_numbers<[1], [0], [0], [1], [0, 0, 1, 1], [], []>} : vector<40x80xbf16>, vector<80x64xbf16>, vector<40x64xf32> -> vector<40x64xf32>
    %228 = arith.truncf %227 : vector<40x64xf32> to vector<40x64xbf16>
    %229 = tpu.iota {dimensions = array<i32: 0>} : vector<40x80xi32>
    %230 = tpu.iota {dimensions = array<i32: 1>} : vector<40x80xi32>
    %c2_i32_81 = arith.constant 2 : i32
    %231 = vector.broadcast %c2_i32_81 : i32 to vector<40x80xi32>
    %232 = arith.muli %231, %229 : vector<40x80xi32>
    %c2_i32_82 = arith.constant 2 : i32
    %233 = vector.broadcast %c2_i32_82 : i32 to vector<40x80xi32>
    %234 = arith.addi %232, %233 : vector<40x80xi32>
    %235 = arith.cmpi eq, %230, %234 : vector<40x80xi32>
    %c19_i32 = arith.constant 19 : i32
    %236 = vector.broadcast %c19_i32 : i32 to vector<40x80xi32>
    %237 = arith.cmpi ne, %229, %236 : vector<40x80xi32>
    %238 = arith.andi %235, %237 : vector<40x80xi1>
    %cst_83 = arith.constant 1.000000e+00 : f32
    %cst_84 = arith.constant 0.000000e+00 : f32
    %239 = vector.broadcast %cst_83 : f32 to vector<40x80xf32>
    %240 = vector.broadcast %cst_84 : f32 to vector<40x80xf32>
    %241 = arith.select %238, %239, %240 : vector<40x80xi1>, vector<40x80xf32>
    %242 = arith.truncf %241 : vector<40x80xf32> to vector<40x80xbf16>
    %cst_85 = arith.constant dense<0.000000e+00> : vector<40x64xf32>
    %243 = tpu.matmul %242, %186, %cst_85 {dimension_numbers = #tpu.dot_dimension_numbers<[1], [0], [0], [1], [0, 0, 1, 1], [], []>} : vector<40x80xbf16>, vector<80x64xbf16>, vector<40x64xf32> -> vector<40x64xf32>
    %244 = arith.truncf %243 : vector<40x64xf32> to vector<40x64xbf16>
    %245 = tpu.concatenate %202, %215, %228, %244 in 1 : vector<40x64xbf16>, vector<40x64xbf16>, vector<40x64xbf16>, vector<40x64xbf16> -> vector<40x256xbf16>
    %c0_86 = arith.constant 0 : index
    %c0_87 = arith.constant 0 : index
    %246 = vector.load %arg4[%c0_86, %c0_87] : memref<256x128xbf16, #tpu.memory_space<vmem>>, vector<256x128xbf16>
    %cst_88 = arith.constant dense<0.000000e+00> : vector<40x128xf32>
    %247 = tpu.matmul %245, %246, %cst_88 {dimension_numbers = #tpu.dot_dimension_numbers<[1], [0], [0], [1], [0, 0, 1, 1], [], []>} : vector<40x256xbf16>, vector<256x128xbf16>, vector<40x128xf32> -> vector<40x128xf32>
    %c4 = arith.constant 4 : index
    %c0_89 = arith.constant 0 : index
    %248 = vector.load %arg7[%c4, %c0_89] : memref<8x512xf32, #tpu.memory_space<vmem>>, vector<1x128xf32>
    %c5 = arith.constant 5 : index
    %c0_90 = arith.constant 0 : index
    %249 = vector.load %arg7[%c5, %c0_90] : memref<8x512xf32, #tpu.memory_space<vmem>>, vector<1x128xf32>
    %cst_91 = arith.constant dense<0.000000e+00> : vector<128xf32>
    %250 = vector.multi_reduction <add>, %247, %cst_91 [0] : vector<40x128xf32> to vector<128xf32>
    %251 = vector.shape_cast %250 : vector<128xf32> to vector<1x128xf32>
    %cst_92 = arith.constant 2.500000e-02 : f32
    %252 = vector.broadcast %cst_92 : f32 to vector<1x128xf32>
    %253 = arith.mulf %251, %252 : vector<1x128xf32>
    %254 = vector.broadcast %253 : vector<1x128xf32> to vector<40x128xf32>
    %255 = arith.subf %247, %254 : vector<40x128xf32>
    %256 = arith.mulf %255, %255 : vector<40x128xf32>
    %cst_93 = arith.constant dense<0.000000e+00> : vector<128xf32>
    %257 = vector.multi_reduction <add>, %256, %cst_93 [0] : vector<40x128xf32> to vector<128xf32>
    %258 = vector.shape_cast %257 : vector<128xf32> to vector<1x128xf32>
    %cst_94 = arith.constant 2.500000e-02 : f32
    %259 = vector.broadcast %cst_94 : f32 to vector<1x128xf32>
    %260 = arith.mulf %258, %259 : vector<1x128xf32>
    %cst_95 = arith.constant 9.99999974E-6 : f32
    %261 = vector.broadcast %cst_95 : f32 to vector<1x128xf32>
    %262 = arith.addf %260, %261 : vector<1x128xf32>
    %263 = math.rsqrt %262 : vector<1x128xf32>
    %264 = vector.broadcast %263 : vector<1x128xf32> to vector<40x128xf32>
    %265 = arith.mulf %255, %264 : vector<40x128xf32>
    %266 = vector.broadcast %248 : vector<1x128xf32> to vector<40x128xf32>
    %267 = arith.mulf %265, %266 : vector<40x128xf32>
    %268 = vector.broadcast %249 : vector<1x128xf32> to vector<40x128xf32>
    %269 = arith.addf %267, %268 : vector<40x128xf32>
    %cst_96 = arith.constant 0.000000e+00 : f32
    %270 = vector.broadcast %cst_96 : f32 to vector<40x128xf32>
    %271 = arith.cmpf ogt, %269, %270 : vector<40x128xf32>
    %cst_97 = arith.constant 2.000000e-01 : f32
    %272 = vector.broadcast %cst_97 : f32 to vector<40x128xf32>
    %273 = arith.mulf %272, %269 : vector<40x128xf32>
    %274 = arith.select %271, %269, %273 : vector<40x128xi1>, vector<40x128xf32>
    %275 = arith.truncf %274 : vector<40x128xf32> to vector<40x128xbf16>
    %276 = tpu.iota {dimensions = array<i32: 0>} : vector<20x40xi32>
    %277 = tpu.iota {dimensions = array<i32: 1>} : vector<20x40xi32>
    %c2_i32_98 = arith.constant 2 : i32
    %278 = vector.broadcast %c2_i32_98 : i32 to vector<20x40xi32>
    %279 = arith.muli %278, %276 : vector<20x40xi32>
    %c-1_i32_99 = arith.constant -1 : i32
    %280 = vector.broadcast %c-1_i32_99 : i32 to vector<20x40xi32>
    %281 = arith.addi %279, %280 : vector<20x40xi32>
    %282 = arith.cmpi eq, %277, %281 : vector<20x40xi32>
    %c10_i32 = arith.constant 10 : i32
    %283 = vector.broadcast %c10_i32 : i32 to vector<20x40xi32>
    %284 = arith.cmpi ne, %276, %283 : vector<20x40xi32>
    %285 = arith.andi %282, %284 : vector<20x40xi1>
    %cst_100 = arith.constant 1.000000e+00 : f32
    %cst_101 = arith.constant 0.000000e+00 : f32
    %286 = vector.broadcast %cst_100 : f32 to vector<20x40xf32>
    %287 = vector.broadcast %cst_101 : f32 to vector<20x40xf32>
    %288 = arith.select %285, %286, %287 : vector<20x40xi1>, vector<20x40xf32>
    %289 = arith.truncf %288 : vector<20x40xf32> to vector<20x40xbf16>
    %cst_102 = arith.constant dense<0.000000e+00> : vector<20x128xf32>
    %290 = tpu.matmul %289, %275, %cst_102 {dimension_numbers = #tpu.dot_dimension_numbers<[1], [0], [0], [1], [0, 0, 1, 1], [], []>} : vector<20x40xbf16>, vector<40x128xbf16>, vector<20x128xf32> -> vector<20x128xf32>
    %291 = arith.truncf %290 : vector<20x128xf32> to vector<20x128xbf16>
    %292 = tpu.iota {dimensions = array<i32: 0>} : vector<20x40xi32>
    %293 = tpu.iota {dimensions = array<i32: 1>} : vector<20x40xi32>
    %c2_i32_103 = arith.constant 2 : i32
    %294 = vector.broadcast %c2_i32_103 : i32 to vector<20x40xi32>
    %295 = arith.muli %294, %292 : vector<20x40xi32>
    %c0_i32_104 = arith.constant 0 : i32
    %296 = vector.broadcast %c0_i32_104 : i32 to vector<20x40xi32>
    %297 = arith.addi %295, %296 : vector<20x40xi32>
    %298 = arith.cmpi eq, %293, %297 : vector<20x40xi32>
    %cst_105 = arith.constant 1.000000e+00 : f32
    %cst_106 = arith.constant 0.000000e+00 : f32
    %299 = vector.broadcast %cst_105 : f32 to vector<20x40xf32>
    %300 = vector.broadcast %cst_106 : f32 to vector<20x40xf32>
    %301 = arith.select %298, %299, %300 : vector<20x40xi1>, vector<20x40xf32>
    %302 = arith.truncf %301 : vector<20x40xf32> to vector<20x40xbf16>
    %cst_107 = arith.constant dense<0.000000e+00> : vector<20x128xf32>
    %303 = tpu.matmul %302, %275, %cst_107 {dimension_numbers = #tpu.dot_dimension_numbers<[1], [0], [0], [1], [0, 0, 1, 1], [], []>} : vector<20x40xbf16>, vector<40x128xbf16>, vector<20x128xf32> -> vector<20x128xf32>
    %304 = arith.truncf %303 : vector<20x128xf32> to vector<20x128xbf16>
    %305 = tpu.iota {dimensions = array<i32: 0>} : vector<20x40xi32>
    %306 = tpu.iota {dimensions = array<i32: 1>} : vector<20x40xi32>
    %c2_i32_108 = arith.constant 2 : i32
    %307 = vector.broadcast %c2_i32_108 : i32 to vector<20x40xi32>
    %308 = arith.muli %307, %305 : vector<20x40xi32>
    %c1_i32_109 = arith.constant 1 : i32
    %309 = vector.broadcast %c1_i32_109 : i32 to vector<20x40xi32>
    %310 = arith.addi %308, %309 : vector<20x40xi32>
    %311 = arith.cmpi eq, %306, %310 : vector<20x40xi32>
    %cst_110 = arith.constant 1.000000e+00 : f32
    %cst_111 = arith.constant 0.000000e+00 : f32
    %312 = vector.broadcast %cst_110 : f32 to vector<20x40xf32>
    %313 = vector.broadcast %cst_111 : f32 to vector<20x40xf32>
    %314 = arith.select %311, %312, %313 : vector<20x40xi1>, vector<20x40xf32>
    %315 = arith.truncf %314 : vector<20x40xf32> to vector<20x40xbf16>
    %cst_112 = arith.constant dense<0.000000e+00> : vector<20x128xf32>
    %316 = tpu.matmul %315, %275, %cst_112 {dimension_numbers = #tpu.dot_dimension_numbers<[1], [0], [0], [1], [0, 0, 1, 1], [], []>} : vector<20x40xbf16>, vector<40x128xbf16>, vector<20x128xf32> -> vector<20x128xf32>
    %317 = arith.truncf %316 : vector<20x128xf32> to vector<20x128xbf16>
    %318 = tpu.iota {dimensions = array<i32: 0>} : vector<20x40xi32>
    %319 = tpu.iota {dimensions = array<i32: 1>} : vector<20x40xi32>
    %c2_i32_113 = arith.constant 2 : i32
    %320 = vector.broadcast %c2_i32_113 : i32 to vector<20x40xi32>
    %321 = arith.muli %320, %318 : vector<20x40xi32>
    %c2_i32_114 = arith.constant 2 : i32
    %322 = vector.broadcast %c2_i32_114 : i32 to vector<20x40xi32>
    %323 = arith.addi %321, %322 : vector<20x40xi32>
    %324 = arith.cmpi eq, %319, %323 : vector<20x40xi32>
    %c9_i32 = arith.constant 9 : i32
    %325 = vector.broadcast %c9_i32 : i32 to vector<20x40xi32>
    %326 = arith.cmpi ne, %318, %325 : vector<20x40xi32>
    %327 = arith.andi %324, %326 : vector<20x40xi1>
    %cst_115 = arith.constant 1.000000e+00 : f32
    %cst_116 = arith.constant 0.000000e+00 : f32
    %328 = vector.broadcast %cst_115 : f32 to vector<20x40xf32>
    %329 = vector.broadcast %cst_116 : f32 to vector<20x40xf32>
    %330 = arith.select %327, %328, %329 : vector<20x40xi1>, vector<20x40xf32>
    %331 = arith.truncf %330 : vector<20x40xf32> to vector<20x40xbf16>
    %cst_117 = arith.constant dense<0.000000e+00> : vector<20x128xf32>
    %332 = tpu.matmul %331, %275, %cst_117 {dimension_numbers = #tpu.dot_dimension_numbers<[1], [0], [0], [1], [0, 0, 1, 1], [], []>} : vector<20x40xbf16>, vector<40x128xbf16>, vector<20x128xf32> -> vector<20x128xf32>
    %333 = arith.truncf %332 : vector<20x128xf32> to vector<20x128xbf16>
    %334 = tpu.concatenate %291, %304, %317, %333 in 1 : vector<20x128xbf16>, vector<20x128xbf16>, vector<20x128xbf16>, vector<20x128xbf16> -> vector<20x512xbf16>
    %c0_118 = arith.constant 0 : index
    %c0_119 = arith.constant 0 : index
    %335 = vector.load %arg5[%c0_118, %c0_119] : memref<512x512xbf16, #tpu.memory_space<vmem>>, vector<512x512xbf16>
    %cst_120 = arith.constant dense<0.000000e+00> : vector<20x512xf32>
    %336 = tpu.matmul %334, %335, %cst_120 {dimension_numbers = #tpu.dot_dimension_numbers<[1], [0], [0], [1], [0, 0, 1, 1], [], []>} : vector<20x512xbf16>, vector<512x512xbf16>, vector<20x512xf32> -> vector<20x512xf32>
    %c6 = arith.constant 6 : index
    %c0_121 = arith.constant 0 : index
    %337 = vector.load %arg7[%c6, %c0_121] : memref<8x512xf32, #tpu.memory_space<vmem>>, vector<1x512xf32>
    %c7 = arith.constant 7 : index
    %c0_122 = arith.constant 0 : index
    %338 = vector.load %arg7[%c7, %c0_122] : memref<8x512xf32, #tpu.memory_space<vmem>>, vector<1x512xf32>
    %cst_123 = arith.constant dense<0.000000e+00> : vector<512xf32>
    %339 = vector.multi_reduction <add>, %336, %cst_123 [0] : vector<20x512xf32> to vector<512xf32>
    %340 = vector.shape_cast %339 : vector<512xf32> to vector<1x512xf32>
    %cst_124 = arith.constant 5.000000e-02 : f32
    %341 = vector.broadcast %cst_124 : f32 to vector<1x512xf32>
    %342 = arith.mulf %340, %341 : vector<1x512xf32>
    %343 = vector.broadcast %342 : vector<1x512xf32> to vector<20x512xf32>
    %344 = arith.subf %336, %343 : vector<20x512xf32>
    %345 = arith.mulf %344, %344 : vector<20x512xf32>
    %cst_125 = arith.constant dense<0.000000e+00> : vector<512xf32>
    %346 = vector.multi_reduction <add>, %345, %cst_125 [0] : vector<20x512xf32> to vector<512xf32>
    %347 = vector.shape_cast %346 : vector<512xf32> to vector<1x512xf32>
    %cst_126 = arith.constant 5.000000e-02 : f32
    %348 = vector.broadcast %cst_126 : f32 to vector<1x512xf32>
    %349 = arith.mulf %347, %348 : vector<1x512xf32>
    %cst_127 = arith.constant 9.99999974E-6 : f32
    %350 = vector.broadcast %cst_127 : f32 to vector<1x512xf32>
    %351 = arith.addf %349, %350 : vector<1x512xf32>
    %352 = math.rsqrt %351 : vector<1x512xf32>
    %353 = vector.broadcast %352 : vector<1x512xf32> to vector<20x512xf32>
    %354 = arith.mulf %344, %353 : vector<20x512xf32>
    %355 = vector.broadcast %337 : vector<1x512xf32> to vector<20x512xf32>
    %356 = arith.mulf %354, %355 : vector<20x512xf32>
    %357 = vector.broadcast %338 : vector<1x512xf32> to vector<20x512xf32>
    %358 = arith.addf %356, %357 : vector<20x512xf32>
    %cst_128 = arith.constant 0.000000e+00 : f32
    %359 = vector.broadcast %cst_128 : f32 to vector<20x512xf32>
    %360 = arith.cmpf ogt, %358, %359 : vector<20x512xf32>
    %cst_129 = arith.constant 2.000000e-01 : f32
    %361 = vector.broadcast %cst_129 : f32 to vector<20x512xf32>
    %362 = arith.mulf %361, %358 : vector<20x512xf32>
    %363 = arith.select %360, %358, %362 : vector<20x512xi1>, vector<20x512xf32>
    %c0_130 = arith.constant 0 : index
    %c0_131 = arith.constant 0 : index
    %364 = vector.load %arg8[%c0_130, %c0_131] : memref<20x512xf32, #tpu.memory_space<vmem>>, vector<20x512xf32>
    tpu.vector_store %arg8[%c0_130, %c0_131], %363 {strides = array<i32>} : memref<20x512xf32, #tpu.memory_space<vmem>>, vector<20x512xf32>,
    %c0_132 = arith.constant 0 : index
    %c0_133 = arith.constant 0 : index
    %365 = vector.load %arg6[%c0_132, %c0_133] : memref<10x512xf32, #tpu.memory_space<vmem>>, vector<10x512xf32>
    %366 = tpu.concatenate %365, %365 in 0 : vector<10x512xf32>, vector<10x512xf32> -> vector<20x512xf32>
    %367 = arith.mulf %363, %366 : vector<20x512xf32>
    %368 = tpu.iota {dimensions = array<i32: 0>} : vector<2x20xi32>
    %369 = tpu.iota {dimensions = array<i32: 1>} : vector<2x20xi32>
    %c10_i32_134 = arith.constant 10 : i32
    %370 = vector.broadcast %c10_i32_134 : i32 to vector<2x20xi32>
    %371 = arith.muli %368, %370 : vector<2x20xi32>
    %372 = arith.cmpi sge, %369, %371 : vector<2x20xi32>
    %c1_i32_135 = arith.constant 1 : i32
    %373 = vector.broadcast %c1_i32_135 : i32 to vector<2x20xi32>
    %374 = arith.addi %368, %373 : vector<2x20xi32>
    %c10_i32_136 = arith.constant 10 : i32
    %375 = vector.broadcast %c10_i32_136 : i32 to vector<2x20xi32>
    %376 = arith.muli %374, %375 : vector<2x20xi32>
    %377 = arith.cmpi slt, %369, %376 : vector<2x20xi32>
    %378 = arith.andi %372, %377 : vector<2x20xi1>
    %cst_137 = arith.constant 1.000000e+00 : f32
    %cst_138 = arith.constant 0.000000e+00 : f32
    %379 = vector.broadcast %cst_137 : f32 to vector<2x20xf32>
    %380 = vector.broadcast %cst_138 : f32 to vector<2x20xf32>
    %381 = arith.select %378, %379, %380 : vector<2x20xi1>, vector<2x20xf32>
    %cst_139 = arith.constant dense<0.000000e+00> : vector<2x512xf32>
    %382 = tpu.matmul %381, %367, %cst_139 {dimension_numbers = #tpu.dot_dimension_numbers<[1], [0], [0], [1], [0, 0, 1, 1], [], []>} : vector<2x20xf32>, vector<20x512xf32>, vector<2x512xf32> -> vector<2x512xf32>
    %cst_140 = arith.constant dense<0.000000e+00> : vector<2xf32>
    %383 = vector.multi_reduction <add>, %382, %cst_140 [1] : vector<2x512xf32> to vector<2xf32>
    %384 = vector.shape_cast %383 : vector<2xf32> to vector<2x1xf32>
    %cst_141 = arith.constant 0.000000e+00 : f32
    %385 = vector.broadcast %cst_141 : f32 to vector<2x1xf32>
    %386 = arith.subf %385, %384 : vector<2x1xf32>
    %387 = math.exp %386 : vector<2x1xf32>
    %cst_142 = arith.constant 1.000000e+00 : f32
    %388 = vector.broadcast %cst_142 : f32 to vector<2x1xf32>
    %389 = arith.addf %388, %387 : vector<2x1xf32>
    %cst_143 = arith.constant 1.000000e+00 : f32
    %390 = vector.broadcast %cst_143 : f32 to vector<2x1xf32>
    %391 = arith.divf %390, %389 : vector<2x1xf32>
    %c0_144 = arith.constant 0 : index
    %c0_145 = arith.constant 0 : index
    %392 = vector.load %arg9[%c0_144, %c0_145] : memref<2x1xf32, #tpu.memory_space<vmem>>, vector<2x1xf32>
    tpu.vector_store %arg9[%c0_144, %c0_145], %391 {strides = array<i32>} : memref<2x1xf32, #tpu.memory_space<vmem>>, vector<2x1xf32>,
    return
  }
}

</mosaic_0001>

<llo_original>
// kernel: discriminator_forward.1
$region0: #{discriminator_forward.1}
  #allocation0 [shape = 'u32[]', space=smem, size = 0x4, offset = 0x4, fixed_abs, tag = 'smem constant byte address 0x4 - core index']
  #allocation1 [shape = 'u32[144,128]{1,0:T(1,128)}', space=vmem, size = 0x12000, scoped, tag = 'internal scratch']
  %s0 = inlined_call_operand.vmem [shape: bf16[4,320], index: 0, kind: input, shape index: {}]
  %s1 = inlined_call_operand.vmem [shape: bf16[16,4], index: 1, kind: input, shape index: {}]
  %s2 = inlined_call_operand.hbm [shape: bf16[64,32], index: 2, kind: input, shape index: {}]
  %s3 = inlined_call_operand.vmem [shape: bf16[128,64], index: 3, kind: input, shape index: {}]
  %s4 = inlined_call_operand.vmem [shape: bf16[256,128], index: 4, kind: input, shape index: {}]
  %s5 = inlined_call_operand.hbm [shape: bf16[512,512], index: 5, kind: input, shape index: {}]
  %s6 = inlined_call_operand.hbm [shape: f32[10,512], index: 6, kind: input, shape index: {}]
  %s7 = inlined_call_operand.vmem [shape: f32[8,512], index: 7, kind: input, shape index: {}]
  %s8 = inlined_call_operand.vmem [shape: f32[20,512], index: 8, kind: output, shape index: {0}]
  %s9 = inlined_call_operand.vmem [shape: f32[2,1], index: 9, kind: output, shape index: {1}]
  %10 = xla_tuple %s8, %s9
  %s11 = sld [smem:[#allocation0]]
  $region62: #{discriminator_forward.1} parent=0
    _
  %s13 = ssub.s32 1, %s11
  %s14 = scalar_select 0, %s13, %s11
  $region1: #{discriminator_forward.1} parent=0
    #allocation2 [shape = 'u8[16384]{0}', space=vmem, size = 0x4000, scoped, tag = 'input window, operand 2, single buffered']
    #allocation3 [shape = 's32[1]{0}', space=sflag, size = 0x4, scoped, tag = 'scoped memory for discriminator_forward.1']
    #allocation4 [shape = 'u8[524288]{0}', space=vmem, size = 0x80000, scoped, tag = 'input window, operand 5, single buffered']
    #allocation5 [shape = 's32[1]{0}', space=sflag, size = 0x4, scoped, tag = 'scoped memory for discriminator_forward.1']
    #allocation6 [shape = 'u8[32768]{0}', space=vmem, size = 0x8000, scoped, tag = 'input window, operand 6, single buffered']
    %15 = vsyncpa [#allocation3], 0
    %16 = vsyncpa [#allocation5], 0
    // Predicated region
    $region2: #{discriminator_forward.1} parent=1 // pred_check
      _
    $region3: #{discriminator_forward.1} parent=1 // pred_check_branch
      %18 = sbr.rel (0) target = $region5
    $region4: #{discriminator_forward.1} parent=1 // pred_region
      _
    $region5: #{discriminator_forward.1} parent=1 // pred_fallthru
      _
    // Predicated region
    $region6: #{discriminator_forward.1} parent=1 // pred_check
      _
    $region7: #{discriminator_forward.1} parent=1 // pred_check_branch
      %20 = sbr.rel (0) target = $region9
    $region8: #{discriminator_forward.1} parent=1 // pred_region
      _
    $region9: #{discriminator_forward.1} parent=1 // pred_fallthru
      _
    // Predicated region
    $region10: #{discriminator_forward.1} parent=1 // pred_check
      _
    $region11: #{discriminator_forward.1} parent=1 // pred_check_branch
      %22 = sbr.rel (0) target = $region13
    $region12: #{discriminator_forward.1} parent=1 // pred_region
      %s24 = ssub.s32 512, 512
      %25 = vsyncadd [#allocation3], %s24
      %s26 = sshll.u32 [#allocation2], 4
      %s27 = int_to_ptr.vmem [resolvable:$true] %s26
      %32 = dma.hbm_to_vmem [thread:$0]  %s2, 512, %s27, [#allocation3], 64, 64, 4
    $region13: #{discriminator_forward.1} parent=1 // pred_fallthru
      _
    // Predicated region
    $region14: #{discriminator_forward.1} parent=1 // pred_check
      _
    $region15: #{discriminator_forward.1} parent=1 // pred_check_branch
      %34 = sbr.rel (0) target = $region17
    $region16: #{discriminator_forward.1} parent=1 // pred_region
      _
    $region17: #{discriminator_forward.1} parent=1 // pred_fallthru
      _
    // Predicated region
    $region18: #{discriminator_forward.1} parent=1 // pred_check
      _
    $region19: #{discriminator_forward.1} parent=1 // pred_check_branch
      %36 = sbr.rel (0) target = $region21
    $region20: #{discriminator_forward.1} parent=1 // pred_region
      _
    $region21: #{discriminator_forward.1} parent=1 // pred_fallthru
      _
    // Predicated region
    $region22: #{discriminator_forward.1} parent=1 // pred_check
      _
    $region23: #{discriminator_forward.1} parent=1 // pred_check_branch
      %38 = sbr.rel (0) target = $region25
    $region24: #{discriminator_forward.1} parent=1 // pred_region
      %s40 = ssub.s32 16384, 16384
      %41 = vsyncadd [#allocation5], %s40
      %s42 = sshll.u32 [#allocation4], 4
      %s43 = int_to_ptr.vmem [resolvable:$true] %s42
      %48 = dma.hbm_to_vmem [thread:$0]  %s5, 16384, %s43, [#allocation5], 256, 256, 16
    $region25: #{discriminator_forward.1} parent=1 // pred_fallthru
      _
    // Predicated region
    $region26: #{discriminator_forward.1} parent=1 // pred_check
      _
    $region27: #{discriminator_forward.1} parent=1 // pred_check_branch
      %50 = sbr.rel (0) target = $region29
    $region28: #{discriminator_forward.1} parent=1 // pred_region
      %s52 = ssub.s32 1024, 1024
      %53 = vsyncadd [#allocation5], %s52
      %s54 = sshll.u32 [#allocation6], 4
      %s55 = int_to_ptr.vmem [resolvable:$true] %s54
      %60 = dma.hbm_to_vmem [thread:$0]  %s6, 1024, %s55, [#allocation5], 512, 512, 32
    $region29: #{discriminator_forward.1} parent=1 // pred_fallthru
      _
    // Predicated region
    $region30: #{discriminator_forward.1} parent=1 // pred_check
      _
    $region31: #{discriminator_forward.1} parent=1 // pred_check_branch
      %62 = sbr.rel (0) target = $region33
    $region32: #{discriminator_forward.1} parent=1 // pred_region
      _
    $region33: #{discriminator_forward.1} parent=1 // pred_fallthru
      _
    // Predicated region
    $region34: #{discriminator_forward.1} parent=1 // pred_check
      _
    $region35: #{discriminator_forward.1} parent=1 // pred_check_branch
      %64 = sbr.rel (0) target = $region37
    $region36: #{discriminator_forward.1} parent=1 // pred_region
      %65 = dma.done [#allocation3], 512
    $region37: #{discriminator_forward.1} parent=1 // pred_fallthru
      _
    // Predicated region
    $region38: #{discriminator_forward.1} parent=1 // pred_check
      _
    $region39: #{discriminator_forward.1} parent=1 // pred_check_branch
      %67 = sbr.rel (0) target = $region41
    $region40: #{discriminator_forward.1} parent=1 // pred_region
      %68 = dma.done [#allocation5], 16384
    $region41: #{discriminator_forward.1} parent=1 // pred_fallthru
      _
    // Predicated region
    $region42: #{discriminator_forward.1} parent=1 // pred_check
      _
    $region43: #{discriminator_forward.1} parent=1 // pred_check_branch
      %70 = sbr.rel (0) target = $region45
    $region44: #{discriminator_forward.1} parent=1 // pred_region
      %71 = dma.done [#allocation5], 1024
    $region45: #{discriminator_forward.1} parent=1 // pred_fallthru
      _
    %v73 = vld [vmem:[%s1] sm:$0xf]
    %v74 = vld [vmem:[%s1 + $0x4] sm:$0xf]
    %v75 = vld [vmem:[%s0] sm:$0x3f]
    %v78 = vunpack.c.l.b16 %v73
    %v79 = vunpack.c.l.b16 %v74
    %v80 = vpack.c.b16 %v79, %v78
    %v82 = vcombine.high %v75, %v75
    %v84 = vunpack.c.l.s4 1983009808
    %v85 = vunpack.c.0.s8 %v84
    %v86 = vlaneseq
    %v87 = vshrl.u32 %v86, 7
    %v88 = vsub.s32 %v85, %v87
    %v89 = vrot.slane %v75, %v88
    %v91 = vunpack.c.l.s4 1983009808
    %v92 = vunpack.c.0.s8 %v91
    %v93 = vlaneseq
    %v94 = vshrl.u32 %v93, 7
    %v95 = vsub.s32 %v92, %v94
    %v96 = vrot.slane %v82, %v95
    %v97 = vcombine.high %v89, %v89
    %vm98 = vcmask 31744
    %v100 = vsel %vm98, %v80, 0
    %vm102 = vcmask 1041408
    %v104 = vsel %vm102, %v89, 0
    %v107 = vsel %vm102, %v97, 0
    %v110 = vsel %vm102, %v96, 0
    %112 = vmatprep.subr.bf16.mxu0 0
    %113 = vmatpush1.bf16.msra.mxu0 0
    %114 = vmatprep.subr.bf16.mxu0 0
    %115 = vmatpush1.bf16.msra.mxu0 0
    %116 = vmatprep.subr.bf16.mxu0 0
    %117 = vmatpush1.bf16.msra.mxu0 0
    %118 = vmatprep.subr.bf16.mxu0 0
    %119 = vmatpush1.bf16.msra.mxu0 0
    %120 = vmatprep.subr.bf16.mxu0 0
    %121 = vmatpush1.bf16.msra.mxu0 0
    %122 = vmatprep.subr.bf16.mxu0 0
    %123 = vmatpush1.bf16.msra.mxu0 0
    %124 = vmatprep.subr.bf16.mxu0 0
    %125 = vmatpush1.bf16.msra.mxu0 0
    %126 = vmatprep.subr.bf16.mxu0 %v107
    %127 = vmatpush1.bf16.msra.mxu0 %v104
    %128 = vmatprep.subr.bf16.mxu0 0
    %129 = vmatpush2.bf16.msra.mxu0 0
    %130 = vmatprep.subr.bf16.mxu0 0
    %131 = vmatpush2.bf16.msra.mxu0 0
    %132 = vmatprep.subr.bf16.mxu0 0
    %133 = vmatpush2.bf16.msra.mxu0 0
    %134 = vmatprep.subr.bf16.mxu0 0
    %135 = vmatpush2.bf16.msra.mxu0 0
    %136 = vmatprep.subr.bf16.mxu0 0
    %137 = vmatpush2.bf16.msra.mxu0 0
    %138 = vmatprep.subr.bf16.mxu0 0
    %139 = vmatpush2.bf16.msra.mxu0 0
    %140 = vmatprep.subr.bf16.mxu0 0
    %141 = vmatpush2.bf16.msra.mxu0 0
    %142 = vmatprep.subr.bf16.mxu0 0
    %143 = vmatpush2.bf16.msra.mxu0 0
    %144 = vmatprep.mubr.bf16.mxu0 0
    %145 = vmatmul.mubr.bf16.gmra.mxu0 %v100
    %v146 = vpop.f32.mrf.mxu0
    %v147 = vadd.f32 0.0, %v146
    %v148 = vpop.f32.mrf.mxu0
    %v149 = vadd.f32 0.0, %v148
    %v150 = vpop.f32.mrf.mxu0
    %v151 = vadd.f32 0.0, %v150
    %v152 = vpop.f32.mrf.mxu0
    %v153 = vadd.f32 0.0, %v152
    %154 = vdwg.mxu0
    %155 = vmatprep.subr.bf16.mxu0 0
    %156 = vmatpush1.bf16.msra.mxu0 0
    %157 = vmatprep.subr.bf16.mxu0 0
    %158 = vmatpush1.bf16.msra.mxu0 0
    %159 = vmatprep.subr.bf16.mxu0 0
    %160 = vmatpush1.bf16.msra.mxu0 0
    %161 = vmatprep.subr.bf16.mxu0 0
    %162 = vmatpush1.bf16.msra.mxu0 0
    %163 = vmatprep.subr.bf16.mxu0 0
    %164 = vmatpush1.bf16.msra.mxu0 0
    %165 = vmatprep.subr.bf16.mxu0 0
    %166 = vmatpush1.bf16.msra.mxu0 0
    %167 = vmatprep.subr.bf16.mxu0 0
    %168 = vmatpush1.bf16.msra.mxu0 0
    %169 = vmatprep.subr.bf16.mxu0 0
    %170 = vmatpush1.bf16.msra.mxu0 %v110
    %171 = vmatprep.subr.bf16.mxu0 0
    %172 = vmatpush2.bf16.msra.mxu0 0
    %173 = vmatprep.subr.bf16.mxu0 0
    %174 = vmatpush2.bf16.msra.mxu0 0
    %175 = vmatprep.subr.bf16.mxu0 0
    %176 = vmatpush2.bf16.msra.mxu0 0
    %177 = vmatprep.subr.bf16.mxu0 0
    %178 = vmatpush2.bf16.msra.mxu0 0
    %179 = vmatprep.subr.bf16.mxu0 0
    %180 = vmatpush2.bf16.msra.mxu0 0
    %181 = vmatprep.subr.bf16.mxu0 0
    %182 = vmatpush2.bf16.msra.mxu0 0
    %183 = vmatprep.subr.bf16.mxu0 0
    %184 = vmatpush2.bf16.msra.mxu0 0
    %185 = vmatprep.subr.bf16.mxu0 0
    %186 = vmatpush2.bf16.msra.mxu0 0
    %187 = vmatprep.mubr.bf16.mxu0 0
    %188 = vmatmul.mubr.bf16.gmra.mxu0 %v100
    %v189 = vpop.f32.mrf.mxu0
    %v190 = vadd.f32 0.0, %v189
    %v191 = vpop.f32.mrf.mxu0
    %v192 = vpop.f32.mrf.mxu0
    %v193 = vadd.f32 0.0, %v192
    %v194 = vpop.f32.mrf.mxu0
    %195 = vdwg.mxu0
    %vm196 = vcmp.gt.f32.partialorder %v147, 0.0
    %vm197 = vcmp.gt.f32.partialorder %v149, 0.0
    %vm198 = vcmp.gt.f32.partialorder %v190, 0.0
    %vm199 = vcmp.gt.f32.partialorder %v151, 0.0
    %vm200 = vcmp.gt.f32.partialorder %v153, 0.0
    %vm201 = vcmp.gt.f32.partialorder %v193, 0.0
    %v202 = vmul.f32 %v147, 0.2
    %v203 = vmul.f32 %v149, 0.2
    %v204 = vmul.f32 %v190, 0.2
    %v205 = vmul.f32 %v151, 0.2
    %v206 = vmul.f32 %v153, 0.2
    %v207 = vmul.f32 %v193, 0.2
    %v208 = vsel %vm196, %v147, %v202
    %v209 = vsel %vm197, %v149, %v203
    %v210 = vsel %vm198, %v190, %v204
    %v211 = vsel %vm199, %v151, %v205
    %v212 = vsel %vm200, %v153, %v206
    %v213 = vsel %vm201, %v193, %v207
    %v214 = vpack.c.bf16 %v211, %v208
    %v215 = vpack.c.bf16 %v212, %v209
    %v216 = vpack.c.bf16 %v213, %v210
    %v217 = vlaneseq
    %v218 = vshrl.u32 %v217, 7
    %v219 = vadd.s32 %v218, 8
    %v220 = vadd.s32 %v218, 16
    %v221 = vadd.s32 %v218, 24
    %v222 = vadd.s32 %v218, 32
    %v223 = vadd.s32 %v218, 40
    %v224 = vadd.s32 %v218, 48
    %v225 = vadd.s32 %v218, 56
    %v226 = vadd.s32 %v218, 64
    %v227 = vadd.s32 %v218, 72
    %v228 = vadd.s32 %v218, 80
    %v229 = vadd.s32 %v218, 88
    %v230 = vadd.s32 %v218, 96
    %v231 = vadd.s32 %v218, 104
    %v232 = vadd.s32 %v218, 112
    %v233 = vadd.s32 %v218, 120
    %v234 = vadd.s32 %v218, 128
    %v235 = vadd.s32 %v218, 136
    %v236 = vadd.s32 %v218, 144
    %v237 = vadd.s32 %v218, 152
    %v238 = vlaneseq
    %v239 = vand.u32 %v238, 127
    %v240 = vadd.s32 %v239, 128
    %v241 = vadd.s32 %v239, 256
    %v242 = vmul.u32 %v218, 2
    %v243 = vmul.u32 %v219, 2
    %v244 = vmul.u32 %v220, 2
    %v245 = vmul.u32 %v221, 2
    %v246 = vmul.u32 %v222, 2
    %v247 = vmul.u32 %v223, 2
    %v248 = vmul.u32 %v224, 2
    %v249 = vmul.u32 %v225, 2
    %v250 = vmul.u32 %v226, 2
    %v251 = vmul.u32 %v227, 2
    %v252 = vmul.u32 %v228, 2
    %v253 = vmul.u32 %v229, 2
    %v254 = vmul.u32 %v230, 2
    %v255 = vmul.u32 %v231, 2
    %v256 = vmul.u32 %v232, 2
    %v257 = vmul.u32 %v233, 2
    %v258 = vmul.u32 %v234, 2
    %v259 = vmul.u32 %v235, 2
    %v260 = vmul.u32 %v236, 2
    %v261 = vmul.u32 %v237, 2
    %v262 = vadd.s32 %v242, 4294967295
    %v263 = vadd.s32 %v243, 4294967295
    %v264 = vadd.s32 %v244, 4294967295
    %v265 = vadd.s32 %v245, 4294967295
    %v266 = vadd.s32 %v246, 4294967295
    %v267 = vadd.s32 %v247, 4294967295
    %v268 = vadd.s32 %v248, 4294967295
    %v269 = vadd.s32 %v249, 4294967295
    %v270 = vadd.s32 %v250, 4294967295
    %v271 = vadd.s32 %v251, 4294967295
    %v272 = vadd.s32 %v252, 4294967295
    %v273 = vadd.s32 %v253, 4294967295
    %v274 = vadd.s32 %v254, 4294967295
    %v275 = vadd.s32 %v255, 4294967295
    %v276 = vadd.s32 %v256, 4294967295
    %v277 = vadd.s32 %v257, 4294967295
    %v278 = vadd.s32 %v258, 4294967295
    %v279 = vadd.s32 %v259, 4294967295
    %v280 = vadd.s32 %v260, 4294967295
    %v281 = vadd.s32 %v261, 4294967295
    %vm282 = vcmp.eq.s32.totalorder %v239, %v262
    %vm283 = vcmp.eq.s32.totalorder %v240, %v262
    %vm284 = vcmp.eq.s32.totalorder %v241, %v262
    %vm285 = vcmp.eq.s32.totalorder %v239, %v263
    %vm286 = vcmp.eq.s32.totalorder %v240, %v263
    %vm287 = vcmp.eq.s32.totalorder %v241, %v263
    %vm288 = vcmp.eq.s32.totalorder %v239, %v264
    %vm289 = vcmp.eq.s32.totalorder %v240, %v264
    %vm290 = vcmp.eq.s32.totalorder %v241, %v264
    %vm291 = vcmp.eq.s32.totalorder %v239, %v265
    %vm292 = vcmp.eq.s32.totalorder %v240, %v265
    %vm293 = vcmp.eq.s32.totalorder %v241, %v265
    %vm294 = vcmp.eq.s32.totalorder %v239, %v266
    %vm295 = vcmp.eq.s32.totalorder %v240, %v266
    %vm296 = vcmp.eq.s32.totalorder %v241, %v266
    %vm297 = vcmp.eq.s32.totalorder %v239, %v267
    %vm298 = vcmp.eq.s32.totalorder %v240, %v267
    %vm299 = vcmp.eq.s32.totalorder %v241, %v267
    %vm300 = vcmp.eq.s32.totalorder %v239, %v268
    %vm301 = vcmp.eq.s32.totalorder %v240, %v268
    %vm302 = vcmp.eq.s32.totalorder %v241, %v268
    %vm303 = vcmp.eq.s32.totalorder %v239, %v269
    %vm304 = vcmp.eq.s32.totalorder %v240, %v269
    %vm305 = vcmp.eq.s32.totalorder %v241, %v269
    %vm306 = vcmp.eq.s32.totalorder %v239, %v270
    %vm307 = vcmp.eq.s32.totalorder %v240, %v270
    %vm308 = vcmp.eq.s32.totalorder %v241, %v270
    %vm309 = vcmp.eq.s32.totalorder %v239, %v271
    %vm310 = vcmp.eq.s32.totalorder %v240, %v271
    %vm311 = vcmp.eq.s32.totalorder %v241, %v271
    %vm312 = vcmp.eq.s32.totalorder %v239, %v272
    %vm313 = vcmp.eq.s32.totalorder %v240, %v272
    %vm314 = vcmp.eq.s32.totalorder %v241, %v272
    %vm315 = vcmp.eq.s32.totalorder %v239, %v273
    %vm316 = vcmp.eq.s32.totalorder %v240, %v273
    %vm317 = vcmp.eq.s32.totalorder %v241, %v273
    %vm318 = vcmp.eq.s32.totalorder %v239, %v274
    %vm319 = vcmp.eq.s32.totalorder %v240, %v274
    %vm320 = vcmp.eq.s32.totalorder %v241, %v274
    %vm321 = vcmp.eq.s32.totalorder %v239, %v275
    %vm322 = vcmp.eq.s32.totalorder %v240, %v275
    %vm323 = vcmp.eq.s32.totalorder %v241, %v275
    %vm324 = vcmp.eq.s32.totalorder %v239, %v276
    %vm325 = vcmp.eq.s32.totalorder %v240, %v276
    %vm326 = vcmp.eq.s32.totalorder %v241, %v276
    %vm327 = vcmp.eq.s32.totalorder %v239, %v277
    %vm328 = vcmp.eq.s32.totalorder %v240, %v277
    %vm329 = vcmp.eq.s32.totalorder %v241, %v277
    %vm330 = vcmp.eq.s32.totalorder %v239, %v278
    %vm331 = vcmp.eq.s32.totalorder %v240, %v278
    %vm332 = vcmp.eq.s32.totalorder %v241, %v278
    %vm333 = vcmp.eq.s32.totalorder %v239, %v279
    %vm334 = vcmp.eq.s32.totalorder %v240, %v279
    %vm335 = vcmp.eq.s32.totalorder %v241, %v279
    %vm336 = vcmp.eq.s32.totalorder %v239, %v280
    %vm337 = vcmp.eq.s32.totalorder %v240, %v280
    %vm338 = vcmp.eq.s32.totalorder %v241, %v280
    %vm339 = vcmp.eq.s32.totalorder %v239, %v281
    %vm340 = vcmp.eq.s32.totalorder %v240, %v281
    %vm341 = vcmp.eq.s32.totalorder %v241, %v281
    %vm342 = vcmp.ne.s32.totalorder %v218, 80
    %vm343 = vcmp.ne.s32.totalorder %v219, 80
    %vm344 = vcmp.ne.s32.totalorder %v220, 80
    %vm345 = vcmp.ne.s32.totalorder %v221, 80
    %vm346 = vcmp.ne.s32.totalorder %v222, 80
    %vm347 = vcmp.ne.s32.totalorder %v223, 80
    %vm348 = vcmp.ne.s32.totalorder %v224, 80
    %vm349 = vcmp.ne.s32.totalorder %v225, 80
    %vm350 = vcmp.ne.s32.totalorder %v226, 80
    %vm351 = vcmp.ne.s32.totalorder %v227, 80
    %vm352 = vcmp.ne.s32.totalorder %v228, 80
    %vm353 = vcmp.ne.s32.totalorder %v229, 80
    %vm354 = vcmp.ne.s32.totalorder %v230, 80
    %vm355 = vcmp.ne.s32.totalorder %v231, 80
    %vm356 = vcmp.ne.s32.totalorder %v232, 80
    %vm357 = vcmp.ne.s32.totalorder %v233, 80
    %vm358 = vcmp.ne.s32.totalorder %v234, 80
    %vm359 = vcmp.ne.s32.totalorder %v235, 80
    %vm360 = vcmp.ne.s32.totalorder %v236, 80
    %vm361 = vcmp.ne.s32.totalorder %v237, 80
    %vm362 = vmand %vm282, %vm342
    %vm363 = vmand %vm283, %vm342
    %vm364 = vmand %vm284, %vm342
    %vm365 = vmand %vm285, %vm343
    %vm366 = vmand %vm286, %vm343
    %vm367 = vmand %vm287, %vm343
    %vm368 = vmand %vm288, %vm344
    %vm369 = vmand %vm289, %vm344
    %vm370 = vmand %vm290, %vm344
    %vm371 = vmand %vm291, %vm345
    %vm372 = vmand %vm292, %vm345
    %vm373 = vmand %vm293, %vm345
    %vm374 = vmand %vm294, %vm346
    %vm375 = vmand %vm295, %vm346
    %vm376 = vmand %vm296, %vm346
    %vm377 = vmand %vm297, %vm347
    %vm378 = vmand %vm298, %vm347
    %vm379 = vmand %vm299, %vm347
    %vm380 = vmand %vm300, %vm348
    %vm381 = vmand %vm301, %vm348
    %vm382 = vmand %vm302, %vm348
    %vm383 = vmand %vm303, %vm349
    %vm384 = vmand %vm304, %vm349
    %vm385 = vmand %vm305, %vm349
    %vm386 = vmand %vm306, %vm350
    %vm387 = vmand %vm307, %vm350
    %vm388 = vmand %vm308, %vm350
    %vm389 = vmand %vm309, %vm351
    %vm390 = vmand %vm310, %vm351
    %vm391 = vmand %vm311, %vm351
    %vm392 = vmand %vm312, %vm352
    %vm393 = vmand %vm313, %vm352
    %vm394 = vmand %vm314, %vm352
    %vm395 = vmand %vm315, %vm353
    %vm396 = vmand %vm316, %vm353
    %vm397 = vmand %vm317, %vm353
    %vm398 = vmand %vm318, %vm354
    %vm399 = vmand %vm319, %vm354
    %vm400 = vmand %vm320, %vm354
    %vm401 = vmand %vm321, %vm355
    %vm402 = vmand %vm322, %vm355
    %vm403 = vmand %vm323, %vm355
    %vm404 = vmand %vm324, %vm356
    %vm405 = vmand %vm325, %vm356
    %vm406 = vmand %vm326, %vm356
    %vm407 = vmand %vm327, %vm357
    %vm408 = vmand %vm328, %vm357
    %vm409 = vmand %vm329, %vm357
    %vm410 = vmand %vm330, %vm358
    %vm411 = vmand %vm331, %vm358
    %vm412 = vmand %vm332, %vm358
    %vm413 = vmand %vm333, %vm359
    %vm414 = vmand %vm334, %vm359
    %vm415 = vmand %vm335, %vm359
    %vm416 = vmand %vm336, %vm360
    %vm417 = vmand %vm337, %vm360
    %vm418 = vmand %vm338, %vm360
    %vm419 = vmand %vm339, %vm361
    %vm420 = vmand %vm340, %vm361
    %vm421 = vmand %vm341, %vm361
    %v422 = vsel %vm362, 1.0, 0.0
    %v423 = vsel %vm363, 1.0, 0.0
    %v424 = vsel %vm364, 1.0, 0.0
    %v425 = vsel %vm365, 1.0, 0.0
    %v426 = vsel %vm366, 1.0, 0.0
    %v427 = vsel %vm367, 1.0, 0.0
    %v428 = vsel %vm368, 1.0, 0.0
    %v429 = vsel %vm369, 1.0, 0.0
    %v430 = vsel %vm370, 1.0, 0.0
    %v431 = vsel %vm371, 1.0, 0.0
    %v432 = vsel %vm372, 1.0, 0.0
    %v433 = vsel %vm373, 1.0, 0.0
    %v434 = vsel %vm374, 1.0, 0.0
    %v435 = vsel %vm375, 1.0, 0.0
    %v436 = vsel %vm376, 1.0, 0.0
    %v437 = vsel %vm377, 1.0, 0.0
    %v438 = vsel %vm378, 1.0, 0.0
    %v439 = vsel %vm379, 1.0, 0.0
    %v440 = vsel %vm380, 1.0, 0.0
    %v441 = vsel %vm381, 1.0, 0.0
    %v442 = vsel %vm382, 1.0, 0.0
    %v443 = vsel %vm383, 1.0, 0.0
    %v444 = vsel %vm384, 1.0, 0.0
    %v445 = vsel %vm385, 1.0, 0.0
    %v446 = vsel %vm386, 1.0, 0.0
    %v447 = vsel %vm387, 1.0, 0.0
    %v448 = vsel %vm388, 1.0, 0.0
    %v449 = vsel %vm389, 1.0, 0.0
    %v450 = vsel %vm390, 1.0, 0.0
    %v451 = vsel %vm391, 1.0, 0.0
    %v452 = vsel %vm392, 1.0, 0.0
    %v453 = vsel %vm393, 1.0, 0.0
    %v454 = vsel %vm394, 1.0, 0.0
    %v455 = vsel %vm395, 1.0, 0.0
    %v456 = vsel %vm396, 1.0, 0.0
    %v457 = vsel %vm397, 1.0, 0.0
    %v458 = vsel %vm398, 1.0, 0.0
    %v459 = vsel %vm399, 1.0, 0.0
    %v460 = vsel %vm400, 1.0, 0.0
    %v461 = vsel %vm401, 1.0, 0.0
    %v462 = vsel %vm402, 1.0, 0.0
    %v463 = vsel %vm403, 1.0, 0.0
    %v464 = vsel %vm404, 1.0, 0.0
    %v465 = vsel %vm405, 1.0, 0.0
    %v466 = vsel %vm406, 1.0, 0.0
    %v467 = vsel %vm407, 1.0, 0.0
    %v468 = vsel %vm408, 1.0, 0.0
    %v469 = vsel %vm409, 1.0, 0.0
    %v470 = vsel %vm410, 1.0, 0.0
    %v471 = vsel %vm411, 1.0, 0.0
    %v472 = vsel %vm412, 1.0, 0.0
    %v473 = vsel %vm413, 1.0, 0.0
    %v474 = vsel %vm414, 1.0, 0.0
    %v475 = vsel %vm415, 1.0, 0.0
    %v476 = vsel %vm416, 1.0, 0.0
    %v477 = vsel %vm417, 1.0, 0.0
    %v478 = vsel %vm418, 1.0, 0.0
    %v479 = vsel %vm419, 1.0, 0.0
    %v480 = vsel %vm420, 1.0, 0.0
    %v481 = vsel %vm421, 1.0, 0.0
    %v482 = vpack.c.bf16 %v425, %v422
    %v483 = vpack.c.bf16 %v426, %v423
    %v484 = vpack.c.bf16 %v427, %v424
    %v485 = vpack.c.bf16 %v431, %v428
    %v486 = vpack.c.bf16 %v432, %v429
    %v487 = vpack.c.bf16 %v433, %v430
    %v488 = vpack.c.bf16 %v437, %v434
    %v489 = vpack.c.bf16 %v438, %v435
    %v490 = vpack.c.bf16 %v439, %v436
    %v491 = vpack.c.bf16 %v443, %v440
    %v492 = vpack.c.bf16 %v444, %v441
    %v493 = vpack.c.bf16 %v445, %v442
    %v494 = vpack.c.bf16 %v449, %v446
    %v495 = vpack.c.bf16 %v450, %v447
    %v496 = vpack.c.bf16 %v451, %v448
    %v497 = vpack.c.bf16 %v455, %v452
    %v498 = vpack.c.bf16 %v456, %v453
    %v499 = vpack.c.bf16 %v457, %v454
    %v500 = vpack.c.bf16 %v461, %v458
    %v501 = vpack.c.bf16 %v462, %v459
    %v502 = vpack.c.bf16 %v463, %v460
    %v503 = vpack.c.bf16 %v467, %v464
    %v504 = vpack.c.bf16 %v468, %v465
    %v505 = vpack.c.bf16 %v469, %v466
    %v506 = vpack.c.bf16 %v473, %v470
    %v507 = vpack.c.bf16 %v474, %v471
    %v508 = vpack.c.bf16 %v475, %v472
    %v509 = vpack.c.bf16 %v479, %v476
    %v510 = vpack.c.bf16 %v480, %v477
    %v511 = vpack.c.bf16 %v481, %v478
    %vm512 = vcmask 523264
    %v514 = vsel %vm512, %v484, 0
    %v517 = vsel %vm512, %v487, 0
    %v520 = vsel %vm512, %v490, 0
    %v523 = vsel %vm512, %v493, 0
    %v526 = vsel %vm512, %v496, 0
    %v529 = vsel %vm512, %v499, 0
    %v532 = vsel %vm512, %v502, 0
    %v535 = vsel %vm512, %v505, 0
    %v538 = vsel %vm512, %v508, 0
    %v541 = vsel %vm512, %v511, 0
    %v544 = vsel %vm512, %v216, 0
    %546 = vmatprep.subr.bf16.mxu0 0
    %547 = vmatpush1.bf16.xpose.msra.mxu0 0
    %548 = vmatprep.subr.bf16.mxu0 0
    %549 = vmatpush1.bf16.xpose.msra.mxu0 0
    %550 = vmatprep.subr.bf16.mxu0 0
    %551 = vmatpush1.bf16.xpose.msra.mxu0 0
    %552 = vmatprep.subr.bf16.mxu0 0
    %553 = vmatpush1.bf16.xpose.msra.mxu0 0
    %554 = vmatprep.subr.bf16.mxu0 0
    %555 = vmatpush1.bf16.xpose.msra.mxu0 0
    %556 = vmatprep.subr.bf16.mxu0 0
    %557 = vmatpush1.bf16.xpose.msra.mxu0 0
    %558 = vmatprep.subr.bf16.mxu0 0
    %559 = vmatpush1.bf16.xpose.msra.mxu0 0
    %560 = vmatprep.subr.bf16.mxu0 %v215
    %561 = vmatpush1.bf16.xpose.msra.mxu0 %v214
    %562 = vmatprep.subr.bf16.mxu0 0
    %563 = vmatpush2.bf16.xpose.msra.mxu0 0
    %564 = vmatprep.subr.bf16.mxu0 0
    %565 = vmatpush2.bf16.xpose.msra.mxu0 0
    %566 = vmatprep.subr.bf16.mxu0 0
    %567 = vmatpush2.bf16.xpose.msra.mxu0 0
    %568 = vmatprep.subr.bf16.mxu0 0
    %569 = vmatpush2.bf16.xpose.msra.mxu0 0
    %570 = vmatprep.subr.bf16.mxu0 0
    %571 = vmatpush2.bf16.xpose.msra.mxu0 0
    %572 = vmatprep.subr.bf16.mxu0 0
    %573 = vmatpush2.bf16.xpose.msra.mxu0 0
    %574 = vmatprep.subr.bf16.mxu0 0
    %575 = vmatpush2.bf16.xpose.msra.mxu0 0
    %576 = vmatprep.subr.bf16.mxu0 0
    %577 = vmatpush2.bf16.xpose.msra.mxu0 0
    %578 = vmatprep.mubr.bf16.mxu0 %v483
    %579 = vmatmul.mubr.bf16.gmra.mxu0 %v482
    %v580 = vpop.f32.mrf.mxu0
    %v581 = vadd.f32 0.0, %v580
    %v582 = vpop.f32.mrf.mxu0
    %v583 = vpop.f32.mrf.mxu0
    %v584 = vadd.f32 0.0, %v583
    %v585 = vpop.f32.mrf.mxu0
    %586 = vmatprep.mubr.bf16.mxu0 %v486
    %587 = vmatmul.mubr.bf16.gmra.mxu0 %v485
    %v588 = vpop.f32.mrf.mxu0
    %v589 = vadd.f32 0.0, %v588
    %v590 = vpop.f32.mrf.mxu0
    %v591 = vpop.f32.mrf.mxu0
    %v592 = vadd.f32 0.0, %v591
    %v593 = vpop.f32.mrf.mxu0
    %594 = vmatprep.mubr.bf16.mxu0 %v489
    %595 = vmatmul.mubr.bf16.gmra.mxu0 %v488
    %v596 = vpop.f32.mrf.mxu0
    %v597 = vadd.f32 0.0, %v596
    %v598 = vpop.f32.mrf.mxu0
    %v599 = vpop.f32.mrf.mxu0
    %v600 = vadd.f32 0.0, %v599
    %v601 = vpop.f32.mrf.mxu0
    %602 = vmatprep.mubr.bf16.mxu0 %v492
    %603 = vmatmul.mubr.bf16.gmra.mxu0 %v491
    %v604 = vpop.f32.mrf.mxu0
    %v605 = vadd.f32 0.0, %v604
    %v606 = vpop.f32.mrf.mxu0
    %v607 = vpop.f32.mrf.mxu0
    %v608 = vadd.f32 0.0, %v607
    %v609 = vpop.f32.mrf.mxu0
    %610 = vmatprep.mubr.bf16.mxu0 %v495
    %611 = vmatmul.mubr.bf16.gmra.mxu0 %v494
    %v612 = vpop.f32.mrf.mxu0
    %v613 = vadd.f32 0.0, %v612
    %v614 = vpop.f32.mrf.mxu0
    %v615 = vpop.f32.mrf.mxu0
    %v616 = vadd.f32 0.0, %v615
    %v617 = vpop.f32.mrf.mxu0
    %618 = vmatprep.mubr.bf16.mxu0 %v498
    %619 = vmatmul.mubr.bf16.gmra.mxu0 %v497
    %v620 = vpop.f32.mrf.mxu0
    %v621 = vadd.f32 0.0, %v620
    %v622 = vpop.f32.mrf.mxu0
    %v623 = vpop.f32.mrf.mxu0
    %v624 = vadd.f32 0.0, %v623
    %v625 = vpop.f32.mrf.mxu0
    %626 = vmatprep.mubr.bf16.mxu0 %v501
    %627 = vmatmul.mubr.bf16.gmra.mxu0 %v500
    %v628 = vpop.f32.mrf.mxu0
    %v629 = vadd.f32 0.0, %v628
    %v630 = vpop.f32.mrf.mxu0
    %v631 = vpop.f32.mrf.mxu0
    %v632 = vadd.f32 0.0, %v631
    %v633 = vpop.f32.mrf.mxu0
    %634 = vmatprep.mubr.bf16.mxu0 %v504
    %635 = vmatmul.mubr.bf16.gmra.mxu0 %v503
    %v636 = vpop.f32.mrf.mxu0
    %v637 = vadd.f32 0.0, %v636
    %v638 = vpop.f32.mrf.mxu0
    %v639 = vpop.f32.mrf.mxu0
    %v640 = vadd.f32 0.0, %v639
    %v641 = vpop.f32.mrf.mxu0
    %642 = vmatprep.mubr.bf16.mxu0 %v507
    %643 = vmatmul.mubr.bf16.gmra.mxu0 %v506
    %v644 = vpop.f32.mrf.mxu0
    %v645 = vadd.f32 0.0, %v644
    %v646 = vpop.f32.mrf.mxu0
    %v647 = vpop.f32.mrf.mxu0
    %v648 = vadd.f32 0.0, %v647
    %v649 = vpop.f32.mrf.mxu0
    %650 = vmatprep.mubr.bf16.mxu0 %v510
    %651 = vmatmul.mubr.bf16.gmra.mxu0 %v509
    %v652 = vpop.f32.mrf.mxu0
    %v653 = vadd.f32 0.0, %v652
    %v654 = vpop.f32.mrf.mxu0
    %v655 = vpop.f32.mrf.mxu0
    %v656 = vadd.f32 0.0, %v655
    %v657 = vpop.f32.mrf.mxu0
    %658 = vdwg.mxu0
    %659 = vmatprep.subr.bf16.mxu0 0
    %660 = vmatpush1.bf16.xpose.msra.mxu0 0
    %661 = vmatprep.subr.bf16.mxu0 0
    %662 = vmatpush1.bf16.xpose.msra.mxu0 0
    %663 = vmatprep.subr.bf16.mxu0 0
    %664 = vmatpush1.bf16.xpose.msra.mxu0 0
    %665 = vmatprep.subr.bf16.mxu0 0
    %666 = vmatpush1.bf16.xpose.msra.mxu0 0
    %667 = vmatprep.subr.bf16.mxu0 0
    %668 = vmatpush1.bf16.xpose.msra.mxu0 0
    %669 = vmatprep.subr.bf16.mxu0 0
    %670 = vmatpush1.bf16.xpose.msra.mxu0 0
    %671 = vmatprep.subr.bf16.mxu0 0
    %672 = vmatpush1.bf16.xpose.msra.mxu0 0
    %673 = vmatprep.subr.bf16.mxu0 0
    %674 = vmatpush1.bf16.xpose.msra.mxu0 %v544
    %675 = vmatprep.subr.bf16.mxu0 0
    %676 = vmatpush2.bf16.xpose.msra.mxu0 0
    %677 = vmatprep.subr.bf16.mxu0 0
    %678 = vmatpush2.bf16.xpose.msra.mxu0 0
    %679 = vmatprep.subr.bf16.mxu0 0
    %680 = vmatpush2.bf16.xpose.msra.mxu0 0
    %681 = vmatprep.subr.bf16.mxu0 0
    %682 = vmatpush2.bf16.xpose.msra.mxu0 0
    %683 = vmatprep.subr.bf16.mxu0 0
    %684 = vmatpush2.bf16.xpose.msra.mxu0 0
    %685 = vmatprep.subr.bf16.mxu0 0
    %686 = vmatpush2.bf16.xpose.msra.mxu0 0
    %687 = vmatprep.subr.bf16.mxu0 0
    %688 = vmatpush2.bf16.xpose.msra.mxu0 0
    %689 = vmatprep.subr.bf16.mxu0 0
    %690 = vmatpush2.bf16.xpose.msra.mxu0 0
    %691 = vmatprep.mubr.bf16.mxu0 0
    %692 = vmatmul.mubr.bf16.gmra.mxu0 %v514
    %v693 = vpop.f32.mrf.mxu0
    %v694 = vadd.f32 %v581, %v693
    %v695 = vpop.f32.mrf.mxu0
    %v696 = vpop.f32.mrf.mxu0
    %v697 = vadd.f32 %v584, %v696
    %v698 = vpop.f32.mrf.mxu0
    %699 = vmatprep.mubr.bf16.mxu0 0
    %700 = vmatmul.mubr.bf16.gmra.mxu0 %v517
    %v701 = vpop.f32.mrf.mxu0
    %v702 = vadd.f32 %v589, %v701
    %v703 = vpop.f32.mrf.mxu0
    %v704 = vpop.f32.mrf.mxu0
    %v705 = vadd.f32 %v592, %v704
    %v706 = vpop.f32.mrf.mxu0
    %707 = vmatprep.mubr.bf16.mxu0 0
    %708 = vmatmul.mubr.bf16.gmra.mxu0 %v520
    %v709 = vpop.f32.mrf.mxu0
    %v710 = vadd.f32 %v597, %v709
    %v711 = vpop.f32.mrf.mxu0
    %v712 = vpop.f32.mrf.mxu0
    %v713 = vadd.f32 %v600, %v712
    %v714 = vpop.f32.mrf.mxu0
    %715 = vmatprep.mubr.bf16.mxu0 0
    %716 = vmatmul.mubr.bf16.gmra.mxu0 %v523
    %v717 = vpop.f32.mrf.mxu0
    %v718 = vadd.f32 %v605, %v717
    %v719 = vpop.f32.mrf.mxu0
    %v720 = vpop.f32.mrf.mxu0
    %v721 = vadd.f32 %v608, %v720
    %v722 = vpop.f32.mrf.mxu0
    %723 = vmatprep.mubr.bf16.mxu0 0
    %724 = vmatmul.mubr.bf16.gmra.mxu0 %v526
    %v725 = vpop.f32.mrf.mxu0
    %v726 = vadd.f32 %v613, %v725
    %v727 = vpop.f32.mrf.mxu0
    %v728 = vpop.f32.mrf.mxu0
    %v729 = vadd.f32 %v616, %v728
    %v730 = vpop.f32.mrf.mxu0
    %731 = vmatprep.mubr.bf16.mxu0 0
    %732 = vmatmul.mubr.bf16.gmra.mxu0 %v529
    %v733 = vpop.f32.mrf.mxu0
    %v734 = vadd.f32 %v621, %v733
    %v735 = vpop.f32.mrf.mxu0
    %v736 = vpop.f32.mrf.mxu0
    %v737 = vadd.f32 %v624, %v736
    %v738 = vpop.f32.mrf.mxu0
    %739 = vmatprep.mubr.bf16.mxu0 0
    %740 = vmatmul.mubr.bf16.gmra.mxu0 %v532
    %v741 = vpop.f32.mrf.mxu0
    %v742 = vadd.f32 %v629, %v741
    %v743 = vpop.f32.mrf.mxu0
    %v744 = vpop.f32.mrf.mxu0
    %v745 = vadd.f32 %v632, %v744
    %v746 = vpop.f32.mrf.mxu0
    %747 = vmatprep.mubr.bf16.mxu0 0
    %748 = vmatmul.mubr.bf16.gmra.mxu0 %v535
    %v749 = vpop.f32.mrf.mxu0
    %v750 = vadd.f32 %v637, %v749
    %v751 = vpop.f32.mrf.mxu0
    %v752 = vpop.f32.mrf.mxu0
    %v753 = vadd.f32 %v640, %v752
    %v754 = vpop.f32.mrf.mxu0
    %755 = vmatprep.mubr.bf16.mxu0 0
    %756 = vmatmul.mubr.bf16.gmra.mxu0 %v538
    %v757 = vpop.f32.mrf.mxu0
    %v758 = vadd.f32 %v645, %v757
    %v759 = vpop.f32.mrf.mxu0
    %v760 = vpop.f32.mrf.mxu0
    %v761 = vadd.f32 %v648, %v760
    %v762 = vpop.f32.mrf.mxu0
    %763 = vmatprep.mubr.bf16.mxu0 0
    %764 = vmatmul.mubr.bf16.gmra.mxu0 %v541
    %v765 = vpop.f32.mrf.mxu0
    %v766 = vadd.f32 %v653, %v765
    %v767 = vpop.f32.mrf.mxu0
    %v768 = vpop.f32.mrf.mxu0
    %v769 = vadd.f32 %v656, %v768
    %v770 = vpop.f32.mrf.mxu0
    %771 = vdwg.mxu0
    %v772 = vpack.c.bf16 %v697, %v694
    %v773 = vpack.c.bf16 %v705, %v702
    %v774 = vpack.c.bf16 %v713, %v710
    %v775 = vpack.c.bf16 %v721, %v718
    %v776 = vpack.c.bf16 %v729, %v726
    %v777 = vpack.c.bf16 %v737, %v734
    %v778 = vpack.c.bf16 %v745, %v742
    %v779 = vpack.c.bf16 %v753, %v750
    %v780 = vpack.c.bf16 %v761, %v758
    %v781 = vpack.c.bf16 %v769, %v766
    %vm782 = vcmp.eq.s32.totalorder %v239, %v242
    %vm783 = vcmp.eq.s32.totalorder %v240, %v242
    %vm784 = vcmp.eq.s32.totalorder %v241, %v242
    %vm785 = vcmp.eq.s32.totalorder %v239, %v243
    %vm786 = vcmp.eq.s32.totalorder %v240, %v243
    %vm787 = vcmp.eq.s32.totalorder %v241, %v243
    %vm788 = vcmp.eq.s32.totalorder %v239, %v244
    %vm789 = vcmp.eq.s32.totalorder %v240, %v244
    %vm790 = vcmp.eq.s32.totalorder %v241, %v244
    %vm791 = vcmp.eq.s32.totalorder %v239, %v245
    %vm792 = vcmp.eq.s32.totalorder %v240, %v245
    %vm793 = vcmp.eq.s32.totalorder %v241, %v245
    %vm794 = vcmp.eq.s32.totalorder %v239, %v246
    %vm795 = vcmp.eq.s32.totalorder %v240, %v246
    %vm796 = vcmp.eq.s32.totalorder %v241, %v246
    %vm797 = vcmp.eq.s32.totalorder %v239, %v247
    %vm798 = vcmp.eq.s32.totalorder %v240, %v247
    %vm799 = vcmp.eq.s32.totalorder %v241, %v247
    %vm800 = vcmp.eq.s32.totalorder %v239, %v248
    %vm801 = vcmp.eq.s32.totalorder %v240, %v248
    %vm802 = vcmp.eq.s32.totalorder %v241, %v248
    %vm803 = vcmp.eq.s32.totalorder %v239, %v249
    %vm804 = vcmp.eq.s32.totalorder %v240, %v249
    %vm805 = vcmp.eq.s32.totalorder %v241, %v249
    %vm806 = vcmp.eq.s32.totalorder %v239, %v250
    %vm807 = vcmp.eq.s32.totalorder %v240, %v250
    %vm808 = vcmp.eq.s32.totalorder %v241, %v250
    %vm809 = vcmp.eq.s32.totalorder %v239, %v251
    %vm810 = vcmp.eq.s32.totalorder %v240, %v251
    %vm811 = vcmp.eq.s32.totalorder %v241, %v251
    %vm812 = vcmp.eq.s32.totalorder %v239, %v252
    %vm813 = vcmp.eq.s32.totalorder %v240, %v252
    %vm814 = vcmp.eq.s32.totalorder %v241, %v252
    %vm815 = vcmp.eq.s32.totalorder %v239, %v253
    %vm816 = vcmp.eq.s32.totalorder %v240, %v253
    %vm817 = vcmp.eq.s32.totalorder %v241, %v253
    %vm818 = vcmp.eq.s32.totalorder %v239, %v254
    %vm819 = vcmp.eq.s32.totalorder %v240, %v254
    %vm820 = vcmp.eq.s32.totalorder %v241, %v254
    %vm821 = vcmp.eq.s32.totalorder %v239, %v255
    %vm822 = vcmp.eq.s32.totalorder %v240, %v255
    %vm823 = vcmp.eq.s32.totalorder %v241, %v255
    %vm824 = vcmp.eq.s32.totalorder %v239, %v256
    %vm825 = vcmp.eq.s32.totalorder %v240, %v256
    %vm826 = vcmp.eq.s32.totalorder %v241, %v256
    %vm827 = vcmp.eq.s32.totalorder %v239, %v257
    %vm828 = vcmp.eq.s32.totalorder %v240, %v257
    %vm829 = vcmp.eq.s32.totalorder %v241, %v257
    %vm830 = vcmp.eq.s32.totalorder %v239, %v258
    %vm831 = vcmp.eq.s32.totalorder %v240, %v258
    %vm832 = vcmp.eq.s32.totalorder %v241, %v258
    %vm833 = vcmp.eq.s32.totalorder %v239, %v259
    %vm834 = vcmp.eq.s32.totalorder %v240, %v259
    %vm835 = vcmp.eq.s32.totalorder %v241, %v259
    %vm836 = vcmp.eq.s32.totalorder %v239, %v260
    %vm837 = vcmp.eq.s32.totalorder %v240, %v260
    %vm838 = vcmp.eq.s32.totalorder %v241, %v260
    %vm839 = vcmp.eq.s32.totalorder %v239, %v261
    %vm840 = vcmp.eq.s32.totalorder %v240, %v261
    %vm841 = vcmp.eq.s32.totalorder %v241, %v261
    %v842 = vsel %vm782, 1.0, 0.0
    %v843 = vsel %vm783, 1.0, 0.0
    %v844 = vsel %vm784, 1.0, 0.0
    %v845 = vsel %vm785, 1.0, 0.0
    %v846 = vsel %vm786, 1.0, 0.0
    %v847 = vsel %vm787, 1.0, 0.0
    %v848 = vsel %vm788, 1.0, 0.0
    %v849 = vsel %vm789, 1.0, 0.0
    %v850 = vsel %vm790, 1.0, 0.0
    %v851 = vsel %vm791, 1.0, 0.0
    %v852 = vsel %vm792, 1.0, 0.0
    %v853 = vsel %vm793, 1.0, 0.0
    %v854 = vsel %vm794, 1.0, 0.0
    %v855 = vsel %vm795, 1.0, 0.0
    %v856 = vsel %vm796, 1.0, 0.0
    %v857 = vsel %vm797, 1.0, 0.0
    %v858 = vsel %vm798, 1.0, 0.0
    %v859 = vsel %vm799, 1.0, 0.0
    %v860 = vsel %vm800, 1.0, 0.0
    %v861 = vsel %vm801, 1.0, 0.0
    %v862 = vsel %vm802, 1.0, 0.0
    %v863 = vsel %vm803, 1.0, 0.0
    %v864 = vsel %vm804, 1.0, 0.0
    %v865 = vsel %vm805, 1.0, 0.0
    %v866 = vsel %vm806, 1.0, 0.0
    %v867 = vsel %vm807, 1.0, 0.0
    %v868 = vsel %vm808, 1.0, 0.0
    %v869 = vsel %vm809, 1.0, 0.0
    %v870 = vsel %vm810, 1.0, 0.0
    %v871 = vsel %vm811, 1.0, 0.0
    %v872 = vsel %vm812, 1.0, 0.0
    %v873 = vsel %vm813, 1.0, 0.0
    %v874 = vsel %vm814, 1.0, 0.0
    %v875 = vsel %vm815, 1.0, 0.0
    %v876 = vsel %vm816, 1.0, 0.0
    %v877 = vsel %vm817, 1.0, 0.0
    %v878 = vsel %vm818, 1.0, 0.0
    %v879 = vsel %vm819, 1.0, 0.0
    %v880 = vsel %vm820, 1.0, 0.0
    %v881 = vsel %vm821, 1.0, 0.0
    %v882 = vsel %vm822, 1.0, 0.0
    %v883 = vsel %vm823, 1.0, 0.0
    %v884 = vsel %vm824, 1.0, 0.0
    %v885 = vsel %vm825, 1.0, 0.0
    %v886 = vsel %vm826, 1.0, 0.0
    %v887 = vsel %vm827, 1.0, 0.0
    %v888 = vsel %vm828, 1.0, 0.0
    %v889 = vsel %vm829, 1.0, 0.0
    %v890 = vsel %vm830, 1.0, 0.0
    %v891 = vsel %vm831, 1.0, 0.0
    %v892 = vsel %vm832, 1.0, 0.0
    %v893 = vsel %vm833, 1.0, 0.0
    %v894 = vsel %vm834, 1.0, 0.0
    %v895 = vsel %vm835, 1.0, 0.0
    %v896 = vsel %vm836, 1.0, 0.0
    %v897 = vsel %vm837, 1.0, 0.0
    %v898 = vsel %vm838, 1.0, 0.0
    %v899 = vsel %vm839, 1.0, 0.0
    %v900 = vsel %vm840, 1.0, 0.0
    %v901 = vsel %vm841, 1.0, 0.0
    %v902 = vpack.c.bf16 %v845, %v842
    %v903 = vpack.c.bf16 %v846, %v843
    %v904 = vpack.c.bf16 %v847, %v844
    %v905 = vpack.c.bf16 %v851, %v848
    %v906 = vpack.c.bf16 %v852, %v849
    %v907 = vpack.c.bf16 %v853, %v850
    %v908 = vpack.c.bf16 %v857, %v854
    %v909 = vpack.c.bf16 %v858, %v855
    %v910 = vpack.c.bf16 %v859, %v856
    %v911 = vpack.c.bf16 %v863, %v860
    %v912 = vpack.c.bf16 %v864, %v861
    %v913 = vpack.c.bf16 %v865, %v862
    %v914 = vpack.c.bf16 %v869, %v866
    %v915 = vpack.c.bf16 %v870, %v867
    %v916 = vpack.c.bf16 %v871, %v868
    %v917 = vpack.c.bf16 %v875, %v872
    %v918 = vpack.c.bf16 %v876, %v873
    %v919 = vpack.c.bf16 %v877, %v874
    %v920 = vpack.c.bf16 %v881, %v878
    %v921 = vpack.c.bf16 %v882, %v879
    %v922 = vpack.c.bf16 %v883, %v880
    %v923 = vpack.c.bf16 %v887, %v884
    %v924 = vpack.c.bf16 %v888, %v885
    %v925 = vpack.c.bf16 %v889, %v886
    %v926 = vpack.c.bf16 %v893, %v890
    %v927 = vpack.c.bf16 %v894, %v891
    %v928 = vpack.c.bf16 %v895, %v892
    %v929 = vpack.c.bf16 %v899, %v896
    %v930 = vpack.c.bf16 %v900, %v897
    %v931 = vpack.c.bf16 %v901, %v898
    %v933 = vsel %vm512, %v904, 0
    %v936 = vsel %vm512, %v907, 0
    %v939 = vsel %vm512, %v910, 0
    %v942 = vsel %vm512, %v913, 0
    %v945 = vsel %vm512, %v916, 0
    %v948 = vsel %vm512, %v919, 0
    %v951 = vsel %vm512, %v922, 0
    %v954 = vsel %vm512, %v925, 0
    %v957 = vsel %vm512, %v928, 0
    %v960 = vsel %vm512, %v931, 0
    %962 = vmatprep.subr.bf16.mxu0 0
    %963 = vmatpush1.bf16.xpose.msra.mxu0 0
    %964 = vmatprep.subr.bf16.mxu0 0
    %965 = vmatpush1.bf16.xpose.msra.mxu0 0
    %966 = vmatprep.subr.bf16.mxu0 0
    %967 = vmatpush1.bf16.xpose.msra.mxu0 0
    %968 = vmatprep.subr.bf16.mxu0 0
    %969 = vmatpush1.bf16.xpose.msra.mxu0 0
    %970 = vmatprep.subr.bf16.mxu0 0
    %971 = vmatpush1.bf16.xpose.msra.mxu0 0
    %972 = vmatprep.subr.bf16.mxu0 0
    %973 = vmatpush1.bf16.xpose.msra.mxu0 0
    %974 = vmatprep.subr.bf16.mxu0 0
    %975 = vmatpush1.bf16.xpose.msra.mxu0 0
    %976 = vmatprep.subr.bf16.mxu0 %v215
    %977 = vmatpush1.bf16.xpose.msra.mxu0 %v214
    %978 = vmatprep.subr.bf16.mxu0 0
    %979 = vmatpush2.bf16.xpose.msra.mxu0 0
    %980 = vmatprep.subr.bf16.mxu0 0
    %981 = vmatpush2.bf16.xpose.msra.mxu0 0
    %982 = vmatprep.subr.bf16.mxu0 0
    %983 = vmatpush2.bf16.xpose.msra.mxu0 0
    %984 = vmatprep.subr.bf16.mxu0 0
    %985 = vmatpush2.bf16.xpose.msra.mxu0 0
    %986 = vmatprep.subr.bf16.mxu0 0
    %987 = vmatpush2.bf16.xpose.msra.mxu0 0
    %988 = vmatprep.subr.bf16.mxu0 0
    %989 = vmatpush2.bf16.xpose.msra.mxu0 0
    %990 = vmatprep.subr.bf16.mxu0 0
    %991 = vmatpush2.bf16.xpose.msra.mxu0 0
    %992 = vmatprep.subr.bf16.mxu0 0
    %993 = vmatpush2.bf16.xpose.msra.mxu0 0
    %994 = vmatprep.mubr.bf16.mxu0 %v903
    %995 = vmatmul.mubr.bf16.gmra.mxu0 %v902
    %v996 = vpop.f32.mrf.mxu0
    %v997 = vadd.f32 0.0, %v996
    %v998 = vpop.f32.mrf.mxu0
    %v999 = vpop.f32.mrf.mxu0
    %v1000 = vadd.f32 0.0, %v999
    %v1001 = vpop.f32.mrf.mxu0
    %1002 = vmatprep.mubr.bf16.mxu0 %v906
    %1003 = vmatmul.mubr.bf16.gmra.mxu0 %v905
    %v1004 = vpop.f32.mrf.mxu0
    %v1005 = vadd.f32 0.0, %v1004
    %v1006 = vpop.f32.mrf.mxu0
    %v1007 = vpop.f32.mrf.mxu0
    %v1008 = vadd.f32 0.0, %v1007
    %v1009 = vpop.f32.mrf.mxu0
    %1010 = vmatprep.mubr.bf16.mxu0 %v909
    %1011 = vmatmul.mubr.bf16.gmra.mxu0 %v908
    %v1012 = vpop.f32.mrf.mxu0
    %v1013 = vadd.f32 0.0, %v1012
    %v1014 = vpop.f32.mrf.mxu0
    %v1015 = vpop.f32.mrf.mxu0
    %v1016 = vadd.f32 0.0, %v1015
    %v1017 = vpop.f32.mrf.mxu0
    %1018 = vmatprep.mubr.bf16.mxu0 %v912
    %1019 = vmatmul.mubr.bf16.gmra.mxu0 %v911
    %v1020 = vpop.f32.mrf.mxu0
    %v1021 = vadd.f32 0.0, %v1020
    %v1022 = vpop.f32.mrf.mxu0
    %v1023 = vpop.f32.mrf.mxu0
    %v1024 = vadd.f32 0.0, %v1023
    %v1025 = vpop.f32.mrf.mxu0
    %1026 = vmatprep.mubr.bf16.mxu0 %v915
    %1027 = vmatmul.mubr.bf16.gmra.mxu0 %v914
    %v1028 = vpop.f32.mrf.mxu0
    %v1029 = vadd.f32 0.0, %v1028
    %v1030 = vpop.f32.mrf.mxu0
    %v1031 = vpop.f32.mrf.mxu0
    %v1032 = vadd.f32 0.0, %v1031
    %v1033 = vpop.f32.mrf.mxu0
    %1034 = vmatprep.mubr.bf16.mxu0 %v918
    %1035 = vmatmul.mubr.bf16.gmra.mxu0 %v917
    %v1036 = vpop.f32.mrf.mxu0
    %v1037 = vadd.f32 0.0, %v1036
    %v1038 = vpop.f32.mrf.mxu0
    %v1039 = vpop.f32.mrf.mxu0
    %v1040 = vadd.f32 0.0, %v1039
    %v1041 = vpop.f32.mrf.mxu0
    %1042 = vmatprep.mubr.bf16.mxu0 %v921
    %1043 = vmatmul.mubr.bf16.gmra.mxu0 %v920
    %v1044 = vpop.f32.mrf.mxu0
    %v1045 = vadd.f32 0.0, %v1044
    %v1046 = vpop.f32.mrf.mxu0
    %v1047 = vpop.f32.mrf.mxu0
    %v1048 = vadd.f32 0.0, %v1047
    %v1049 = vpop.f32.mrf.mxu0
    %1050 = vmatprep.mubr.bf16.mxu0 %v924
    %1051 = vmatmul.mubr.bf16.gmra.mxu0 %v923
    %v1052 = vpop.f32.mrf.mxu0
    %v1053 = vadd.f32 0.0, %v1052
    %v1054 = vpop.f32.mrf.mxu0
    %v1055 = vpop.f32.mrf.mxu0
    %v1056 = vadd.f32 0.0, %v1055
    %v1057 = vpop.f32.mrf.mxu0
    %1058 = vmatprep.mubr.bf16.mxu0 %v927
    %1059 = vmatmul.mubr.bf16.gmra.mxu0 %v926
    %v1060 = vpop.f32.mrf.mxu0
    %v1061 = vadd.f32 0.0, %v1060
    %v1062 = vpop.f32.mrf.mxu0
    %v1063 = vpop.f32.mrf.mxu0
    %v1064 = vadd.f32 0.0, %v1063
    %v1065 = vpop.f32.mrf.mxu0
    %1066 = vmatprep.mubr.bf16.mxu0 %v930
    %1067 = vmatmul.mubr.bf16.gmra.mxu0 %v929
    %v1068 = vpop.f32.mrf.mxu0
    %v1069 = vadd.f32 0.0, %v1068
    %v1070 = vpop.f32.mrf.mxu0
    %v1071 = vpop.f32.mrf.mxu0
    %v1072 = vadd.f32 0.0, %v1071
    %v1073 = vpop.f32.mrf.mxu0
    %1074 = vdwg.mxu0
    %1075 = vmatprep.subr.bf16.mxu0 0
    %1076 = vmatpush1.bf16.xpose.msra.mxu0 0
    %1077 = vmatprep.subr.bf16.mxu0 0
    %1078 = vmatpush1.bf16.xpose.msra.mxu0 0
    %1079 = vmatprep.subr.bf16.mxu0 0
    %1080 = vmatpush1.bf16.xpose.msra.mxu0 0
    %1081 = vmatprep.subr.bf16.mxu0 0
    %1082 = vmatpush1.bf16.xpose.msra.mxu0 0
    %1083 = vmatprep.subr.bf16.mxu0 0
    %1084 = vmatpush1.bf16.xpose.msra.mxu0 0
    %1085 = vmatprep.subr.bf16.mxu0 0
    %1086 = vmatpush1.bf16.xpose.msra.mxu0 0
    %1087 = vmatprep.subr.bf16.mxu0 0
    %1088 = vmatpush1.bf16.xpose.msra.mxu0 0
    %1089 = vmatprep.subr.bf16.mxu0 0
    %1090 = vmatpush1.bf16.xpose.msra.mxu0 %v544
    %1091 = vmatprep.subr.bf16.mxu0 0
    %1092 = vmatpush2.bf16.xpose.msra.mxu0 0
    %1093 = vmatprep.subr.bf16.mxu0 0
    %1094 = vmatpush2.bf16.xpose.msra.mxu0 0
    %1095 = vmatprep.subr.bf16.mxu0 0
    %1096 = vmatpush2.bf16.xpose.msra.mxu0 0
    %1097 = vmatprep.subr.bf16.mxu0 0
    %1098 = vmatpush2.bf16.xpose.msra.mxu0 0
    %1099 = vmatprep.subr.bf16.mxu0 0
    %1100 = vmatpush2.bf16.xpose.msra.mxu0 0
    %1101 = vmatprep.subr.bf16.mxu0 0
    %1102 = vmatpush2.bf16.xpose.msra.mxu0 0
    %1103 = vmatprep.subr.bf16.mxu0 0
    %1104 = vmatpush2.bf16.xpose.msra.mxu0 0
    %1105 = vmatprep.subr.bf16.mxu0 0
    %1106 = vmatpush2.bf16.xpose.msra.mxu0 0
    %1107 = vmatprep.mubr.bf16.mxu0 0
    %1108 = vmatmul.mubr.bf16.gmra.mxu0 %v933
    %v1109 = vpop.f32.mrf.mxu0
    %v1110 = vadd.f32 %v997, %v1109
    %v1111 = vpop.f32.mrf.mxu0
    %v1112 = vpop.f32.mrf.mxu0
    %v1113 = vadd.f32 %v1000, %v1112
    %v1114 = vpop.f32.mrf.mxu0
    %1115 = vmatprep.mubr.bf16.mxu0 0
    %1116 = vmatmul.mubr.bf16.gmra.mxu0 %v936
    %v1117 = vpop.f32.mrf.mxu0
    %v1118 = vadd.f32 %v1005, %v1117
    %v1119 = vpop.f32.mrf.mxu0
    %v1120 = vpop.f32.mrf.mxu0
    %v1121 = vadd.f32 %v1008, %v1120
    %v1122 = vpop.f32.mrf.mxu0
    %1123 = vmatprep.mubr.bf16.mxu0 0
    %1124 = vmatmul.mubr.bf16.gmra.mxu0 %v939
    %v1125 = vpop.f32.mrf.mxu0
    %v1126 = vadd.f32 %v1013, %v1125
    %v1127 = vpop.f32.mrf.mxu0
    %v1128 = vpop.f32.mrf.mxu0
    %v1129 = vadd.f32 %v1016, %v1128
    %v1130 = vpop.f32.mrf.mxu0
    %1131 = vmatprep.mubr.bf16.mxu0 0
    %1132 = vmatmul.mubr.bf16.gmra.mxu0 %v942
    %v1133 = vpop.f32.mrf.mxu0
    %v1134 = vadd.f32 %v1021, %v1133
    %v1135 = vpop.f32.mrf.mxu0
    %v1136 = vpop.f32.mrf.mxu0
    %v1137 = vadd.f32 %v1024, %v1136
    %v1138 = vpop.f32.mrf.mxu0
    %1139 = vmatprep.mubr.bf16.mxu0 0
    %1140 = vmatmul.mubr.bf16.gmra.mxu0 %v945
    %v1141 = vpop.f32.mrf.mxu0
    %v1142 = vadd.f32 %v1029, %v1141
    %v1143 = vpop.f32.mrf.mxu0
    %v1144 = vpop.f32.mrf.mxu0
    %v1145 = vadd.f32 %v1032, %v1144
    %v1146 = vpop.f32.mrf.mxu0
    %1147 = vmatprep.mubr.bf16.mxu0 0
    %1148 = vmatmul.mubr.bf16.gmra.mxu0 %v948
    %v1149 = vpop.f32.mrf.mxu0
    %v1150 = vadd.f32 %v1037, %v1149
    %v1151 = vpop.f32.mrf.mxu0
    %v1152 = vpop.f32.mrf.mxu0
    %v1153 = vadd.f32 %v1040, %v1152
    %v1154 = vpop.f32.mrf.mxu0
    %1155 = vmatprep.mubr.bf16.mxu0 0
    %1156 = vmatmul.mubr.bf16.gmra.mxu0 %v951
    %v1157 = vpop.f32.mrf.mxu0
    %v1158 = vadd.f32 %v1045, %v1157
    %v1159 = vpop.f32.mrf.mxu0
    %v1160 = vpop.f32.mrf.mxu0
    %v1161 = vadd.f32 %v1048, %v1160
    %v1162 = vpop.f32.mrf.mxu0
    %1163 = vmatprep.mubr.bf16.mxu0 0
    %1164 = vmatmul.mubr.bf16.gmra.mxu0 %v954
    %v1165 = vpop.f32.mrf.mxu0
    %v1166 = vadd.f32 %v1053, %v1165
    %v1167 = vpop.f32.mrf.mxu0
    %v1168 = vpop.f32.mrf.mxu0
    %v1169 = vadd.f32 %v1056, %v1168
    %v1170 = vpop.f32.mrf.mxu0
    %1171 = vmatprep.mubr.bf16.mxu0 0
    %1172 = vmatmul.mubr.bf16.gmra.mxu0 %v957
    %v1173 = vpop.f32.mrf.mxu0
    %v1174 = vadd.f32 %v1061, %v1173
    %v1175 = vpop.f32.mrf.mxu0
    %v1176 = vpop.f32.mrf.mxu0
    %v1177 = vadd.f32 %v1064, %v1176
    %v1178 = vpop.f32.mrf.mxu0
    %1179 = vmatprep.mubr.bf16.mxu0 0
    %1180 = vmatmul.mubr.bf16.gmra.mxu0 %v960
    %v1181 = vpop.f32.mrf.mxu0
    %v1182 = vadd.f32 %v1069, %v1181
    %v1183 = vpop.f32.mrf.mxu0
    %v1184 = vpop.f32.mrf.mxu0
    %v1185 = vadd.f32 %v1072, %v1184
    %v1186 = vpop.f32.mrf.mxu0
    %1187 = vdwg.mxu0
    %v1188 = vpack.c.bf16 %v1113, %v1110
    %v1189 = vpack.c.bf16 %v1121, %v1118
    %v1190 = vpack.c.bf16 %v1129, %v1126
    %v1191 = vpack.c.bf16 %v1137, %v1134
    %v1192 = vpack.c.bf16 %v1145, %v1142
    %v1193 = vpack.c.bf16 %v1153, %v1150
    %v1194 = vpack.c.bf16 %v1161, %v1158
    %v1195 = vpack.c.bf16 %v1169, %v1166
    %v1196 = vpack.c.bf16 %v1177, %v1174
    %v1197 = vpack.c.bf16 %v1185, %v1182
    %v1198 = vadd.s32 %v242, 1
    %v1199 = vadd.s32 %v243, 1
    %v1200 = vadd.s32 %v244, 1
    %v1201 = vadd.s32 %v245, 1
    %v1202 = vadd.s32 %v246, 1
    %v1203 = vadd.s32 %v247, 1
    %v1204 = vadd.s32 %v248, 1
    %v1205 = vadd.s32 %v249, 1
    %v1206 = vadd.s32 %v250, 1
    %v1207 = vadd.s32 %v251, 1
    %v1208 = vadd.s32 %v252, 1
    %v1209 = vadd.s32 %v253, 1
    %v1210 = vadd.s32 %v254, 1
    %v1211 = vadd.s32 %v255, 1
    %v1212 = vadd.s32 %v256, 1
    %v1213 = vadd.s32 %v257, 1
    %v1214 = vadd.s32 %v258, 1
    %v1215 = vadd.s32 %v259, 1
    %v1216 = vadd.s32 %v260, 1
    %v1217 = vadd.s32 %v261, 1
    %vm1218 = vcmp.eq.s32.totalorder %v239, %v1198
    %vm1219 = vcmp.eq.s32.totalorder %v240, %v1198
    %vm1220 = vcmp.eq.s32.totalorder %v241, %v1198
    %vm1221 = vcmp.eq.s32.totalorder %v239, %v1199
    %vm1222 = vcmp.eq.s32.totalorder %v240, %v1199
    %vm1223 = vcmp.eq.s32.totalorder %v241, %v1199
    %vm1224 = vcmp.eq.s32.totalorder %v239, %v1200
    %vm1225 = vcmp.eq.s32.totalorder %v240, %v1200
    %vm1226 = vcmp.eq.s32.totalorder %v241, %v1200
    %vm1227 = vcmp.eq.s32.totalorder %v239, %v1201
    %vm1228 = vcmp.eq.s32.totalorder %v240, %v1201
    %vm1229 = vcmp.eq.s32.totalorder %v241, %v1201
    %vm1230 = vcmp.eq.s32.totalorder %v239, %v1202
    %vm1231 = vcmp.eq.s32.totalorder %v240, %v1202
    %vm1232 = vcmp.eq.s32.totalorder %v241, %v1202
    %vm1233 = vcmp.eq.s32.totalorder %v239, %v1203
    %vm1234 = vcmp.eq.s32.totalorder %v240, %v1203
    %vm1235 = vcmp.eq.s32.totalorder %v241, %v1203
    %vm1236 = vcmp.eq.s32.totalorder %v239, %v1204
    %vm1237 = vcmp.eq.s32.totalorder %v240, %v1204
    %vm1238 = vcmp.eq.s32.totalorder %v241, %v1204
    %vm1239 = vcmp.eq.s32.totalorder %v239, %v1205
    %vm1240 = vcmp.eq.s32.totalorder %v240, %v1205
    %vm1241 = vcmp.eq.s32.totalorder %v241, %v1205
    %vm1242 = vcmp.eq.s32.totalorder %v239, %v1206
    %vm1243 = vcmp.eq.s32.totalorder %v240, %v1206
    %vm1244 = vcmp.eq.s32.totalorder %v241, %v1206
    %vm1245 = vcmp.eq.s32.totalorder %v239, %v1207
    %vm1246 = vcmp.eq.s32.totalorder %v240, %v1207
    %vm1247 = vcmp.eq.s32.totalorder %v241, %v1207
    %vm1248 = vcmp.eq.s32.totalorder %v239, %v1208
    %vm1249 = vcmp.eq.s32.totalorder %v240, %v1208
    %vm1250 = vcmp.eq.s32.totalorder %v241, %v1208
    %vm1251 = vcmp.eq.s32.totalorder %v239, %v1209
    %vm1252 = vcmp.eq.s32.totalorder %v240, %v1209
    %vm1253 = vcmp.eq.s32.totalorder %v241, %v1209
    %vm1254 = vcmp.eq.s32.totalorder %v239, %v1210
    %vm1255 = vcmp.eq.s32.totalorder %v240, %v1210
    %vm1256 = vcmp.eq.s32.totalorder %v241, %v1210
    %vm1257 = vcmp.eq.s32.totalorder %v239, %v1211
    %vm1258 = vcmp.eq.s32.totalorder %v240, %v1211
    %vm1259 = vcmp.eq.s32.totalorder %v241, %v1211
    %vm1260 = vcmp.eq.s32.totalorder %v239, %v1212
    %vm1261 = vcmp.eq.s32.totalorder %v240, %v1212
    %vm1262 = vcmp.eq.s32.totalorder %v241, %v1212
    %vm1263 = vcmp.eq.s32.totalorder %v239, %v1213
    %vm1264 = vcmp.eq.s32.totalorder %v240, %v1213
    %vm1265 = vcmp.eq.s32.totalorder %v241, %v1213
    %vm1266 = vcmp.eq.s32.totalorder %v239, %v1214
    %vm1267 = vcmp.eq.s32.totalorder %v240, %v1214
    %vm1268 = vcmp.eq.s32.totalorder %v241, %v1214
    %vm1269 = vcmp.eq.s32.totalorder %v239, %v1215
    %vm1270 = vcmp.eq.s32.totalorder %v240, %v1215
    %vm1271 = vcmp.eq.s32.totalorder %v241, %v1215
    %vm1272 = vcmp.eq.s32.totalorder %v239, %v1216
    %vm1273 = vcmp.eq.s32.totalorder %v240, %v1216
    %vm1274 = vcmp.eq.s32.totalorder %v241, %v1216
    %vm1275 = vcmp.eq.s32.totalorder %v239, %v1217
    %vm1276 = vcmp.eq.s32.totalorder %v240, %v1217
    %vm1277 = vcmp.eq.s32.totalorder %v241, %v1217
    %v1278 = vsel %vm1218, 1.0, 0.0
    %v1279 = vsel %vm1219, 1.0, 0.0
    %v1280 = vsel %vm1220, 1.0, 0.0
    %v1281 = vsel %vm1221, 1.0, 0.0
    %v1282 = vsel %vm1222, 1.0, 0.0
    %v1283 = vsel %vm1223, 1.0, 0.0
    %v1284 = vsel %vm1224, 1.0, 0.0
    %v1285 = vsel %vm1225, 1.0, 0.0
    %v1286 = vsel %vm1226, 1.0, 0.0
    %v1287 = vsel %vm1227, 1.0, 0.0
    %v1288 = vsel %vm1228, 1.0, 0.0
    %v1289 = vsel %vm1229, 1.0, 0.0
    %v1290 = vsel %vm1230, 1.0, 0.0
    %v1291 = vsel %vm1231, 1.0, 0.0
    %v1292 = vsel %vm1232, 1.0, 0.0
    %v1293 = vsel %vm1233, 1.0, 0.0
    %v1294 = vsel %vm1234, 1.0, 0.0
    %v1295 = vsel %vm1235, 1.0, 0.0
    %v1296 = vsel %vm1236, 1.0, 0.0
    %v1297 = vsel %vm1237, 1.0, 0.0
    %v1298 = vsel %vm1238, 1.0, 0.0
    %v1299 = vsel %vm1239, 1.0, 0.0
    %v1300 = vsel %vm1240, 1.0, 0.0
    %v1301 = vsel %vm1241, 1.0, 0.0
    %v1302 = vsel %vm1242, 1.0, 0.0
    %v1303 = vsel %vm1243, 1.0, 0.0
    %v1304 = vsel %vm1244, 1.0, 0.0
    %v1305 = vsel %vm1245, 1.0, 0.0
    %v1306 = vsel %vm1246, 1.0, 0.0
    %v1307 = vsel %vm1247, 1.0, 0.0
    %v1308 = vsel %vm1248, 1.0, 0.0
    %v1309 = vsel %vm1249, 1.0, 0.0
    %v1310 = vsel %vm1250, 1.0, 0.0
    %v1311 = vsel %vm1251, 1.0, 0.0
    %v1312 = vsel %vm1252, 1.0, 0.0
    %v1313 = vsel %vm1253, 1.0, 0.0
    %v1314 = vsel %vm1254, 1.0, 0.0
    %v1315 = vsel %vm1255, 1.0, 0.0
    %v1316 = vsel %vm1256, 1.0, 0.0
    %v1317 = vsel %vm1257, 1.0, 0.0
    %v1318 = vsel %vm1258, 1.0, 0.0
    %v1319 = vsel %vm1259, 1.0, 0.0
    %v1320 = vsel %vm1260, 1.0, 0.0
    %v1321 = vsel %vm1261, 1.0, 0.0
    %v1322 = vsel %vm1262, 1.0, 0.0
    %v1323 = vsel %vm1263, 1.0, 0.0
    %v1324 = vsel %vm1264, 1.0, 0.0
    %v1325 = vsel %vm1265, 1.0, 0.0
    %v1326 = vsel %vm1266, 1.0, 0.0
    %v1327 = vsel %vm1267, 1.0, 0.0
    %v1328 = vsel %vm1268, 1.0, 0.0
    %v1329 = vsel %vm1269, 1.0, 0.0
    %v1330 = vsel %vm1270, 1.0, 0.0
    %v1331 = vsel %vm1271, 1.0, 0.0
    %v1332 = vsel %vm1272, 1.0, 0.0
    %v1333 = vsel %vm1273, 1.0, 0.0
    %v1334 = vsel %vm1274, 1.0, 0.0
    %v1335 = vsel %vm1275, 1.0, 0.0
    %v1336 = vsel %vm1276, 1.0, 0.0
    %v1337 = vsel %vm1277, 1.0, 0.0
    %v1338 = vpack.c.bf16 %v1281, %v1278
    %v1339 = vpack.c.bf16 %v1282, %v1279
    %v1340 = vpack.c.bf16 %v1283, %v1280
    %v1341 = vpack.c.bf16 %v1287, %v1284
    %v1342 = vpack.c.bf16 %v1288, %v1285
    %v1343 = vpack.c.bf16 %v1289, %v1286
    %v1344 = vpack.c.bf16 %v1293, %v1290
    %v1345 = vpack.c.bf16 %v1294, %v1291
    %v1346 = vpack.c.bf16 %v1295, %v1292
    %v1347 = vpack.c.bf16 %v1299, %v1296
    %v1348 = vpack.c.bf16 %v1300, %v1297
    %v1349 = vpack.c.bf16 %v1301, %v1298
    %v1350 = vpack.c.bf16 %v1305, %v1302
    %v1351 = vpack.c.bf16 %v1306, %v1303
    %v1352 = vpack.c.bf16 %v1307, %v1304
    %v1353 = vpack.c.bf16 %v1311, %v1308
    %v1354 = vpack.c.bf16 %v1312, %v1309
    %v1355 = vpack.c.bf16 %v1313, %v1310
    %v1356 = vpack.c.bf16 %v1317, %v1314
    %v1357 = vpack.c.bf16 %v1318, %v1315
    %v1358 = vpack.c.bf16 %v1319, %v1316
    %v1359 = vpack.c.bf16 %v1323, %v1320
    %v1360 = vpack.c.bf16 %v1324, %v1321
    %v1361 = vpack.c.bf16 %v1325, %v1322
    %v1362 = vpack.c.bf16 %v1329, %v1326
    %v1363 = vpack.c.bf16 %v1330, %v1327
    %v1364 = vpack.c.bf16 %v1331, %v1328
    %v1365 = vpack.c.bf16 %v1335, %v1332
    %v1366 = vpack.c.bf16 %v1336, %v1333
    %v1367 = vpack.c.bf16 %v1337, %v1334
    %v1369 = vsel %vm512, %v1340, 0
    %v1372 = vsel %vm512, %v1343, 0
    %v1375 = vsel %vm512, %v1346, 0
    %v1378 = vsel %vm512, %v1349, 0
    %v1381 = vsel %vm512, %v1352, 0
    %v1384 = vsel %vm512, %v1355, 0
    %v1387 = vsel %vm512, %v1358, 0
    %v1390 = vsel %vm512, %v1361, 0
    %v1393 = vsel %vm512, %v1364, 0
    %v1396 = vsel %vm512, %v1367, 0
    %1398 = vmatprep.subr.bf16.mxu0 0
    %1399 = vmatpush1.bf16.xpose.msra.mxu0 0
    %1400 = vmatprep.subr.bf16.mxu0 0
    %1401 = vmatpush1.bf16.xpose.msra.mxu0 0
    %1402 = vmatprep.subr.bf16.mxu0 0
    %1403 = vmatpush1.bf16.xpose.msra.mxu0 0
    %1404 = vmatprep.subr.bf16.mxu0 0
    %1405 = vmatpush1.bf16.xpose.msra.mxu0 0
    %1406 = vmatprep.subr.bf16.mxu0 0
    %1407 = vmatpush1.bf16.xpose.msra.mxu0 0
    %1408 = vmatprep.subr.bf16.mxu0 0
    %1409 = vmatpush1.bf16.xpose.msra.mxu0 0
    %1410 = vmatprep.subr.bf16.mxu0 0
    %1411 = vmatpush1.bf16.xpose.msra.mxu0 0
    %1412 = vmatprep.subr.bf16.mxu0 %v215
    %1413 = vmatpush1.bf16.xpose.msra.mxu0 %v214
    %1414 = vmatprep.subr.bf16.mxu0 0
    %1415 = vmatpush2.bf16.xpose.msra.mxu0 0
    %1416 = vmatprep.subr.bf16.mxu0 0
    %1417 = vmatpush2.bf16.xpose.msra.mxu0 0
    %1418 = vmatprep.subr.bf16.mxu0 0
    %1419 = vmatpush2.bf16.xpose.msra.mxu0 0
    %1420 = vmatprep.subr.bf16.mxu0 0
    %1421 = vmatpush2.bf16.xpose.msra.mxu0 0
    %1422 = vmatprep.subr.bf16.mxu0 0
    %1423 = vmatpush2.bf16.xpose.msra.mxu0 0
    %1424 = vmatprep.subr.bf16.mxu0 0
    %1425 = vmatpush2.bf16.xpose.msra.mxu0 0
    %1426 = vmatprep.subr.bf16.mxu0 0
    %1427 = vmatpush2.bf16.xpose.msra.mxu0 0
    %1428 = vmatprep.subr.bf16.mxu0 0
    %1429 = vmatpush2.bf16.xpose.msra.mxu0 0
    %1430 = vmatprep.mubr.bf16.mxu0 %v1339
    %1431 = vmatmul.mubr.bf16.gmra.mxu0 %v1338
    %v1432 = vpop.f32.mrf.mxu0
    %v1433 = vadd.f32 0.0, %v1432
    %v1434 = vpop.f32.mrf.mxu0
    %v1435 = vpop.f32.mrf.mxu0
    %v1436 = vadd.f32 0.0, %v1435
    %v1437 = vpop.f32.mrf.mxu0
    %1438 = vmatprep.mubr.bf16.mxu0 %v1342
    %1439 = vmatmul.mubr.bf16.gmra.mxu0 %v1341
    %v1440 = vpop.f32.mrf.mxu0
    %v1441 = vadd.f32 0.0, %v1440
    %v1442 = vpop.f32.mrf.mxu0
    %v1443 = vpop.f32.mrf.mxu0
    %v1444 = vadd.f32 0.0, %v1443
    %v1445 = vpop.f32.mrf.mxu0
    %1446 = vmatprep.mubr.bf16.mxu0 %v1345
    %1447 = vmatmul.mubr.bf16.gmra.mxu0 %v1344
    %v1448 = vpop.f32.mrf.mxu0
    %v1449 = vadd.f32 0.0, %v1448
    %v1450 = vpop.f32.mrf.mxu0
    %v1451 = vpop.f32.mrf.mxu0
    %v1452 = vadd.f32 0.0, %v1451
    %v1453 = vpop.f32.mrf.mxu0
    %1454 = vmatprep.mubr.bf16.mxu0 %v1348
    %1455 = vmatmul.mubr.bf16.gmra.mxu0 %v1347
    %v1456 = vpop.f32.mrf.mxu0
    %v1457 = vadd.f32 0.0, %v1456
    %v1458 = vpop.f32.mrf.mxu0
    %v1459 = vpop.f32.mrf.mxu0
    %v1460 = vadd.f32 0.0, %v1459
    %v1461 = vpop.f32.mrf.mxu0
    %1462 = vmatprep.mubr.bf16.mxu0 %v1351
    %1463 = vmatmul.mubr.bf16.gmra.mxu0 %v1350
    %v1464 = vpop.f32.mrf.mxu0
    %v1465 = vadd.f32 0.0, %v1464
    %v1466 = vpop.f32.mrf.mxu0
    %v1467 = vpop.f32.mrf.mxu0
    %v1468 = vadd.f32 0.0, %v1467
    %v1469 = vpop.f32.mrf.mxu0
    %1470 = vmatprep.mubr.bf16.mxu0 %v1354
    %1471 = vmatmul.mubr.bf16.gmra.mxu0 %v1353
    %v1472 = vpop.f32.mrf.mxu0
    %v1473 = vadd.f32 0.0, %v1472
    %v1474 = vpop.f32.mrf.mxu0
    %v1475 = vpop.f32.mrf.mxu0
    %v1476 = vadd.f32 0.0, %v1475
    %v1477 = vpop.f32.mrf.mxu0
    %1478 = vmatprep.mubr.bf16.mxu0 %v1357
    %1479 = vmatmul.mubr.bf16.gmra.mxu0 %v1356
    %v1480 = vpop.f32.mrf.mxu0
    %v1481 = vadd.f32 0.0, %v1480
    %v1482 = vpop.f32.mrf.mxu0
    %v1483 = vpop.f32.mrf.mxu0
    %v1484 = vadd.f32 0.0, %v1483
    %v1485 = vpop.f32.mrf.mxu0
    %1486 = vmatprep.mubr.bf16.mxu0 %v1360
    %1487 = vmatmul.mubr.bf16.gmra.mxu0 %v1359
    %v1488 = vpop.f32.mrf.mxu0
    %v1489 = vadd.f32 0.0, %v1488
    %v1490 = vpop.f32.mrf.mxu0
    %v1491 = vpop.f32.mrf.mxu0
    %v1492 = vadd.f32 0.0, %v1491
    %v1493 = vpop.f32.mrf.mxu0
    %1494 = vmatprep.mubr.bf16.mxu0 %v1363
    %1495 = vmatmul.mubr.bf16.gmra.mxu0 %v1362
    %v1496 = vpop.f32.mrf.mxu0
    %v1497 = vadd.f32 0.0, %v1496
    %v1498 = vpop.f32.mrf.mxu0
    %v1499 = vpop.f32.mrf.mxu0
    %v1500 = vadd.f32 0.0, %v1499
    %v1501 = vpop.f32.mrf.mxu0
    %1502 = vmatprep.mubr.bf16.mxu0 %v1366
    %1503 = vmatmul.mubr.bf16.gmra.mxu0 %v1365
    %v1504 = vpop.f32.mrf.mxu0
    %v1505 = vadd.f32 0.0, %v1504
    %v1506 = vpop.f32.mrf.mxu0
    %v1507 = vpop.f32.mrf.mxu0
    %v1508 = vadd.f32 0.0, %v1507
    %v1509 = vpop.f32.mrf.mxu0
    %1510 = vdwg.mxu0
    %1511 = vmatprep.subr.bf16.mxu0 0
    %1512 = vmatpush1.bf16.xpose.msra.mxu0 0
    %1513 = vmatprep.subr.bf16.mxu0 0
    %1514 = vmatpush1.bf16.xpose.msra.mxu0 0
    %1515 = vmatprep.subr.bf16.mxu0 0
    %1516 = vmatpush1.bf16.xpose.msra.mxu0 0
    %1517 = vmatprep.subr.bf16.mxu0 0
    %1518 = vmatpush1.bf16.xpose.msra.mxu0 0
    %1519 = vmatprep.subr.bf16.mxu0 0
    %1520 = vmatpush1.bf16.xpose.msra.mxu0 0
    %1521 = vmatprep.subr.bf16.mxu0 0
    %1522 = vmatpush1.bf16.xpose.msra.mxu0 0
    %1523 = vmatprep.subr.bf16.mxu0 0
    %1524 = vmatpush1.bf16.xpose.msra.mxu0 0
    %1525 = vmatprep.subr.bf16.mxu0 0
    %1526 = vmatpush1.bf16.xpose.msra.mxu0 %v544
    %1527 = vmatprep.subr.bf16.mxu0 0
    %1528 = vmatpush2.bf16.xpose.msra.mxu0 0
    %1529 = vmatprep.subr.bf16.mxu0 0
    %1530 = vmatpush2.bf16.xpose.msra.mxu0 0
    %1531 = vmatprep.subr.bf16.mxu0 0
    %1532 = vmatpush2.bf16.xpose.msra.mxu0 0
    %1533 = vmatprep.subr.bf16.mxu0 0
    %1534 = vmatpush2.bf16.xpose.msra.mxu0 0
    %1535 = vmatprep.subr.bf16.mxu0 0
    %1536 = vmatpush2.bf16.xpose.msra.mxu0 0
    %1537 = vmatprep.subr.bf16.mxu0 0
    %1538 = vmatpush2.bf16.xpose.msra.mxu0 0
    %1539 = vmatprep.subr.bf16.mxu0 0
    %1540 = vmatpush2.bf16.xpose.msra.mxu0 0
    %1541 = vmatprep.subr.bf16.mxu0 0
    %1542 = vmatpush2.bf16.xpose.msra.mxu0 0
    %1543 = vmatprep.mubr.bf16.mxu0 0
    %1544 = vmatmul.mubr.bf16.gmra.mxu0 %v1369
    %v1545 = vpop.f32.mrf.mxu0
    %v1546 = vadd.f32 %v1433, %v1545
    %v1547 = vpop.f32.mrf.mxu0
    %v1548 = vpop.f32.mrf.mxu0
    %v1549 = vadd.f32 %v1436, %v1548
    %v1550 = vpop.f32.mrf.mxu0
    %1551 = vmatprep.mubr.bf16.mxu0 0
    %1552 = vmatmul.mubr.bf16.gmra.mxu0 %v1372
    %v1553 = vpop.f32.mrf.mxu0
    %v1554 = vadd.f32 %v1441, %v1553
    %v1555 = vpop.f32.mrf.mxu0
    %v1556 = vpop.f32.mrf.mxu0
    %v1557 = vadd.f32 %v1444, %v1556
    %v1558 = vpop.f32.mrf.mxu0
    %1559 = vmatprep.mubr.bf16.mxu0 0
    %1560 = vmatmul.mubr.bf16.gmra.mxu0 %v1375
    %v1561 = vpop.f32.mrf.mxu0
    %v1562 = vadd.f32 %v1449, %v1561
    %v1563 = vpop.f32.mrf.mxu0
    %v1564 = vpop.f32.mrf.mxu0
    %v1565 = vadd.f32 %v1452, %v1564
    %v1566 = vpop.f32.mrf.mxu0
    %1567 = vmatprep.mubr.bf16.mxu0 0
    %1568 = vmatmul.mubr.bf16.gmra.mxu0 %v1378
    %v1569 = vpop.f32.mrf.mxu0
    %v1570 = vadd.f32 %v1457, %v1569
    %v1571 = vpop.f32.mrf.mxu0
    %v1572 = vpop.f32.mrf.mxu0
    %v1573 = vadd.f32 %v1460, %v1572
    %v1574 = vpop.f32.mrf.mxu0
    %1575 = vmatprep.mubr.bf16.mxu0 0
    %1576 = vmatmul.mubr.bf16.gmra.mxu0 %v1381
    %v1577 = vpop.f32.mrf.mxu0
    %v1578 = vadd.f32 %v1465, %v1577
    %v1579 = vpop.f32.mrf.mxu0
    %v1580 = vpop.f32.mrf.mxu0
    %v1581 = vadd.f32 %v1468, %v1580
    %v1582 = vpop.f32.mrf.mxu0
    %1583 = vmatprep.mubr.bf16.mxu0 0
    %1584 = vmatmul.mubr.bf16.gmra.mxu0 %v1384
    %v1585 = vpop.f32.mrf.mxu0
    %v1586 = vadd.f32 %v1473, %v1585
    %v1587 = vpop.f32.mrf.mxu0
    %v1588 = vpop.f32.mrf.mxu0
    %v1589 = vadd.f32 %v1476, %v1588
    %v1590 = vpop.f32.mrf.mxu0
    %1591 = vmatprep.mubr.bf16.mxu0 0
    %1592 = vmatmul.mubr.bf16.gmra.mxu0 %v1387
    %v1593 = vpop.f32.mrf.mxu0
    %v1594 = vadd.f32 %v1481, %v1593
    %v1595 = vpop.f32.mrf.mxu0
    %v1596 = vpop.f32.mrf.mxu0
    %v1597 = vadd.f32 %v1484, %v1596
    %v1598 = vpop.f32.mrf.mxu0
    %1599 = vmatprep.mubr.bf16.mxu0 0
    %1600 = vmatmul.mubr.bf16.gmra.mxu0 %v1390
    %v1601 = vpop.f32.mrf.mxu0
    %v1602 = vadd.f32 %v1489, %v1601
    %v1603 = vpop.f32.mrf.mxu0
    %v1604 = vpop.f32.mrf.mxu0
    %v1605 = vadd.f32 %v1492, %v1604
    %v1606 = vpop.f32.mrf.mxu0
    %1607 = vmatprep.mubr.bf16.mxu0 0
    %1608 = vmatmul.mubr.bf16.gmra.mxu0 %v1393
    %v1609 = vpop.f32.mrf.mxu0
    %v1610 = vadd.f32 %v1497, %v1609
    %v1611 = vpop.f32.mrf.mxu0
    %v1612 = vpop.f32.mrf.mxu0
    %v1613 = vadd.f32 %v1500, %v1612
    %v1614 = vpop.f32.mrf.mxu0
    %1615 = vmatprep.mubr.bf16.mxu0 0
    %1616 = vmatmul.mubr.bf16.gmra.mxu0 %v1396
    %v1617 = vpop.f32.mrf.mxu0
    %v1618 = vadd.f32 %v1505, %v1617
    %v1619 = vpop.f32.mrf.mxu0
    %v1620 = vpop.f32.mrf.mxu0
    %v1621 = vadd.f32 %v1508, %v1620
    %v1622 = vpop.f32.mrf.mxu0
    %1623 = vdwg.mxu0
    %v1624 = vpack.c.bf16 %v1549, %v1546
    %v1625 = vpack.c.bf16 %v1557, %v1554
    %v1626 = vpack.c.bf16 %v1565, %v1562
    %v1627 = vpack.c.bf16 %v1573, %v1570
    %v1628 = vpack.c.bf16 %v1581, %v1578
    %v1629 = vpack.c.bf16 %v1589, %v1586
    %v1630 = vpack.c.bf16 %v1597, %v1594
    %v1631 = vpack.c.bf16 %v1605, %v1602
    %v1632 = vpack.c.bf16 %v1613, %v1610
    %v1633 = vpack.c.bf16 %v1621, %v1618
    %v1634 = vadd.s32 %v242, 2
    %v1635 = vadd.s32 %v243, 2
    %v1636 = vadd.s32 %v244, 2
    %v1637 = vadd.s32 %v245, 2
    %v1638 = vadd.s32 %v246, 2
    %v1639 = vadd.s32 %v247, 2
    %v1640 = vadd.s32 %v248, 2
    %v1641 = vadd.s32 %v249, 2
    %v1642 = vadd.s32 %v250, 2
    %v1643 = vadd.s32 %v251, 2
    %v1644 = vadd.s32 %v252, 2
    %v1645 = vadd.s32 %v253, 2
    %v1646 = vadd.s32 %v254, 2
    %v1647 = vadd.s32 %v255, 2
    %v1648 = vadd.s32 %v256, 2
    %v1649 = vadd.s32 %v257, 2
    %v1650 = vadd.s32 %v258, 2
    %v1651 = vadd.s32 %v259, 2
    %v1652 = vadd.s32 %v260, 2
    %v1653 = vadd.s32 %v261, 2
    %vm1654 = vcmp.eq.s32.totalorder %v239, %v1634
    %vm1655 = vcmp.eq.s32.totalorder %v240, %v1634
    %vm1656 = vcmp.eq.s32.totalorder %v241, %v1634
    %vm1657 = vcmp.eq.s32.totalorder %v239, %v1635
    %vm1658 = vcmp.eq.s32.totalorder %v240, %v1635
    %vm1659 = vcmp.eq.s32.totalorder %v241, %v1635
    %vm1660 = vcmp.eq.s32.totalorder %v239, %v1636
    %vm1661 = vcmp.eq.s32.totalorder %v240, %v1636
    %vm1662 = vcmp.eq.s32.totalorder %v241, %v1636
    %vm1663 = vcmp.eq.s32.totalorder %v239, %v1637
    %vm1664 = vcmp.eq.s32.totalorder %v240, %v1637
    %vm1665 = vcmp.eq.s32.totalorder %v241, %v1637
    %vm1666 = vcmp.eq.s32.totalorder %v239, %v1638
    %vm1667 = vcmp.eq.s32.totalorder %v240, %v1638
    %vm1668 = vcmp.eq.s32.totalorder %v241, %v1638
    %vm1669 = vcmp.eq.s32.totalorder %v239, %v1639
    %vm1670 = vcmp.eq.s32.totalorder %v240, %v1639
    %vm1671 = vcmp.eq.s32.totalorder %v241, %v1639
    %vm1672 = vcmp.eq.s32.totalorder %v239, %v1640
    %vm1673 = vcmp.eq.s32.totalorder %v240, %v1640
    %vm1674 = vcmp.eq.s32.totalorder %v241, %v1640
    %vm1675 = vcmp.eq.s32.totalorder %v239, %v1641
    %vm1676 = vcmp.eq.s32.totalorder %v240, %v1641
    %vm1677 = vcmp.eq.s32.totalorder %v241, %v1641
    %vm1678 = vcmp.eq.s32.totalorder %v239, %v1642
    %vm1679 = vcmp.eq.s32.totalorder %v240, %v1642
    %vm1680 = vcmp.eq.s32.totalorder %v241, %v1642
    %vm1681 = vcmp.eq.s32.totalorder %v239, %v1643
    %vm1682 = vcmp.eq.s32.totalorder %v240, %v1643
    %vm1683 = vcmp.eq.s32.totalorder %v241, %v1643
    %vm1684 = vcmp.eq.s32.totalorder %v239, %v1644
    %vm1685 = vcmp.eq.s32.totalorder %v240, %v1644
    %vm1686 = vcmp.eq.s32.totalorder %v241, %v1644
    %vm1687 = vcmp.eq.s32.totalorder %v239, %v1645
    %vm1688 = vcmp.eq.s32.totalorder %v240, %v1645
    %vm1689 = vcmp.eq.s32.totalorder %v241, %v1645
    %vm1690 = vcmp.eq.s32.totalorder %v239, %v1646
    %vm1691 = vcmp.eq.s32.totalorder %v240, %v1646
    %vm1692 = vcmp.eq.s32.totalorder %v241, %v1646
    %vm1693 = vcmp.eq.s32.totalorder %v239, %v1647
    %vm1694 = vcmp.eq.s32.totalorder %v240, %v1647
    %vm1695 = vcmp.eq.s32.totalorder %v241, %v1647
    %vm1696 = vcmp.eq.s32.totalorder %v239, %v1648
    %vm1697 = vcmp.eq.s32.totalorder %v240, %v1648
    %vm1698 = vcmp.eq.s32.totalorder %v241, %v1648
    %vm1699 = vcmp.eq.s32.totalorder %v239, %v1649
    %vm1700 = vcmp.eq.s32.totalorder %v240, %v1649
    %vm1701 = vcmp.eq.s32.totalorder %v241, %v1649
    %vm1702 = vcmp.eq.s32.totalorder %v239, %v1650
    %vm1703 = vcmp.eq.s32.totalorder %v240, %v1650
    %vm1704 = vcmp.eq.s32.totalorder %v241, %v1650
    %vm1705 = vcmp.eq.s32.totalorder %v239, %v1651
    %vm1706 = vcmp.eq.s32.totalorder %v240, %v1651
    %vm1707 = vcmp.eq.s32.totalorder %v241, %v1651
    %vm1708 = vcmp.eq.s32.totalorder %v239, %v1652
    %vm1709 = vcmp.eq.s32.totalorder %v240, %v1652
    %vm1710 = vcmp.eq.s32.totalorder %v241, %v1652
    %vm1711 = vcmp.eq.s32.totalorder %v239, %v1653
    %vm1712 = vcmp.eq.s32.totalorder %v240, %v1653
    %vm1713 = vcmp.eq.s32.totalorder %v241, %v1653
    %vm1714 = vcmp.ne.s32.totalorder %v218, 79
    %vm1715 = vcmp.ne.s32.totalorder %v219, 79
    %vm1716 = vcmp.ne.s32.totalorder %v220, 79
    %vm1717 = vcmp.ne.s32.totalorder %v221, 79
    %vm1718 = vcmp.ne.s32.totalorder %v222, 79
    %vm1719 = vcmp.ne.s32.totalorder %v223, 79
    %vm1720 = vcmp.ne.s32.totalorder %v224, 79
    %vm1721 = vcmp.ne.s32.totalorder %v225, 79
    %vm1722 = vcmp.ne.s32.totalorder %v226, 79
    %vm1723 = vcmp.ne.s32.totalorder %v227, 79
    %vm1724 = vcmp.ne.s32.totalorder %v228, 79
    %vm1725 = vcmp.ne.s32.totalorder %v229, 79
    %vm1726 = vcmp.ne.s32.totalorder %v230, 79
    %vm1727 = vcmp.ne.s32.totalorder %v231, 79
    %vm1728 = vcmp.ne.s32.totalorder %v232, 79
    %vm1729 = vcmp.ne.s32.totalorder %v233, 79
    %vm1730 = vcmp.ne.s32.totalorder %v234, 79
    %vm1731 = vcmp.ne.s32.totalorder %v235, 79
    %vm1732 = vcmp.ne.s32.totalorder %v236, 79
    %vm1733 = vcmp.ne.s32.totalorder %v237, 79
    %vm1734 = vmand %vm1654, %vm1714
    %vm1735 = vmand %vm1655, %vm1714
    %vm1736 = vmand %vm1656, %vm1714
    %vm1737 = vmand %vm1657, %vm1715
    %vm1738 = vmand %vm1658, %vm1715
    %vm1739 = vmand %vm1659, %vm1715
    %vm1740 = vmand %vm1660, %vm1716
    %vm1741 = vmand %vm1661, %vm1716
    %vm1742 = vmand %vm1662, %vm1716
    %vm1743 = vmand %vm1663, %vm1717
    %vm1744 = vmand %vm1664, %vm1717
    %vm1745 = vmand %vm1665, %vm1717
    %vm1746 = vmand %vm1666, %vm1718
    %vm1747 = vmand %vm1667, %vm1718
    %vm1748 = vmand %vm1668, %vm1718
    %vm1749 = vmand %vm1669, %vm1719
    %vm1750 = vmand %vm1670, %vm1719
    %vm1751 = vmand %vm1671, %vm1719
    %vm1752 = vmand %vm1672, %vm1720
    %vm1753 = vmand %vm1673, %vm1720
    %vm1754 = vmand %vm1674, %vm1720
    %vm1755 = vmand %vm1675, %vm1721
    %vm1756 = vmand %vm1676, %vm1721
    %vm1757 = vmand %vm1677, %vm1721
    %vm1758 = vmand %vm1678, %vm1722
    %vm1759 = vmand %vm1679, %vm1722
    %vm1760 = vmand %vm1680, %vm1722
    %vm1761 = vmand %vm1681, %vm1723
    %vm1762 = vmand %vm1682, %vm1723
    %vm1763 = vmand %vm1683, %vm1723
    %vm1764 = vmand %vm1684, %vm1724
    %vm1765 = vmand %vm1685, %vm1724
    %vm1766 = vmand %vm1686, %vm1724
    %vm1767 = vmand %vm1687, %vm1725
    %vm1768 = vmand %vm1688, %vm1725
    %vm1769 = vmand %vm1689, %vm1725
    %vm1770 = vmand %vm1690, %vm1726
    %vm1771 = vmand %vm1691, %vm1726
    %vm1772 = vmand %vm1692, %vm1726
    %vm1773 = vmand %vm1693, %vm1727
    %vm1774 = vmand %vm1694, %vm1727
    %vm1775 = vmand %vm1695, %vm1727
    %vm1776 = vmand %vm1696, %vm1728
    %vm1777 = vmand %vm1697, %vm1728
    %vm1778 = vmand %vm1698, %vm1728
    %vm1779 = vmand %vm1699, %vm1729
    %vm1780 = vmand %vm1700, %vm1729
    %vm1781 = vmand %vm1701, %vm1729
    %vm1782 = vmand %vm1702, %vm1730
    %vm1783 = vmand %vm1703, %vm1730
    %vm1784 = vmand %vm1704, %vm1730
    %vm1785 = vmand %vm1705, %vm1731
    %vm1786 = vmand %vm1706, %vm1731
    %vm1787 = vmand %vm1707, %vm1731
    %vm1788 = vmand %vm1708, %vm1732
    %vm1789 = vmand %vm1709, %vm1732
    %vm1790 = vmand %vm1710, %vm1732
    %vm1791 = vmand %vm1711, %vm1733
    %vm1792 = vmand %vm1712, %vm1733
    %vm1793 = vmand %vm1713, %vm1733
    %v1794 = vsel %vm1734, 1.0, 0.0
    %v1795 = vsel %vm1735, 1.0, 0.0
    %v1796 = vsel %vm1736, 1.0, 0.0
    %v1797 = vsel %vm1737, 1.0, 0.0
    %v1798 = vsel %vm1738, 1.0, 0.0
    %v1799 = vsel %vm1739, 1.0, 0.0
    %v1800 = vsel %vm1740, 1.0, 0.0
    %v1801 = vsel %vm1741, 1.0, 0.0
    %v1802 = vsel %vm1742, 1.0, 0.0
    %v1803 = vsel %vm1743, 1.0, 0.0
    %v1804 = vsel %vm1744, 1.0, 0.0
    %v1805 = vsel %vm1745, 1.0, 0.0
    %v1806 = vsel %vm1746, 1.0, 0.0
    %v1807 = vsel %vm1747, 1.0, 0.0
    %v1808 = vsel %vm1748, 1.0, 0.0
    %v1809 = vsel %vm1749, 1.0, 0.0
    %v1810 = vsel %vm1750, 1.0, 0.0
    %v1811 = vsel %vm1751, 1.0, 0.0
    %v1812 = vsel %vm1752, 1.0, 0.0
    %v1813 = vsel %vm1753, 1.0, 0.0
    %v1814 = vsel %vm1754, 1.0, 0.0
    %v1815 = vsel %vm1755, 1.0, 0.0
    %v1816 = vsel %vm1756, 1.0, 0.0
    %v1817 = vsel %vm1757, 1.0, 0.0
    %v1818 = vsel %vm1758, 1.0, 0.0
    %v1819 = vsel %vm1759, 1.0, 0.0
    %v1820 = vsel %vm1760, 1.0, 0.0
    %v1821 = vsel %vm1761, 1.0, 0.0
    %v1822 = vsel %vm1762, 1.0, 0.0
    %v1823 = vsel %vm1763, 1.0, 0.0
    %v1824 = vsel %vm1764, 1.0, 0.0
    %v1825 = vsel %vm1765, 1.0, 0.0
    %v1826 = vsel %vm1766, 1.0, 0.0
    %v1827 = vsel %vm1767, 1.0, 0.0
    %v1828 = vsel %vm1768, 1.0, 0.0
    %v1829 = vsel %vm1769, 1.0, 0.0
    %v1830 = vsel %vm1770, 1.0, 0.0
    %v1831 = vsel %vm1771, 1.0, 0.0
    %v1832 = vsel %vm1772, 1.0, 0.0
    %v1833 = vsel %vm1773, 1.0, 0.0
    %v1834 = vsel %vm1774, 1.0, 0.0
    %v1835 = vsel %vm1775, 1.0, 0.0
    %v1836 = vsel %vm1776, 1.0, 0.0
    %v1837 = vsel %vm1777, 1.0, 0.0
    %v1838 = vsel %vm1778, 1.0, 0.0
    %v1839 = vsel %vm1779, 1.0, 0.0
    %v1840 = vsel %vm1780, 1.0, 0.0
    %v1841 = vsel %vm1781, 1.0, 0.0
    %v1842 = vsel %vm1782, 1.0, 0.0
    %v1843 = vsel %vm1783, 1.0, 0.0
    %v1844 = vsel %vm1784, 1.0, 0.0
    %v1845 = vsel %vm1785, 1.0, 0.0
    %v1846 = vsel %vm1786, 1.0, 0.0
    %v1847 = vsel %vm1787, 1.0, 0.0
    %v1848 = vsel %vm1788, 1.0, 0.0
    %v1849 = vsel %vm1789, 1.0, 0.0
    %v1850 = vsel %vm1790, 1.0, 0.0
    %v1851 = vsel %vm1791, 1.0, 0.0
    %v1852 = vsel %vm1792, 1.0, 0.0
    %v1853 = vsel %vm1793, 1.0, 0.0
    %v1854 = vpack.c.bf16 %v1797, %v1794
    %v1855 = vpack.c.bf16 %v1798, %v1795
    %v1856 = vpack.c.bf16 %v1799, %v1796
    %v1857 = vpack.c.bf16 %v1803, %v1800
    %v1858 = vpack.c.bf16 %v1804, %v1801
    %v1859 = vpack.c.bf16 %v1805, %v1802
    %v1860 = vpack.c.bf16 %v1809, %v1806
    %v1861 = vpack.c.bf16 %v1810, %v1807
    %v1862 = vpack.c.bf16 %v1811, %v1808
    %v1863 = vpack.c.bf16 %v1815, %v1812
    %v1864 = vpack.c.bf16 %v1816, %v1813
    %v1865 = vpack.c.bf16 %v1817, %v1814
    %v1866 = vpack.c.bf16 %v1821, %v1818
    %v1867 = vpack.c.bf16 %v1822, %v1819
    %v1868 = vpack.c.bf16 %v1823, %v1820
    %v1869 = vpack.c.bf16 %v1827, %v1824
    %v1870 = vpack.c.bf16 %v1828, %v1825
    %v1871 = vpack.c.bf16 %v1829, %v1826
    %v1872 = vpack.c.bf16 %v1833, %v1830
    %v1873 = vpack.c.bf16 %v1834, %v1831
    %v1874 = vpack.c.bf16 %v1835, %v1832
    %v1875 = vpack.c.bf16 %v1839, %v1836
    %v1876 = vpack.c.bf16 %v1840, %v1837
    %v1877 = vpack.c.bf16 %v1841, %v1838
    %v1878 = vpack.c.bf16 %v1845, %v1842
    %v1879 = vpack.c.bf16 %v1846, %v1843
    %v1880 = vpack.c.bf16 %v1847, %v1844
    %v1881 = vpack.c.bf16 %v1851, %v1848
    %v1882 = vpack.c.bf16 %v1852, %v1849
    %v1883 = vpack.c.bf16 %v1853, %v1850
    %v1885 = vsel %vm512, %v1856, 0
    %v1888 = vsel %vm512, %v1859, 0
    %v1891 = vsel %vm512, %v1862, 0
    %v1894 = vsel %vm512, %v1865, 0
    %v1897 = vsel %vm512, %v1868, 0
    %v1900 = vsel %vm512, %v1871, 0
    %v1903 = vsel %vm512, %v1874, 0
    %v1906 = vsel %vm512, %v1877, 0
    %v1909 = vsel %vm512, %v1880, 0
    %v1912 = vsel %vm512, %v1883, 0
    %1914 = vmatprep.subr.bf16.mxu0 0
    %1915 = vmatpush1.bf16.xpose.msra.mxu0 0
    %1916 = vmatprep.subr.bf16.mxu0 0
    %1917 = vmatpush1.bf16.xpose.msra.mxu0 0
    %1918 = vmatprep.subr.bf16.mxu0 0
    %1919 = vmatpush1.bf16.xpose.msra.mxu0 0
    %1920 = vmatprep.subr.bf16.mxu0 0
    %1921 = vmatpush1.bf16.xpose.msra.mxu0 0
    %1922 = vmatprep.subr.bf16.mxu0 0
    %1923 = vmatpush1.bf16.xpose.msra.mxu0 0
    %1924 = vmatprep.subr.bf16.mxu0 0
    %1925 = vmatpush1.bf16.xpose.msra.mxu0 0
    %1926 = vmatprep.subr.bf16.mxu0 0
    %1927 = vmatpush1.bf16.xpose.msra.mxu0 0
    %1928 = vmatprep.subr.bf16.mxu0 %v215
    %1929 = vmatpush1.bf16.xpose.msra.mxu0 %v214
    %1930 = vmatprep.subr.bf16.mxu0 0
    %1931 = vmatpush2.bf16.xpose.msra.mxu0 0
    %1932 = vmatprep.subr.bf16.mxu0 0
    %1933 = vmatpush2.bf16.xpose.msra.mxu0 0
    %1934 = vmatprep.subr.bf16.mxu0 0
    %1935 = vmatpush2.bf16.xpose.msra.mxu0 0
    %1936 = vmatprep.subr.bf16.mxu0 0
    %1937 = vmatpush2.bf16.xpose.msra.mxu0 0
    %1938 = vmatprep.subr.bf16.mxu0 0
    %1939 = vmatpush2.bf16.xpose.msra.mxu0 0
    %1940 = vmatprep.subr.bf16.mxu0 0
    %1941 = vmatpush2.bf16.xpose.msra.mxu0 0
    %1942 = vmatprep.subr.bf16.mxu0 0
    %1943 = vmatpush2.bf16.xpose.msra.mxu0 0
    %1944 = vmatprep.subr.bf16.mxu0 0
    %1945 = vmatpush2.bf16.xpose.msra.mxu0 0
    %1946 = vmatprep.mubr.bf16.mxu0 %v1855
    %1947 = vmatmul.mubr.bf16.gmra.mxu0 %v1854
    %v1948 = vpop.f32.mrf.mxu0
    %v1949 = vadd.f32 0.0, %v1948
    %v1950 = vpop.f32.mrf.mxu0
    %v1951 = vpop.f32.mrf.mxu0
    %v1952 = vadd.f32 0.0, %v1951
    %v1953 = vpop.f32.mrf.mxu0
    %1954 = vmatprep.mubr.bf16.mxu0 %v1858
    %1955 = vmatmul.mubr.bf16.gmra.mxu0 %v1857
    %v1956 = vpop.f32.mrf.mxu0
    %v1957 = vadd.f32 0.0, %v1956
    %v1958 = vpop.f32.mrf.mxu0
    %v1959 = vpop.f32.mrf.mxu0
    %v1960 = vadd.f32 0.0, %v1959
    %v1961 = vpop.f32.mrf.mxu0
    %1962 = vmatprep.mubr.bf16.mxu0 %v1861
    %1963 = vmatmul.mubr.bf16.gmra.mxu0 %v1860
    %v1964 = vpop.f32.mrf.mxu0
    %v1965 = vadd.f32 0.0, %v1964
    %v1966 = vpop.f32.mrf.mxu0
    %v1967 = vpop.f32.mrf.mxu0
    %v1968 = vadd.f32 0.0, %v1967
    %v1969 = vpop.f32.mrf.mxu0
    %1970 = vmatprep.mubr.bf16.mxu0 %v1864
    %1971 = vmatmul.mubr.bf16.gmra.mxu0 %v1863
    %v1972 = vpop.f32.mrf.mxu0
    %v1973 = vadd.f32 0.0, %v1972
    %v1974 = vpop.f32.mrf.mxu0
    %v1975 = vpop.f32.mrf.mxu0
    %v1976 = vadd.f32 0.0, %v1975
    %v1977 = vpop.f32.mrf.mxu0
    %1978 = vmatprep.mubr.bf16.mxu0 %v1867
    %1979 = vmatmul.mubr.bf16.gmra.mxu0 %v1866
    %v1980 = vpop.f32.mrf.mxu0
    %v1981 = vadd.f32 0.0, %v1980
    %v1982 = vpop.f32.mrf.mxu0
    %v1983 = vpop.f32.mrf.mxu0
    %v1984 = vadd.f32 0.0, %v1983
    %v1985 = vpop.f32.mrf.mxu0
    %1986 = vmatprep.mubr.bf16.mxu0 %v1870
    %1987 = vmatmul.mubr.bf16.gmra.mxu0 %v1869
    %v1988 = vpop.f32.mrf.mxu0
    %v1989 = vadd.f32 0.0, %v1988
    %v1990 = vpop.f32.mrf.mxu0
    %v1991 = vpop.f32.mrf.mxu0
    %v1992 = vadd.f32 0.0, %v1991
    %v1993 = vpop.f32.mrf.mxu0
    %1994 = vmatprep.mubr.bf16.mxu0 %v1873
    %1995 = vmatmul.mubr.bf16.gmra.mxu0 %v1872
    %v1996 = vpop.f32.mrf.mxu0
    %v1997 = vadd.f32 0.0, %v1996
    %v1998 = vpop.f32.mrf.mxu0
    %v1999 = vpop.f32.mrf.mxu0
    %v2000 = vadd.f32 0.0, %v1999
    %v2001 = vpop.f32.mrf.mxu0
    %2002 = vmatprep.mubr.bf16.mxu0 %v1876
    %2003 = vmatmul.mubr.bf16.gmra.mxu0 %v1875
    %v2004 = vpop.f32.mrf.mxu0
    %v2005 = vadd.f32 0.0, %v2004
    %v2006 = vpop.f32.mrf.mxu0
    %v2007 = vpop.f32.mrf.mxu0
    %v2008 = vadd.f32 0.0, %v2007
    %v2009 = vpop.f32.mrf.mxu0
    %2010 = vmatprep.mubr.bf16.mxu0 %v1879
    %2011 = vmatmul.mubr.bf16.gmra.mxu0 %v1878
    %v2012 = vpop.f32.mrf.mxu0
    %v2013 = vadd.f32 0.0, %v2012
    %v2014 = vpop.f32.mrf.mxu0
    %v2015 = vpop.f32.mrf.mxu0
    %v2016 = vadd.f32 0.0, %v2015
    %v2017 = vpop.f32.mrf.mxu0
    %2018 = vmatprep.mubr.bf16.mxu0 %v1882
    %2019 = vmatmul.mubr.bf16.gmra.mxu0 %v1881
    %v2020 = vpop.f32.mrf.mxu0
    %v2021 = vadd.f32 0.0, %v2020
    %v2022 = vpop.f32.mrf.mxu0
    %v2023 = vpop.f32.mrf.mxu0
    %v2024 = vadd.f32 0.0, %v2023
    %v2025 = vpop.f32.mrf.mxu0
    %2026 = vdwg.mxu0
    %2027 = vmatprep.subr.bf16.mxu0 0
    %2028 = vmatpush1.bf16.xpose.msra.mxu0 0
    %2029 = vmatprep.subr.bf16.mxu0 0
    %2030 = vmatpush1.bf16.xpose.msra.mxu0 0
    %2031 = vmatprep.subr.bf16.mxu0 0
    %2032 = vmatpush1.bf16.xpose.msra.mxu0 0
    %2033 = vmatprep.subr.bf16.mxu0 0
    %2034 = vmatpush1.bf16.xpose.msra.mxu0 0
    %2035 = vmatprep.subr.bf16.mxu0 0
    %2036 = vmatpush1.bf16.xpose.msra.mxu0 0
    %2037 = vmatprep.subr.bf16.mxu0 0
    %2038 = vmatpush1.bf16.xpose.msra.mxu0 0
    %2039 = vmatprep.subr.bf16.mxu0 0
    %2040 = vmatpush1.bf16.xpose.msra.mxu0 0
    %2041 = vmatprep.subr.bf16.mxu0 0
    %2042 = vmatpush1.bf16.xpose.msra.mxu0 %v544
    %2043 = vmatprep.subr.bf16.mxu0 0
    %2044 = vmatpush2.bf16.xpose.msra.mxu0 0
    %2045 = vmatprep.subr.bf16.mxu0 0
    %2046 = vmatpush2.bf16.xpose.msra.mxu0 0
    %2047 = vmatprep.subr.bf16.mxu0 0
    %2048 = vmatpush2.bf16.xpose.msra.mxu0 0
    %2049 = vmatprep.subr.bf16.mxu0 0
    %2050 = vmatpush2.bf16.xpose.msra.mxu0 0
    %2051 = vmatprep.subr.bf16.mxu0 0
    %2052 = vmatpush2.bf16.xpose.msra.mxu0 0
    %2053 = vmatprep.subr.bf16.mxu0 0
    %2054 = vmatpush2.bf16.xpose.msra.mxu0 0
    %2055 = vmatprep.subr.bf16.mxu0 0
    %2056 = vmatpush2.bf16.xpose.msra.mxu0 0
    %2057 = vmatprep.subr.bf16.mxu0 0
    %2058 = vmatpush2.bf16.xpose.msra.mxu0 0
    %2059 = vmatprep.mubr.bf16.mxu0 0
    %2060 = vmatmul.mubr.bf16.gmra.mxu0 %v1885
    %v2061 = vpop.f32.mrf.mxu0
    %v2062 = vadd.f32 %v1949, %v2061
    %v2063 = vpop.f32.mrf.mxu0
    %v2064 = vpop.f32.mrf.mxu0
    %v2065 = vadd.f32 %v1952, %v2064
    %v2066 = vpop.f32.mrf.mxu0
    %2067 = vmatprep.mubr.bf16.mxu0 0
    %2068 = vmatmul.mubr.bf16.gmra.mxu0 %v1888
    %v2069 = vpop.f32.mrf.mxu0
    %v2070 = vadd.f32 %v1957, %v2069
    %v2071 = vpop.f32.mrf.mxu0
    %v2072 = vpop.f32.mrf.mxu0
    %v2073 = vadd.f32 %v1960, %v2072
    %v2074 = vpop.f32.mrf.mxu0
    %2075 = vmatprep.mubr.bf16.mxu0 0
    %2076 = vmatmul.mubr.bf16.gmra.mxu0 %v1891
    %v2077 = vpop.f32.mrf.mxu0
    %v2078 = vadd.f32 %v1965, %v2077
    %v2079 = vpop.f32.mrf.mxu0
    %v2080 = vpop.f32.mrf.mxu0
    %v2081 = vadd.f32 %v1968, %v2080
    %v2082 = vpop.f32.mrf.mxu0
    %2083 = vmatprep.mubr.bf16.mxu0 0
    %2084 = vmatmul.mubr.bf16.gmra.mxu0 %v1894
    %v2085 = vpop.f32.mrf.mxu0
    %v2086 = vadd.f32 %v1973, %v2085
    %v2087 = vpop.f32.mrf.mxu0
    %v2088 = vpop.f32.mrf.mxu0
    %v2089 = vadd.f32 %v1976, %v2088
    %v2090 = vpop.f32.mrf.mxu0
    %2091 = vmatprep.mubr.bf16.mxu0 0
    %2092 = vmatmul.mubr.bf16.gmra.mxu0 %v1897
    %v2093 = vpop.f32.mrf.mxu0
    %v2094 = vadd.f32 %v1981, %v2093
    %v2095 = vpop.f32.mrf.mxu0
    %v2096 = vpop.f32.mrf.mxu0
    %v2097 = vadd.f32 %v1984, %v2096
    %v2098 = vpop.f32.mrf.mxu0
    %2099 = vmatprep.mubr.bf16.mxu0 0
    %2100 = vmatmul.mubr.bf16.gmra.mxu0 %v1900
    %v2101 = vpop.f32.mrf.mxu0
    %v2102 = vadd.f32 %v1989, %v2101
    %v2103 = vpop.f32.mrf.mxu0
    %v2104 = vpop.f32.mrf.mxu0
    %v2105 = vadd.f32 %v1992, %v2104
    %v2106 = vpop.f32.mrf.mxu0
    %2107 = vmatprep.mubr.bf16.mxu0 0
    %2108 = vmatmul.mubr.bf16.gmra.mxu0 %v1903
    %v2109 = vpop.f32.mrf.mxu0
    %v2110 = vadd.f32 %v1997, %v2109
    %v2111 = vpop.f32.mrf.mxu0
    %v2112 = vpop.f32.mrf.mxu0
    %v2113 = vadd.f32 %v2000, %v2112
    %v2114 = vpop.f32.mrf.mxu0
    %2115 = vmatprep.mubr.bf16.mxu0 0
    %2116 = vmatmul.mubr.bf16.gmra.mxu0 %v1906
    %v2117 = vpop.f32.mrf.mxu0
    %v2118 = vadd.f32 %v2005, %v2117
    %v2119 = vpop.f32.mrf.mxu0
    %v2120 = vpop.f32.mrf.mxu0
    %v2121 = vadd.f32 %v2008, %v2120
    %v2122 = vpop.f32.mrf.mxu0
    %2123 = vmatprep.mubr.bf16.mxu0 0
    %2124 = vmatmul.mubr.bf16.gmra.mxu0 %v1909
    %v2125 = vpop.f32.mrf.mxu0
    %v2126 = vadd.f32 %v2013, %v2125
    %v2127 = vpop.f32.mrf.mxu0
    %v2128 = vpop.f32.mrf.mxu0
    %v2129 = vadd.f32 %v2016, %v2128
    %v2130 = vpop.f32.mrf.mxu0
    %2131 = vmatprep.mubr.bf16.mxu0 0
    %2132 = vmatmul.mubr.bf16.gmra.mxu0 %v1912
    %v2133 = vpop.f32.mrf.mxu0
    %v2134 = vadd.f32 %v2021, %v2133
    %v2135 = vpop.f32.mrf.mxu0
    %v2136 = vpop.f32.mrf.mxu0
    %v2137 = vadd.f32 %v2024, %v2136
    %v2138 = vpop.f32.mrf.mxu0
    %2139 = vdwg.mxu0
    %v2140 = vpack.c.bf16 %v2065, %v2062
    %v2141 = vpack.c.bf16 %v2073, %v2070
    %v2142 = vpack.c.bf16 %v2081, %v2078
    %v2143 = vpack.c.bf16 %v2089, %v2086
    %v2144 = vpack.c.bf16 %v2097, %v2094
    %v2145 = vpack.c.bf16 %v2105, %v2102
    %v2146 = vpack.c.bf16 %v2113, %v2110
    %v2147 = vpack.c.bf16 %v2121, %v2118
    %v2148 = vpack.c.bf16 %v2129, %v2126
    %v2149 = vpack.c.bf16 %v2137, %v2134
    %2160 = vrot.lane.b32.xlu0 %v1188, 16
    %v2161 = vpop.permute.xlu0 %2160
    %2162 = vrot.lane.b32.xlu0 %v1189, 16
    %v2163 = vpop.permute.xlu0 %2162
    %2164 = vrot.lane.b32.xlu0 %v1190, 16
    %v2165 = vpop.permute.xlu0 %2164
    %2166 = vrot.lane.b32.xlu0 %v1191, 16
    %v2167 = vpop.permute.xlu0 %2166
    %2168 = vrot.lane.b32.xlu0 %v1192, 16
    %v2169 = vpop.permute.xlu0 %2168
    %2170 = vrot.lane.b32.xlu0 %v1193, 16
    %v2171 = vpop.permute.xlu0 %2170
    %2172 = vrot.lane.b32.xlu0 %v1194, 16
    %v2173 = vpop.permute.xlu0 %2172
    %2174 = vrot.lane.b32.xlu0 %v1195, 16
    %v2175 = vpop.permute.xlu0 %2174
    %2176 = vrot.lane.b32.xlu0 %v1196, 16
    %v2177 = vpop.permute.xlu0 %2176
    %2178 = vrot.lane.b32.xlu0 %v1197, 16
    %v2179 = vpop.permute.xlu0 %2178
    %2190 = vrot.lane.b32.xlu0 %v1624, 32
    %v2191 = vpop.permute.xlu0 %2190
    %2192 = vrot.lane.b32.xlu0 %v1625, 32
    %v2193 = vpop.permute.xlu0 %2192
    %2194 = vrot.lane.b32.xlu0 %v1626, 32
    %v2195 = vpop.permute.xlu0 %2194
    %2196 = vrot.lane.b32.xlu0 %v1627, 32
    %v2197 = vpop.permute.xlu0 %2196
    %2198 = vrot.lane.b32.xlu0 %v1628, 32
    %v2199 = vpop.permute.xlu0 %2198
    %2200 = vrot.lane.b32.xlu0 %v1629, 32
    %v2201 = vpop.permute.xlu0 %2200
    %2202 = vrot.lane.b32.xlu0 %v1630, 32
    %v2203 = vpop.permute.xlu0 %2202
    %2204 = vrot.lane.b32.xlu0 %v1631, 32
    %v2205 = vpop.permute.xlu0 %2204
    %2206 = vrot.lane.b32.xlu0 %v1632, 32
    %v2207 = vpop.permute.xlu0 %2206
    %2208 = vrot.lane.b32.xlu0 %v1633, 32
    %v2209 = vpop.permute.xlu0 %2208
    %2220 = vrot.lane.b32.xlu0 %v2140, 48
    %v2221 = vpop.permute.xlu0 %2220
    %2222 = vrot.lane.b32.xlu0 %v2141, 48
    %v2223 = vpop.permute.xlu0 %2222
    %2224 = vrot.lane.b32.xlu0 %v2142, 48
    %v2225 = vpop.permute.xlu0 %2224
    %2226 = vrot.lane.b32.xlu0 %v2143, 48
    %v2227 = vpop.permute.xlu0 %2226
    %2228 = vrot.lane.b32.xlu0 %v2144, 48
    %v2229 = vpop.permute.xlu0 %2228
    %2230 = vrot.lane.b32.xlu0 %v2145, 48
    %v2231 = vpop.permute.xlu0 %2230
    %2232 = vrot.lane.b32.xlu0 %v2146, 48
    %v2233 = vpop.permute.xlu0 %2232
    %2234 = vrot.lane.b32.xlu0 %v2147, 48
    %v2235 = vpop.permute.xlu0 %2234
    %2236 = vrot.lane.b32.xlu0 %v2148, 48
    %v2237 = vpop.permute.xlu0 %2236
    %2238 = vrot.lane.b32.xlu0 %v2149, 48
    %v2239 = vpop.permute.xlu0 %2238
    %vm2240 = vcmask 130048
    %v2243 = vsel %vm2240, %v772, %v2161
    %v2246 = vsel %vm2240, %v773, %v2163
    %v2249 = vsel %vm2240, %v774, %v2165
    %v2252 = vsel %vm2240, %v775, %v2167
    %v2255 = vsel %vm2240, %v776, %v2169
    %v2258 = vsel %vm2240, %v777, %v2171
    %v2261 = vsel %vm2240, %v778, %v2173
    %v2264 = vsel %vm2240, %v779, %v2175
    %v2267 = vsel %vm2240, %v780, %v2177
    %v2270 = vsel %vm2240, %v781, %v2179
    %vm2271 = vcmask 261120
    %v2273 = vsel %vm2271, %v2243, %v2191
    %v2275 = vsel %vm2271, %v2246, %v2193
    %v2277 = vsel %vm2271, %v2249, %v2195
    %v2279 = vsel %vm2271, %v2252, %v2197
    %v2281 = vsel %vm2271, %v2255, %v2199
    %v2283 = vsel %vm2271, %v2258, %v2201
    %v2285 = vsel %vm2271, %v2261, %v2203
    %v2287 = vsel %vm2271, %v2264, %v2205
    %v2289 = vsel %vm2271, %v2267, %v2207
    %v2291 = vsel %vm2271, %v2270, %v2209
    %vm2292 = vcmask 392192
    %v2294 = vsel %vm2292, %v2273, %v2221
    %v2296 = vsel %vm2292, %v2275, %v2223
    %v2298 = vsel %vm2292, %v2277, %v2225
    %v2300 = vsel %vm2292, %v2279, %v2227
    %v2302 = vsel %vm2292, %v2281, %v2229
    %v2304 = vsel %vm2292, %v2283, %v2231
    %v2306 = vsel %vm2292, %v2285, %v2233
    %v2308 = vsel %vm2292, %v2287, %v2235
    %v2310 = vsel %vm2292, %v2289, %v2237
    %v2312 = vsel %vm2292, %v2291, %v2239
    %v2313 = vld [vmem:[#allocation2] sm:$0xf]
    %v2314 = vld [vmem:[#allocation2 + $0x4] sm:$0xf]
    %v2315 = vld [vmem:[#allocation2 + $0x8] sm:$0xf]
    %v2316 = vld [vmem:[#allocation2 + $0xc] sm:$0xf]
    %v2317 = vld [vmem:[#allocation2 + $0x10] sm:$0xf]
    %v2318 = vld [vmem:[#allocation2 + $0x14] sm:$0xf]
    %v2319 = vld [vmem:[#allocation2 + $0x18] sm:$0xf]
    %v2320 = vld [vmem:[#allocation2 + $0x1c] sm:$0xf]
    %v2329 = vunpack.c.l.b16 %v2313
    %v2330 = vunpack.c.l.b16 %v2314
    %v2331 = vunpack.c.l.b16 %v2315
    %v2332 = vunpack.c.l.b16 %v2316
    %v2333 = vunpack.c.l.b16 %v2317
    %v2334 = vunpack.c.l.b16 %v2318
    %v2335 = vunpack.c.l.b16 %v2319
    %v2336 = vunpack.c.l.b16 %v2320
    %v2337 = vpack.c.b16 %v2330, %v2329
    %v2338 = vpack.c.b16 %v2332, %v2331
    %v2339 = vpack.c.b16 %v2334, %v2333
    %v2340 = vpack.c.b16 %v2336, %v2335
    %v2345 = vsel %vm512, %v2294, 0
    %v2347 = vsel %vm512, %v2296, 0
    %v2349 = vsel %vm512, %v2298, 0
    %v2351 = vsel %vm512, %v2300, 0
    %v2353 = vsel %vm512, %v2302, 0
    %v2355 = vsel %vm512, %v2304, 0
    %v2357 = vsel %vm512, %v2306, 0
    %v2359 = vsel %vm512, %v2308, 0
    %v2361 = vsel %vm512, %v2310, 0
    %v2363 = vsel %vm512, %v2312, 0
    %2365 = vmatprep.subr.bf16.mxu0 0
    %2366 = vmatpush1.bf16.msra.mxu0 0
    %2367 = vmatprep.subr.bf16.mxu0 0
    %2368 = vmatpush1.bf16.msra.mxu0 0
    %2369 = vmatprep.subr.bf16.mxu0 0
    %2370 = vmatpush1.bf16.msra.mxu0 0
    %2371 = vmatprep.subr.bf16.mxu0 0
    %2372 = vmatpush1.bf16.msra.mxu0 0
    %2373 = vmatprep.subr.bf16.mxu0 0
    %2374 = vmatpush1.bf16.msra.mxu0 %v2340
    %2375 = vmatprep.subr.bf16.mxu0 0
    %2376 = vmatpush1.bf16.msra.mxu0 %v2339
    %2377 = vmatprep.subr.bf16.mxu0 0
    %2378 = vmatpush1.bf16.msra.mxu0 %v2338
    %2379 = vmatprep.subr.bf16.mxu0 0
    %2380 = vmatpush1.bf16.msra.mxu0 %v2337
    %2381 = vmatprep.subr.bf16.mxu0 0
    %2382 = vmatpush2.bf16.msra.mxu0 0
    %2383 = vmatprep.subr.bf16.mxu0 0
    %2384 = vmatpush2.bf16.msra.mxu0 0
    %2385 = vmatprep.subr.bf16.mxu0 0
    %2386 = vmatpush2.bf16.msra.mxu0 0
    %2387 = vmatprep.subr.bf16.mxu0 0
    %2388 = vmatpush2.bf16.msra.mxu0 0
    %2389 = vmatprep.subr.bf16.mxu0 0
    %2390 = vmatpush2.bf16.msra.mxu0 0
    %2391 = vmatprep.subr.bf16.mxu0 0
    %2392 = vmatpush2.bf16.msra.mxu0 0
    %2393 = vmatprep.subr.bf16.mxu0 0
    %2394 = vmatpush2.bf16.msra.mxu0 0
    %2395 = vmatprep.subr.bf16.mxu0 0
    %2396 = vmatpush2.bf16.msra.mxu0 0
    %2397 = vmatprep.mubr.bf16.mxu0 0
    %2398 = vmatmul.mubr.bf16.gmra.mxu0 %v2345
    %v2399 = vpop.f32.mrf.mxu0
    %v2400 = vadd.f32 0.0, %v2399
    %v2401 = vpop.f32.mrf.mxu0
    %v2402 = vpop.f32.mrf.mxu0
    %v2403 = vadd.f32 0.0, %v2402
    %v2404 = vpop.f32.mrf.mxu0
    %2405 = vmatprep.mubr.bf16.mxu0 0
    %2406 = vmatmul.mubr.bf16.gmra.mxu0 %v2347
    %v2407 = vpop.f32.mrf.mxu0
    %v2408 = vadd.f32 0.0, %v2407
    %v2409 = vpop.f32.mrf.mxu0
    %v2410 = vpop.f32.mrf.mxu0
    %v2411 = vadd.f32 0.0, %v2410
    %v2412 = vpop.f32.mrf.mxu0
    %2413 = vmatprep.mubr.bf16.mxu0 0
    %2414 = vmatmul.mubr.bf16.gmra.mxu0 %v2349
    %v2415 = vpop.f32.mrf.mxu0
    %v2416 = vadd.f32 0.0, %v2415
    %v2417 = vpop.f32.mrf.mxu0
    %v2418 = vpop.f32.mrf.mxu0
    %v2419 = vadd.f32 0.0, %v2418
    %v2420 = vpop.f32.mrf.mxu0
    %2421 = vmatprep.mubr.bf16.mxu0 0
    %2422 = vmatmul.mubr.bf16.gmra.mxu0 %v2351
    %v2423 = vpop.f32.mrf.mxu0
    %v2424 = vadd.f32 0.0, %v2423
    %v2425 = vpop.f32.mrf.mxu0
    %v2426 = vpop.f32.mrf.mxu0
    %v2427 = vadd.f32 0.0, %v2426
    %v2428 = vpop.f32.mrf.mxu0
    %2429 = vmatprep.mubr.bf16.mxu0 0
    %2430 = vmatmul.mubr.bf16.gmra.mxu0 %v2353
    %v2431 = vpop.f32.mrf.mxu0
    %v2432 = vadd.f32 0.0, %v2431
    %v2433 = vpop.f32.mrf.mxu0
    %v2434 = vpop.f32.mrf.mxu0
    %v2435 = vadd.f32 0.0, %v2434
    %v2436 = vpop.f32.mrf.mxu0
    %2437 = vmatprep.mubr.bf16.mxu0 0
    %2438 = vmatmul.mubr.bf16.gmra.mxu0 %v2355
    %v2439 = vpop.f32.mrf.mxu0
    %v2440 = vadd.f32 0.0, %v2439
    %v2441 = vpop.f32.mrf.mxu0
    %v2442 = vpop.f32.mrf.mxu0
    %v2443 = vadd.f32 0.0, %v2442
    %v2444 = vpop.f32.mrf.mxu0
    %2445 = vmatprep.mubr.bf16.mxu0 0
    %2446 = vmatmul.mubr.bf16.gmra.mxu0 %v2357
    %v2447 = vpop.f32.mrf.mxu0
    %v2448 = vadd.f32 0.0, %v2447
    %v2449 = vpop.f32.mrf.mxu0
    %v2450 = vpop.f32.mrf.mxu0
    %v2451 = vadd.f32 0.0, %v2450
    %v2452 = vpop.f32.mrf.mxu0
    %2453 = vmatprep.mubr.bf16.mxu0 0
    %2454 = vmatmul.mubr.bf16.gmra.mxu0 %v2359
    %v2455 = vpop.f32.mrf.mxu0
    %v2456 = vadd.f32 0.0, %v2455
    %v2457 = vpop.f32.mrf.mxu0
    %v2458 = vpop.f32.mrf.mxu0
    %v2459 = vadd.f32 0.0, %v2458
    %v2460 = vpop.f32.mrf.mxu0
    %2461 = vmatprep.mubr.bf16.mxu0 0
    %2462 = vmatmul.mubr.bf16.gmra.mxu0 %v2361
    %v2463 = vpop.f32.mrf.mxu0
    %v2464 = vadd.f32 0.0, %v2463
    %v2465 = vpop.f32.mrf.mxu0
    %v2466 = vpop.f32.mrf.mxu0
    %v2467 = vadd.f32 0.0, %v2466
    %v2468 = vpop.f32.mrf.mxu0
    %2469 = vmatprep.mubr.bf16.mxu0 0
    %2470 = vmatmul.mubr.bf16.gmra.mxu0 %v2363
    %v2471 = vpop.f32.mrf.mxu0
    %v2472 = vadd.f32 0.0, %v2471
    %v2473 = vpop.f32.mrf.mxu0
    %v2474 = vpop.f32.mrf.mxu0
    %v2475 = vadd.f32 0.0, %v2474
    %v2476 = vpop.f32.mrf.mxu0
    %2477 = vdwg.mxu0
    %v2478 = vld [vmem:[%s7] ss:$0 sm:$0xff]
    %v2479 = vld [vmem:[%s7 + $0x1] ss:$0 sm:$0xff]
    %v2480 = vsel %vm2271, %v2400, 0.0
    %v2481 = vsel %vm2271, %v2403, 0.0
    %v2482 = vadd.f32 %v2480, %v2481
    %v2483 = vsel %vm2271, %v2408, 0.0
    %v2484 = vadd.f32 %v2482, %v2483
    %v2485 = vsel %vm2271, %v2411, 0.0
    %v2486 = vadd.f32 %v2484, %v2485
    %v2487 = vsel %vm2271, %v2416, 0.0
    %v2488 = vadd.f32 %v2486, %v2487
    %v2489 = vsel %vm2271, %v2419, 0.0
    %v2490 = vadd.f32 %v2488, %v2489
    %v2491 = vsel %vm2271, %v2424, 0.0
    %v2492 = vadd.f32 %v2490, %v2491
    %v2493 = vsel %vm2271, %v2427, 0.0
    %v2494 = vadd.f32 %v2492, %v2493
    %v2495 = vsel %vm2271, %v2432, 0.0
    %v2496 = vadd.f32 %v2494, %v2495
    %v2497 = vsel %vm2271, %v2435, 0.0
    %v2498 = vadd.f32 %v2496, %v2497
    %v2499 = vsel %vm2271, %v2440, 0.0
    %v2500 = vadd.f32 %v2498, %v2499
    %v2501 = vsel %vm2271, %v2443, 0.0
    %v2502 = vadd.f32 %v2500, %v2501
    %v2503 = vsel %vm2271, %v2448, 0.0
    %v2504 = vadd.f32 %v2502, %v2503
    %v2505 = vsel %vm2271, %v2451, 0.0
    %v2506 = vadd.f32 %v2504, %v2505
    %v2507 = vsel %vm2271, %v2456, 0.0
    %v2508 = vadd.f32 %v2506, %v2507
    %v2509 = vsel %vm2271, %v2459, 0.0
    %v2510 = vadd.f32 %v2508, %v2509
    %v2511 = vsel %vm2271, %v2464, 0.0
    %v2512 = vadd.f32 %v2510, %v2511
    %v2513 = vsel %vm2271, %v2467, 0.0
    %v2514 = vadd.f32 %v2512, %v2513
    %v2515 = vsel %vm2271, %v2472, 0.0
    %v2516 = vadd.f32 %v2514, %v2515
    %v2517 = vsel %vm2271, %v2475, 0.0
    %v2518 = vadd.f32 %v2516, %v2517
    %v2519 = vrot.slane %v2518, 4
    %v2520 = vadd.f32 %v2518, %v2519
    %v2521 = vrot.slane %v2520, 2
    %v2522 = vadd.f32 %v2520, %v2521
    %v2523 = vrot.slane %v2522, 1
    %v2524 = vadd.f32 %v2522, %v2523
    %v2525 = vmul.f32 %v2524, 0.00625
    %v2526 = vsub.f32 %v2400, %v2525
    %v2527 = vsub.f32 %v2403, %v2525
    %v2528 = vsub.f32 %v2408, %v2525
    %v2529 = vsub.f32 %v2411, %v2525
    %v2530 = vsub.f32 %v2416, %v2525
    %v2531 = vsub.f32 %v2419, %v2525
    %v2532 = vsub.f32 %v2424, %v2525
    %v2533 = vsub.f32 %v2427, %v2525
    %v2534 = vsub.f32 %v2432, %v2525
    %v2535 = vsub.f32 %v2435, %v2525
    %v2536 = vsub.f32 %v2440, %v2525
    %v2537 = vsub.f32 %v2443, %v2525
    %v2538 = vsub.f32 %v2448, %v2525
    %v2539 = vsub.f32 %v2451, %v2525
    %v2540 = vsub.f32 %v2456, %v2525
    %v2541 = vsub.f32 %v2459, %v2525
    %v2542 = vsub.f32 %v2464, %v2525
    %v2543 = vsub.f32 %v2467, %v2525
    %v2544 = vsub.f32 %v2472, %v2525
    %v2545 = vsub.f32 %v2475, %v2525
    %v2546 = vmul.f32 %v2526, %v2526
    %v2547 = vmul.f32 %v2527, %v2527
    %v2548 = vmul.f32 %v2528, %v2528
    %v2549 = vmul.f32 %v2529, %v2529
    %v2550 = vmul.f32 %v2530, %v2530
    %v2551 = vmul.f32 %v2531, %v2531
    %v2552 = vmul.f32 %v2532, %v2532
    %v2553 = vmul.f32 %v2533, %v2533
    %v2554 = vmul.f32 %v2534, %v2534
    %v2555 = vmul.f32 %v2535, %v2535
    %v2556 = vmul.f32 %v2536, %v2536
    %v2557 = vmul.f32 %v2537, %v2537
    %v2558 = vmul.f32 %v2538, %v2538
    %v2559 = vmul.f32 %v2539, %v2539
    %v2560 = vmul.f32 %v2540, %v2540
    %v2561 = vmul.f32 %v2541, %v2541
    %v2562 = vmul.f32 %v2542, %v2542
    %v2563 = vmul.f32 %v2543, %v2543
    %v2564 = vmul.f32 %v2544, %v2544
    %v2565 = vmul.f32 %v2545, %v2545
    %v2566 = vsel %vm2271, %v2546, 0.0
    %v2567 = vsel %vm2271, %v2547, 0.0
    %v2568 = vadd.f32 %v2566, %v2567
    %v2569 = vsel %vm2271, %v2548, 0.0
    %v2570 = vadd.f32 %v2568, %v2569
    %v2571 = vsel %vm2271, %v2549, 0.0
    %v2572 = vadd.f32 %v2570, %v2571
    %v2573 = vsel %vm2271, %v2550, 0.0
    %v2574 = vadd.f32 %v2572, %v2573
    %v2575 = vsel %vm2271, %v2551, 0.0
    %v2576 = vadd.f32 %v2574, %v2575
    %v2577 = vsel %vm2271, %v2552, 0.0
    %v2578 = vadd.f32 %v2576, %v2577
    %v2579 = vsel %vm2271, %v2553, 0.0
    %v2580 = vadd.f32 %v2578, %v2579
    %v2581 = vsel %vm2271, %v2554, 0.0
    %v2582 = vadd.f32 %v2580, %v2581
    %v2583 = vsel %vm2271, %v2555, 0.0
    %v2584 = vadd.f32 %v2582, %v2583
    %v2585 = vsel %vm2271, %v2556, 0.0
    %v2586 = vadd.f32 %v2584, %v2585
    %v2587 = vsel %vm2271, %v2557, 0.0
    %v2588 = vadd.f32 %v2586, %v2587
    %v2589 = vsel %vm2271, %v2558, 0.0
    %v2590 = vadd.f32 %v2588, %v2589
    %v2591 = vsel %vm2271, %v2559, 0.0
    %v2592 = vadd.f32 %v2590, %v2591
    %v2593 = vsel %vm2271, %v2560, 0.0
    %v2594 = vadd.f32 %v2592, %v2593
    %v2595 = vsel %vm2271, %v2561, 0.0
    %v2596 = vadd.f32 %v2594, %v2595
    %v2597 = vsel %vm2271, %v2562, 0.0
    %v2598 = vadd.f32 %v2596, %v2597
    %v2599 = vsel %vm2271, %v2563, 0.0
    %v2600 = vadd.f32 %v2598, %v2599
    %v2601 = vsel %vm2271, %v2564, 0.0
    %v2602 = vadd.f32 %v2600, %v2601
    %v2603 = vsel %vm2271, %v2565, 0.0
    %v2604 = vadd.f32 %v2602, %v2603
    %v2605 = vrot.slane %v2604, 4
    %v2606 = vadd.f32 %v2604, %v2605
    %v2607 = vrot.slane %v2606, 2
    %v2608 = vadd.f32 %v2606, %v2607
    %v2609 = vrot.slane %v2608, 1
    %v2610 = vadd.f32 %v2608, %v2609
    %v2611 = vmul.f32 %v2610, 0.00625
    %v2612 = vadd.f32 %v2611, 1e-05
    %v2613 = vrsqrt.pop %v2612
    %v2614 = vmul.f32 %v2526, %v2613
    %v2615 = vmul.f32 %v2527, %v2613
    %v2616 = vmul.f32 %v2528, %v2613
    %v2617 = vmul.f32 %v2529, %v2613
    %v2618 = vmul.f32 %v2530, %v2613
    %v2619 = vmul.f32 %v2531, %v2613
    %v2620 = vmul.f32 %v2532, %v2613
    %v2621 = vmul.f32 %v2533, %v2613
    %v2622 = vmul.f32 %v2534, %v2613
    %v2623 = vmul.f32 %v2535, %v2613
    %v2624 = vmul.f32 %v2536, %v2613
    %v2625 = vmul.f32 %v2537, %v2613
    %v2626 = vmul.f32 %v2538, %v2613
    %v2627 = vmul.f32 %v2539, %v2613
    %v2628 = vmul.f32 %v2540, %v2613
    %v2629 = vmul.f32 %v2541, %v2613
    %v2630 = vmul.f32 %v2542, %v2613
    %v2631 = vmul.f32 %v2543, %v2613
    %v2632 = vmul.f32 %v2544, %v2613
    %v2633 = vmul.f32 %v2545, %v2613
    %v2634 = vmul.f32 %v2614, %v2478
    %v2635 = vmul.f32 %v2615, %v2478
    %v2636 = vmul.f32 %v2616, %v2478
    %v2637 = vmul.f32 %v2617, %v2478
    %v2638 = vmul.f32 %v2618, %v2478
    %v2639 = vmul.f32 %v2619, %v2478
    %v2640 = vmul.f32 %v2620, %v2478
    %v2641 = vmul.f32 %v2621, %v2478
    %v2642 = vmul.f32 %v2622, %v2478
    %v2643 = vmul.f32 %v2623, %v2478
    %v2644 = vmul.f32 %v2624, %v2478
    %v2645 = vmul.f32 %v2625, %v2478
    %v2646 = vmul.f32 %v2626, %v2478
    %v2647 = vmul.f32 %v2627, %v2478
    %v2648 = vmul.f32 %v2628, %v2478
    %v2649 = vmul.f32 %v2629, %v2478
    %v2650 = vmul.f32 %v2630, %v2478
    %v2651 = vmul.f32 %v2631, %v2478
    %v2652 = vmul.f32 %v2632, %v2478
    %v2653 = vmul.f32 %v2633, %v2478
    %v2654 = vadd.f32 %v2634, %v2479
    %v2655 = vadd.f32 %v2635, %v2479
    %v2656 = vadd.f32 %v2636, %v2479
    %v2657 = vadd.f32 %v2637, %v2479
    %v2658 = vadd.f32 %v2638, %v2479
    %v2659 = vadd.f32 %v2639, %v2479
    %v2660 = vadd.f32 %v2640, %v2479
    %v2661 = vadd.f32 %v2641, %v2479
    %v2662 = vadd.f32 %v2642, %v2479
    %v2663 = vadd.f32 %v2643, %v2479
    %v2664 = vadd.f32 %v2644, %v2479
    %v2665 = vadd.f32 %v2645, %v2479
    %v2666 = vadd.f32 %v2646, %v2479
    %v2667 = vadd.f32 %v2647, %v2479
    %v2668 = vadd.f32 %v2648, %v2479
    %v2669 = vadd.f32 %v2649, %v2479
    %v2670 = vadd.f32 %v2650, %v2479
    %v2671 = vadd.f32 %v2651, %v2479
    %v2672 = vadd.f32 %v2652, %v2479
    %v2673 = vadd.f32 %v2653, %v2479
    %vm2674 = vcmp.gt.f32.partialorder %v2654, 0.0
    %vm2675 = vcmp.gt.f32.partialorder %v2655, 0.0
    %vm2676 = vcmp.gt.f32.partialorder %v2656, 0.0
    %vm2677 = vcmp.gt.f32.partialorder %v2657, 0.0
    %vm2678 = vcmp.gt.f32.partialorder %v2658, 0.0
    %vm2679 = vcmp.gt.f32.partialorder %v2659, 0.0
    %vm2680 = vcmp.gt.f32.partialorder %v2660, 0.0
    %vm2681 = vcmp.gt.f32.partialorder %v2661, 0.0
    %vm2682 = vcmp.gt.f32.partialorder %v2662, 0.0
    %vm2683 = vcmp.gt.f32.partialorder %v2663, 0.0
    %vm2684 = vcmp.gt.f32.partialorder %v2664, 0.0
    %vm2685 = vcmp.gt.f32.partialorder %v2665, 0.0
    %vm2686 = vcmp.gt.f32.partialorder %v2666, 0.0
    %vm2687 = vcmp.gt.f32.partialorder %v2667, 0.0
    %vm2688 = vcmp.gt.f32.partialorder %v2668, 0.0
    %vm2689 = vcmp.gt.f32.partialorder %v2669, 0.0
    %vm2690 = vcmp.gt.f32.partialorder %v2670, 0.0
    %vm2691 = vcmp.gt.f32.partialorder %v2671, 0.0
    %vm2692 = vcmp.gt.f32.partialorder %v2672, 0.0
    %vm2693 = vcmp.gt.f32.partialorder %v2673, 0.0
    %v2694 = vmul.f32 %v2654, 0.2
    %v2695 = vmul.f32 %v2655, 0.2
    %v2696 = vmul.f32 %v2656, 0.2
    %v2697 = vmul.f32 %v2657, 0.2
    %v2698 = vmul.f32 %v2658, 0.2
    %v2699 = vmul.f32 %v2659, 0.2
    %v2700 = vmul.f32 %v2660, 0.2
    %v2701 = vmul.f32 %v2661, 0.2
    %v2702 = vmul.f32 %v2662, 0.2
    %v2703 = vmul.f32 %v2663, 0.2
    %v2704 = vmul.f32 %v2664, 0.2
    %v2705 = vmul.f32 %v2665, 0.2
    %v2706 = vmul.f32 %v2666, 0.2
    %v2707 = vmul.f32 %v2667, 0.2
    %v2708 = vmul.f32 %v2668, 0.2
    %v2709 = vmul.f32 %v2669, 0.2
    %v2710 = vmul.f32 %v2670, 0.2
    %v2711 = vmul.f32 %v2671, 0.2
    %v2712 = vmul.f32 %v2672, 0.2
    %v2713 = vmul.f32 %v2673, 0.2
    %v2714 = vsel %vm2674, %v2654, %v2694
    %v2715 = vsel %vm2675, %v2655, %v2695
    %v2716 = vsel %vm2676, %v2656, %v2696
    %v2717 = vsel %vm2677, %v2657, %v2697
    %v2718 = vsel %vm2678, %v2658, %v2698
    %v2719 = vsel %vm2679, %v2659, %v2699
    %v2720 = vsel %vm2680, %v2660, %v2700
    %v2721 = vsel %vm2681, %v2661, %v2701
    %v2722 = vsel %vm2682, %v2662, %v2702
    %v2723 = vsel %vm2683, %v2663, %v2703
    %v2724 = vsel %vm2684, %v2664, %v2704
    %v2725 = vsel %vm2685, %v2665, %v2705
    %v2726 = vsel %vm2686, %v2666, %v2706
    %v2727 = vsel %vm2687, %v2667, %v2707
    %v2728 = vsel %vm2688, %v2668, %v2708
    %v2729 = vsel %vm2689, %v2669, %v2709
    %v2730 = vsel %vm2690, %v2670, %v2710
    %v2731 = vsel %vm2691, %v2671, %v2711
    %v2732 = vsel %vm2692, %v2672, %v2712
    %v2733 = vsel %vm2693, %v2673, %v2713
    %v2734 = vpack.c.bf16 %v2715, %v2714
    %v2735 = vpack.c.bf16 %v2717, %v2716
    %v2736 = vpack.c.bf16 %v2719, %v2718
    %v2737 = vpack.c.bf16 %v2721, %v2720
    %v2738 = vpack.c.bf16 %v2723, %v2722
    %v2739 = vpack.c.bf16 %v2725, %v2724
    %v2740 = vpack.c.bf16 %v2727, %v2726
    %v2741 = vpack.c.bf16 %v2729, %v2728
    %v2742 = vpack.c.bf16 %v2731, %v2730
    %v2743 = vpack.c.bf16 %v2733, %v2732
    %vm2744 = vcmp.ne.s32.totalorder %v218, 40
    %vm2745 = vcmp.ne.s32.totalorder %v219, 40
    %vm2746 = vcmp.ne.s32.totalorder %v220, 40
    %vm2747 = vcmp.ne.s32.totalorder %v221, 40
    %vm2748 = vcmp.ne.s32.totalorder %v222, 40
    %vm2749 = vcmp.ne.s32.totalorder %v223, 40
    %vm2750 = vcmp.ne.s32.totalorder %v224, 40
    %vm2751 = vcmp.ne.s32.totalorder %v225, 40
    %vm2752 = vcmp.ne.s32.totalorder %v226, 40
    %vm2753 = vcmp.ne.s32.totalorder %v227, 40
    %vm2754 = vmand %vm282, %vm2744
    %vm2755 = vmand %vm283, %vm2744
    %vm2756 = vmand %vm285, %vm2745
    %vm2757 = vmand %vm286, %vm2745
    %vm2758 = vmand %vm288, %vm2746
    %vm2759 = vmand %vm289, %vm2746
    %vm2760 = vmand %vm291, %vm2747
    %vm2761 = vmand %vm292, %vm2747
    %vm2762 = vmand %vm294, %vm2748
    %vm2763 = vmand %vm295, %vm2748
    %vm2764 = vmand %vm297, %vm2749
    %vm2765 = vmand %vm298, %vm2749
    %vm2766 = vmand %vm300, %vm2750
    %vm2767 = vmand %vm301, %vm2750
    %vm2768 = vmand %vm303, %vm2751
    %vm2769 = vmand %vm304, %vm2751
    %vm2770 = vmand %vm306, %vm2752
    %vm2771 = vmand %vm307, %vm2752
    %vm2772 = vmand %vm309, %vm2753
    %vm2773 = vmand %vm310, %vm2753
    %v2774 = vsel %vm2754, 1.0, 0.0
    %v2775 = vsel %vm2755, 1.0, 0.0
    %v2776 = vsel %vm2756, 1.0, 0.0
    %v2777 = vsel %vm2757, 1.0, 0.0
    %v2778 = vsel %vm2758, 1.0, 0.0
    %v2779 = vsel %vm2759, 1.0, 0.0
    %v2780 = vsel %vm2760, 1.0, 0.0
    %v2781 = vsel %vm2761, 1.0, 0.0
    %v2782 = vsel %vm2762, 1.0, 0.0
    %v2783 = vsel %vm2763, 1.0, 0.0
    %v2784 = vsel %vm2764, 1.0, 0.0
    %v2785 = vsel %vm2765, 1.0, 0.0
    %v2786 = vsel %vm2766, 1.0, 0.0
    %v2787 = vsel %vm2767, 1.0, 0.0
    %v2788 = vsel %vm2768, 1.0, 0.0
    %v2789 = vsel %vm2769, 1.0, 0.0
    %v2790 = vsel %vm2770, 1.0, 0.0
    %v2791 = vsel %vm2771, 1.0, 0.0
    %v2792 = vsel %vm2772, 1.0, 0.0
    %v2793 = vsel %vm2773, 1.0, 0.0
    %v2794 = vpack.c.bf16 %v2776, %v2774
    %v2795 = vpack.c.bf16 %v2777, %v2775
    %v2796 = vpack.c.bf16 %v2780, %v2778
    %v2797 = vpack.c.bf16 %v2781, %v2779
    %v2798 = vpack.c.bf16 %v2784, %v2782
    %v2799 = vpack.c.bf16 %v2785, %v2783
    %v2800 = vpack.c.bf16 %v2788, %v2786
    %v2801 = vpack.c.bf16 %v2789, %v2787
    %v2802 = vpack.c.bf16 %v2792, %v2790
    %v2803 = vpack.c.bf16 %v2793, %v2791
    %v2805 = vsel %vm2271, %v2795, 0
    %v2808 = vsel %vm2271, %v2797, 0
    %v2811 = vsel %vm2271, %v2799, 0
    %v2814 = vsel %vm2271, %v2801, 0
    %v2817 = vsel %vm2271, %v2803, 0
    %2819 = vmatprep.subr.bf16.mxu0 0
    %2820 = vmatpush1.bf16.msra.mxu0 %v2741
    %2821 = vmatprep.subr.bf16.mxu0 0
    %2822 = vmatpush1.bf16.msra.mxu0 %v2740
    %2823 = vmatprep.subr.bf16.mxu0 0
    %2824 = vmatpush1.bf16.msra.mxu0 %v2739
    %2825 = vmatprep.subr.bf16.mxu0 0
    %2826 = vmatpush1.bf16.msra.mxu0 %v2738
    %2827 = vmatprep.subr.bf16.mxu0 0
    %2828 = vmatpush1.bf16.msra.mxu0 %v2737
    %2829 = vmatprep.subr.bf16.mxu0 0
    %2830 = vmatpush1.bf16.msra.mxu0 %v2736
    %2831 = vmatprep.subr.bf16.mxu0 0
    %2832 = vmatpush1.bf16.msra.mxu0 %v2735
    %2833 = vmatprep.subr.bf16.mxu0 0
    %2834 = vmatpush1.bf16.msra.mxu0 %v2734
    %2835 = vmatprep.subr.bf16.mxu0 0
    %2836 = vmatpush2.bf16.msra.mxu0 0
    %2837 = vmatprep.subr.bf16.mxu0 0
    %2838 = vmatpush2.bf16.msra.mxu0 0
    %2839 = vmatprep.subr.bf16.mxu0 0
    %2840 = vmatpush2.bf16.msra.mxu0 0
    %2841 = vmatprep.subr.bf16.mxu0 0
    %2842 = vmatpush2.bf16.msra.mxu0 0
    %2843 = vmatprep.subr.bf16.mxu0 0
    %2844 = vmatpush2.bf16.msra.mxu0 0
    %2845 = vmatprep.subr.bf16.mxu0 0
    %2846 = vmatpush2.bf16.msra.mxu0 0
    %2847 = vmatprep.subr.bf16.mxu0 0
    %2848 = vmatpush2.bf16.msra.mxu0 %v2743
    %2849 = vmatprep.subr.bf16.mxu0 0
    %2850 = vmatpush2.bf16.msra.mxu0 %v2742
    %2851 = vmatprep.mubr.bf16.mxu0 %v2805
    %2852 = vmatmul.mubr.bf16.gmra.mxu0 %v2794
    %v2853 = vpop.f32.mrf.mxu0
    %v2854 = vadd.f32 0.0, %v2853
    %v2855 = vpop.f32.mrf.mxu0
    %v2856 = vpop.f32.mrf.mxu0
    %v2857 = vadd.f32 0.0, %v2856
    %v2858 = vpop.f32.mrf.mxu0
    %2859 = vmatprep.mubr.bf16.mxu0 %v2808
    %2860 = vmatmul.mubr.bf16.gmra.mxu0 %v2796
    %v2861 = vpop.f32.mrf.mxu0
    %v2862 = vadd.f32 0.0, %v2861
    %v2863 = vpop.f32.mrf.mxu0
    %v2864 = vpop.f32.mrf.mxu0
    %v2865 = vadd.f32 0.0, %v2864
    %v2866 = vpop.f32.mrf.mxu0
    %2867 = vmatprep.mubr.bf16.mxu0 %v2811
    %2868 = vmatmul.mubr.bf16.gmra.mxu0 %v2798
    %v2869 = vpop.f32.mrf.mxu0
    %v2870 = vadd.f32 0.0, %v2869
    %v2871 = vpop.f32.mrf.mxu0
    %v2872 = vpop.f32.mrf.mxu0
    %v2873 = vadd.f32 0.0, %v2872
    %v2874 = vpop.f32.mrf.mxu0
    %2875 = vmatprep.mubr.bf16.mxu0 %v2814
    %2876 = vmatmul.mubr.bf16.gmra.mxu0 %v2800
    %v2877 = vpop.f32.mrf.mxu0
    %v2878 = vadd.f32 0.0, %v2877
    %v2879 = vpop.f32.mrf.mxu0
    %v2880 = vpop.f32.mrf.mxu0
    %v2881 = vadd.f32 0.0, %v2880
    %v2882 = vpop.f32.mrf.mxu0
    %2883 = vmatprep.mubr.bf16.mxu0 %v2817
    %2884 = vmatmul.mubr.bf16.gmra.mxu0 %v2802
    %v2885 = vpop.f32.mrf.mxu0
    %v2886 = vadd.f32 0.0, %v2885
    %v2887 = vpop.f32.mrf.mxu0
    %v2888 = vpop.f32.mrf.mxu0
    %v2889 = vadd.f32 0.0, %v2888
    %v2890 = vpop.f32.mrf.mxu0
    %2891 = vdwg.mxu0
    %v2892 = vpack.c.bf16 %v2857, %v2854
    %v2893 = vpack.c.bf16 %v2865, %v2862
    %v2894 = vpack.c.bf16 %v2873, %v2870
    %v2895 = vpack.c.bf16 %v2881, %v2878
    %v2896 = vpack.c.bf16 %v2889, %v2886
    %v2898 = vsel %vm2271, %v903, 0
    %v2901 = vsel %vm2271, %v906, 0
    %v2904 = vsel %vm2271, %v909, 0
    %v2907 = vsel %vm2271, %v912, 0
    %v2910 = vsel %vm2271, %v915, 0
    %2912 = vmatprep.subr.bf16.mxu0 0
    %2913 = vmatpush1.bf16.msra.mxu0 %v2741
    %2914 = vmatprep.subr.bf16.mxu0 0
    %2915 = vmatpush1.bf16.msra.mxu0 %v2740
    %2916 = vmatprep.subr.bf16.mxu0 0
    %2917 = vmatpush1.bf16.msra.mxu0 %v2739
    %2918 = vmatprep.subr.bf16.mxu0 0
    %2919 = vmatpush1.bf16.msra.mxu0 %v2738
    %2920 = vmatprep.subr.bf16.mxu0 0
    %2921 = vmatpush1.bf16.msra.mxu0 %v2737
    %2922 = vmatprep.subr.bf16.mxu0 0
    %2923 = vmatpush1.bf16.msra.mxu0 %v2736
    %2924 = vmatprep.subr.bf16.mxu0 0
    %2925 = vmatpush1.bf16.msra.mxu0 %v2735
    %2926 = vmatprep.subr.bf16.mxu0 0
    %2927 = vmatpush1.bf16.msra.mxu0 %v2734
    %2928 = vmatprep.subr.bf16.mxu0 0
    %2929 = vmatpush2.bf16.msra.mxu0 0
    %2930 = vmatprep.subr.bf16.mxu0 0
    %2931 = vmatpush2.bf16.msra.mxu0 0
    %2932 = vmatprep.subr.bf16.mxu0 0
    %2933 = vmatpush2.bf16.msra.mxu0 0
    %2934 = vmatprep.subr.bf16.mxu0 0
    %2935 = vmatpush2.bf16.msra.mxu0 0
    %2936 = vmatprep.subr.bf16.mxu0 0
    %2937 = vmatpush2.bf16.msra.mxu0 0
    %2938 = vmatprep.subr.bf16.mxu0 0
    %2939 = vmatpush2.bf16.msra.mxu0 0
    %2940 = vmatprep.subr.bf16.mxu0 0
    %2941 = vmatpush2.bf16.msra.mxu0 %v2743
    %2942 = vmatprep.subr.bf16.mxu0 0
    %2943 = vmatpush2.bf16.msra.mxu0 %v2742
    %2944 = vmatprep.mubr.bf16.mxu0 %v2898
    %2945 = vmatmul.mubr.bf16.gmra.mxu0 %v902
    %v2946 = vpop.f32.mrf.mxu0
    %v2947 = vadd.f32 0.0, %v2946
    %v2948 = vpop.f32.mrf.mxu0
    %v2949 = vpop.f32.mrf.mxu0
    %v2950 = vadd.f32 0.0, %v2949
    %v2951 = vpop.f32.mrf.mxu0
    %2952 = vmatprep.mubr.bf16.mxu0 %v2901
    %2953 = vmatmul.mubr.bf16.gmra.mxu0 %v905
    %v2954 = vpop.f32.mrf.mxu0
    %v2955 = vadd.f32 0.0, %v2954
    %v2956 = vpop.f32.mrf.mxu0
    %v2957 = vpop.f32.mrf.mxu0
    %v2958 = vadd.f32 0.0, %v2957
    %v2959 = vpop.f32.mrf.mxu0
    %2960 = vmatprep.mubr.bf16.mxu0 %v2904
    %2961 = vmatmul.mubr.bf16.gmra.mxu0 %v908
    %v2962 = vpop.f32.mrf.mxu0
    %v2963 = vadd.f32 0.0, %v2962
    %v2964 = vpop.f32.mrf.mxu0
    %v2965 = vpop.f32.mrf.mxu0
    %v2966 = vadd.f32 0.0, %v2965
    %v2967 = vpop.f32.mrf.mxu0
    %2968 = vmatprep.mubr.bf16.mxu0 %v2907
    %2969 = vmatmul.mubr.bf16.gmra.mxu0 %v911
    %v2970 = vpop.f32.mrf.mxu0
    %v2971 = vadd.f32 0.0, %v2970
    %v2972 = vpop.f32.mrf.mxu0
    %v2973 = vpop.f32.mrf.mxu0
    %v2974 = vadd.f32 0.0, %v2973
    %v2975 = vpop.f32.mrf.mxu0
    %2976 = vmatprep.mubr.bf16.mxu0 %v2910
    %2977 = vmatmul.mubr.bf16.gmra.mxu0 %v914
    %v2978 = vpop.f32.mrf.mxu0
    %v2979 = vadd.f32 0.0, %v2978
    %v2980 = vpop.f32.mrf.mxu0
    %v2981 = vpop.f32.mrf.mxu0
    %v2982 = vadd.f32 0.0, %v2981
    %v2983 = vpop.f32.mrf.mxu0
    %2984 = vdwg.mxu0
    %v2985 = vpack.c.bf16 %v2950, %v2947
    %v2986 = vpack.c.bf16 %v2958, %v2955
    %v2987 = vpack.c.bf16 %v2966, %v2963
    %v2988 = vpack.c.bf16 %v2974, %v2971
    %v2989 = vpack.c.bf16 %v2982, %v2979
    %v2991 = vsel %vm2271, %v1339, 0
    %v2994 = vsel %vm2271, %v1342, 0
    %v2997 = vsel %vm2271, %v1345, 0
    %v3000 = vsel %vm2271, %v1348, 0
    %v3003 = vsel %vm2271, %v1351, 0
    %3005 = vmatprep.subr.bf16.mxu0 0
    %3006 = vmatpush1.bf16.msra.mxu0 %v2741
    %3007 = vmatprep.subr.bf16.mxu0 0
    %3008 = vmatpush1.bf16.msra.mxu0 %v2740
    %3009 = vmatprep.subr.bf16.mxu0 0
    %3010 = vmatpush1.bf16.msra.mxu0 %v2739
    %3011 = vmatprep.subr.bf16.mxu0 0
    %3012 = vmatpush1.bf16.msra.mxu0 %v2738
    %3013 = vmatprep.subr.bf16.mxu0 0
    %3014 = vmatpush1.bf16.msra.mxu0 %v2737
    %3015 = vmatprep.subr.bf16.mxu0 0
    %3016 = vmatpush1.bf16.msra.mxu0 %v2736
    %3017 = vmatprep.subr.bf16.mxu0 0
    %3018 = vmatpush1.bf16.msra.mxu0 %v2735
    %3019 = vmatprep.subr.bf16.mxu0 0
    %3020 = vmatpush1.bf16.msra.mxu0 %v2734
    %3021 = vmatprep.subr.bf16.mxu0 0
    %3022 = vmatpush2.bf16.msra.mxu0 0
    %3023 = vmatprep.subr.bf16.mxu0 0
    %3024 = vmatpush2.bf16.msra.mxu0 0
    %3025 = vmatprep.subr.bf16.mxu0 0
    %3026 = vmatpush2.bf16.msra.mxu0 0
    %3027 = vmatprep.subr.bf16.mxu0 0
    %3028 = vmatpush2.bf16.msra.mxu0 0
    %3029 = vmatprep.subr.bf16.mxu0 0
    %3030 = vmatpush2.bf16.msra.mxu0 0
    %3031 = vmatprep.subr.bf16.mxu0 0
    %3032 = vmatpush2.bf16.msra.mxu0 0
    %3033 = vmatprep.subr.bf16.mxu0 0
    %3034 = vmatpush2.bf16.msra.mxu0 %v2743
    %3035 = vmatprep.subr.bf16.mxu0 0
    %3036 = vmatpush2.bf16.msra.mxu0 %v2742
    %3037 = vmatprep.mubr.bf16.mxu0 %v2991
    %3038 = vmatmul.mubr.bf16.gmra.mxu0 %v1338
    %v3039 = vpop.f32.mrf.mxu0
    %v3040 = vadd.f32 0.0, %v3039
    %v3041 = vpop.f32.mrf.mxu0
    %v3042 = vpop.f32.mrf.mxu0
    %v3043 = vadd.f32 0.0, %v3042
    %v3044 = vpop.f32.mrf.mxu0
    %3045 = vmatprep.mubr.bf16.mxu0 %v2994
    %3046 = vmatmul.mubr.bf16.gmra.mxu0 %v1341
    %v3047 = vpop.f32.mrf.mxu0
    %v3048 = vadd.f32 0.0, %v3047
    %v3049 = vpop.f32.mrf.mxu0
    %v3050 = vpop.f32.mrf.mxu0
    %v3051 = vadd.f32 0.0, %v3050
    %v3052 = vpop.f32.mrf.mxu0
    %3053 = vmatprep.mubr.bf16.mxu0 %v2997
    %3054 = vmatmul.mubr.bf16.gmra.mxu0 %v1344
    %v3055 = vpop.f32.mrf.mxu0
    %v3056 = vadd.f32 0.0, %v3055
    %v3057 = vpop.f32.mrf.mxu0
    %v3058 = vpop.f32.mrf.mxu0
    %v3059 = vadd.f32 0.0, %v3058
    %v3060 = vpop.f32.mrf.mxu0
    %3061 = vmatprep.mubr.bf16.mxu0 %v3000
    %3062 = vmatmul.mubr.bf16.gmra.mxu0 %v1347
    %v3063 = vpop.f32.mrf.mxu0
    %v3064 = vadd.f32 0.0, %v3063
    %v3065 = vpop.f32.mrf.mxu0
    %v3066 = vpop.f32.mrf.mxu0
    %v3067 = vadd.f32 0.0, %v3066
    %v3068 = vpop.f32.mrf.mxu0
    %3069 = vmatprep.mubr.bf16.mxu0 %v3003
    %3070 = vmatmul.mubr.bf16.gmra.mxu0 %v1350
    %v3071 = vpop.f32.mrf.mxu0
    %v3072 = vadd.f32 0.0, %v3071
    %v3073 = vpop.f32.mrf.mxu0
    %v3074 = vpop.f32.mrf.mxu0
    %v3075 = vadd.f32 0.0, %v3074
    %v3076 = vpop.f32.mrf.mxu0
    %3077 = vdwg.mxu0
    %v3078 = vpack.c.bf16 %v3043, %v3040
    %v3079 = vpack.c.bf16 %v3051, %v3048
    %v3080 = vpack.c.bf16 %v3059, %v3056
    %v3081 = vpack.c.bf16 %v3067, %v3064
    %v3082 = vpack.c.bf16 %v3075, %v3072
    %vm3083 = vcmp.ne.s32.totalorder %v218, 39
    %vm3084 = vcmp.ne.s32.totalorder %v219, 39
    %vm3085 = vcmp.ne.s32.totalorder %v220, 39
    %vm3086 = vcmp.ne.s32.totalorder %v221, 39
    %vm3087 = vcmp.ne.s32.totalorder %v222, 39
    %vm3088 = vcmp.ne.s32.totalorder %v223, 39
    %vm3089 = vcmp.ne.s32.totalorder %v224, 39
    %vm3090 = vcmp.ne.s32.totalorder %v225, 39
    %vm3091 = vcmp.ne.s32.totalorder %v226, 39
    %vm3092 = vcmp.ne.s32.totalorder %v227, 39
    %vm3093 = vmand %vm1654, %vm3083
    %vm3094 = vmand %vm1655, %vm3083
    %vm3095 = vmand %vm1657, %vm3084
    %vm3096 = vmand %vm1658, %vm3084
    %vm3097 = vmand %vm1660, %vm3085
    %vm3098 = vmand %vm1661, %vm3085
    %vm3099 = vmand %vm1663, %vm3086
    %vm3100 = vmand %vm1664, %vm3086
    %vm3101 = vmand %vm1666, %vm3087
    %vm3102 = vmand %vm1667, %vm3087
    %vm3103 = vmand %vm1669, %vm3088
    %vm3104 = vmand %vm1670, %vm3088
    %vm3105 = vmand %vm1672, %vm3089
    %vm3106 = vmand %vm1673, %vm3089
    %vm3107 = vmand %vm1675, %vm3090
    %vm3108 = vmand %vm1676, %vm3090
    %vm3109 = vmand %vm1678, %vm3091
    %vm3110 = vmand %vm1679, %vm3091
    %vm3111 = vmand %vm1681, %vm3092
    %vm3112 = vmand %vm1682, %vm3092
    %v3113 = vsel %vm3093, 1.0, 0.0
    %v3114 = vsel %vm3094, 1.0, 0.0
    %v3115 = vsel %vm3095, 1.0, 0.0
    %v3116 = vsel %vm3096, 1.0, 0.0
    %v3117 = vsel %vm3097, 1.0, 0.0
    %v3118 = vsel %vm3098, 1.0, 0.0
    %v3119 = vsel %vm3099, 1.0, 0.0
    %v3120 = vsel %vm3100, 1.0, 0.0
    %v3121 = vsel %vm3101, 1.0, 0.0
    %v3122 = vsel %vm3102, 1.0, 0.0
    %v3123 = vsel %vm3103, 1.0, 0.0
    %v3124 = vsel %vm3104, 1.0, 0.0
    %v3125 = vsel %vm3105, 1.0, 0.0
    %v3126 = vsel %vm3106, 1.0, 0.0
    %v3127 = vsel %vm3107, 1.0, 0.0
    %v3128 = vsel %vm3108, 1.0, 0.0
    %v3129 = vsel %vm3109, 1.0, 0.0
    %v3130 = vsel %vm3110, 1.0, 0.0
    %v3131 = vsel %vm3111, 1.0, 0.0
    %v3132 = vsel %vm3112, 1.0, 0.0
    %v3133 = vpack.c.bf16 %v3115, %v3113
    %v3134 = vpack.c.bf16 %v3116, %v3114
    %v3135 = vpack.c.bf16 %v3119, %v3117
    %v3136 = vpack.c.bf16 %v3120, %v3118
    %v3137 = vpack.c.bf16 %v3123, %v3121
    %v3138 = vpack.c.bf16 %v3124, %v3122
    %v3139 = vpack.c.bf16 %v3127, %v3125
    %v3140 = vpack.c.bf16 %v3128, %v3126
    %v3141 = vpack.c.bf16 %v3131, %v3129
    %v3142 = vpack.c.bf16 %v3132, %v3130
    %v3144 = vsel %vm2271, %v3134, 0
    %v3147 = vsel %vm2271, %v3136, 0
    %v3150 = vsel %vm2271, %v3138, 0
    %v3153 = vsel %vm2271, %v3140, 0
    %v3156 = vsel %vm2271, %v3142, 0
    %3158 = vmatprep.subr.bf16.mxu0 0
    %3159 = vmatpush1.bf16.msra.mxu0 %v2741
    %3160 = vmatprep.subr.bf16.mxu0 0
    %3161 = vmatpush1.bf16.msra.mxu0 %v2740
    %3162 = vmatprep.subr.bf16.mxu0 0
    %3163 = vmatpush1.bf16.msra.mxu0 %v2739
    %3164 = vmatprep.subr.bf16.mxu0 0
    %3165 = vmatpush1.bf16.msra.mxu0 %v2738
    %3166 = vmatprep.subr.bf16.mxu0 0
    %3167 = vmatpush1.bf16.msra.mxu0 %v2737
    %3168 = vmatprep.subr.bf16.mxu0 0
    %3169 = vmatpush1.bf16.msra.mxu0 %v2736
    %3170 = vmatprep.subr.bf16.mxu0 0
    %3171 = vmatpush1.bf16.msra.mxu0 %v2735
    %3172 = vmatprep.subr.bf16.mxu0 0
    %3173 = vmatpush1.bf16.msra.mxu0 %v2734
    %3174 = vmatprep.subr.bf16.mxu0 0
    %3175 = vmatpush2.bf16.msra.mxu0 0
    %3176 = vmatprep.subr.bf16.mxu0 0
    %3177 = vmatpush2.bf16.msra.mxu0 0
    %3178 = vmatprep.subr.bf16.mxu0 0
    %3179 = vmatpush2.bf16.msra.mxu0 0
    %3180 = vmatprep.subr.bf16.mxu0 0
    %3181 = vmatpush2.bf16.msra.mxu0 0
    %3182 = vmatprep.subr.bf16.mxu0 0
    %3183 = vmatpush2.bf16.msra.mxu0 0
    %3184 = vmatprep.subr.bf16.mxu0 0
    %3185 = vmatpush2.bf16.msra.mxu0 0
    %3186 = vmatprep.subr.bf16.mxu0 0
    %3187 = vmatpush2.bf16.msra.mxu0 %v2743
    %3188 = vmatprep.subr.bf16.mxu0 0
    %3189 = vmatpush2.bf16.msra.mxu0 %v2742
    %3190 = vmatprep.mubr.bf16.mxu0 %v3144
    %3191 = vmatmul.mubr.bf16.gmra.mxu0 %v3133
    %v3192 = vpop.f32.mrf.mxu0
    %v3193 = vadd.f32 0.0, %v3192
    %v3194 = vpop.f32.mrf.mxu0
    %v3195 = vpop.f32.mrf.mxu0
    %v3196 = vadd.f32 0.0, %v3195
    %v3197 = vpop.f32.mrf.mxu0
    %3198 = vmatprep.mubr.bf16.mxu0 %v3147
    %3199 = vmatmul.mubr.bf16.gmra.mxu0 %v3135
    %v3200 = vpop.f32.mrf.mxu0
    %v3201 = vadd.f32 0.0, %v3200
    %v3202 = vpop.f32.mrf.mxu0
    %v3203 = vpop.f32.mrf.mxu0
    %v3204 = vadd.f32 0.0, %v3203
    %v3205 = vpop.f32.mrf.mxu0
    %3206 = vmatprep.mubr.bf16.mxu0 %v3150
    %3207 = vmatmul.mubr.bf16.gmra.mxu0 %v3137
    %v3208 = vpop.f32.mrf.mxu0
    %v3209 = vadd.f32 0.0, %v3208
    %v3210 = vpop.f32.mrf.mxu0
    %v3211 = vpop.f32.mrf.mxu0
    %v3212 = vadd.f32 0.0, %v3211
    %v3213 = vpop.f32.mrf.mxu0
    %3214 = vmatprep.mubr.bf16.mxu0 %v3153
    %3215 = vmatmul.mubr.bf16.gmra.mxu0 %v3139
    %v3216 = vpop.f32.mrf.mxu0
    %v3217 = vadd.f32 0.0, %v3216
    %v3218 = vpop.f32.mrf.mxu0
    %v3219 = vpop.f32.mrf.mxu0
    %v3220 = vadd.f32 0.0, %v3219
    %v3221 = vpop.f32.mrf.mxu0
    %3222 = vmatprep.mubr.bf16.mxu0 %v3156
    %3223 = vmatmul.mubr.bf16.gmra.mxu0 %v3141
    %v3224 = vpop.f32.mrf.mxu0
    %v3225 = vadd.f32 0.0, %v3224
    %v3226 = vpop.f32.mrf.mxu0
    %v3227 = vpop.f32.mrf.mxu0
    %v3228 = vadd.f32 0.0, %v3227
    %v3229 = vpop.f32.mrf.mxu0
    %3230 = vdwg.mxu0
    %v3231 = vpack.c.bf16 %v3196, %v3193
    %v3232 = vpack.c.bf16 %v3204, %v3201
    %v3233 = vpack.c.bf16 %v3212, %v3209
    %v3234 = vpack.c.bf16 %v3220, %v3217
    %v3235 = vpack.c.bf16 %v3228, %v3225
    %3241 = vrot.lane.b32.xlu0 %v2985, 32
    %v3242 = vpop.permute.xlu0 %3241
    %3243 = vrot.lane.b32.xlu0 %v2986, 32
    %v3244 = vpop.permute.xlu0 %3243
    %3245 = vrot.lane.b32.xlu0 %v2987, 32
    %v3246 = vpop.permute.xlu0 %3245
    %3247 = vrot.lane.b32.xlu0 %v2988, 32
    %v3248 = vpop.permute.xlu0 %3247
    %3249 = vrot.lane.b32.xlu0 %v2989, 32
    %v3250 = vpop.permute.xlu0 %3249
    %3256 = vrot.lane.b32.xlu0 %v3078, 64
    %v3257 = vpop.permute.xlu0 %3256
    %3258 = vrot.lane.b32.xlu0 %v3079, 64
    %v3259 = vpop.permute.xlu0 %3258
    %3260 = vrot.lane.b32.xlu0 %v3080, 64
    %v3261 = vpop.permute.xlu0 %3260
    %3262 = vrot.lane.b32.xlu0 %v3081, 64
    %v3263 = vpop.permute.xlu0 %3262
    %3264 = vrot.lane.b32.xlu0 %v3082, 64
    %v3265 = vpop.permute.xlu0 %3264
    %3271 = vrot.lane.b32.xlu0 %v3231, 96
    %v3272 = vpop.permute.xlu0 %3271
    %3273 = vrot.lane.b32.xlu0 %v3232, 96
    %v3274 = vpop.permute.xlu0 %3273
    %3275 = vrot.lane.b32.xlu0 %v3233, 96
    %v3276 = vpop.permute.xlu0 %3275
    %3277 = vrot.lane.b32.xlu0 %v3234, 96
    %v3278 = vpop.permute.xlu0 %3277
    %3279 = vrot.lane.b32.xlu0 %v3235, 96
    %v3280 = vpop.permute.xlu0 %3279
    %v3283 = vsel %vm2271, %v2892, %v3242
    %v3286 = vsel %vm2271, %v2893, %v3244
    %v3289 = vsel %vm2271, %v2894, %v3246
    %v3292 = vsel %vm2271, %v2895, %v3248
    %v3295 = vsel %vm2271, %v2896, %v3250
    %v3297 = vsel %vm512, %v3283, %v3257
    %v3299 = vsel %vm512, %v3286, %v3259
    %v3301 = vsel %vm512, %v3289, %v3261
    %v3303 = vsel %vm512, %v3292, %v3263
    %v3305 = vsel %vm512, %v3295, %v3265
    %vm3306 = vcmask 785408
    %v3308 = vsel %vm3306, %v3297, %v3272
    %v3311 = vsel %vm3306, %v3299, %v3274
    %v3314 = vsel %vm3306, %v3301, %v3276
    %v3317 = vsel %vm3306, %v3303, %v3278
    %v3320 = vsel %vm3306, %v3305, %v3280
    %v3322 = vld [vmem:[%s3] sm:$0xf]
    %v3323 = vld [vmem:[%s3 + $0x4] sm:$0xf]
    %v3324 = vld [vmem:[%s3 + $0x8] sm:$0xf]
    %v3325 = vld [vmem:[%s3 + $0xc] sm:$0xf]
    %v3326 = vld [vmem:[%s3 + $0x10] sm:$0xf]
    %v3327 = vld [vmem:[%s3 + $0x14] sm:$0xf]
    %v3328 = vld [vmem:[%s3 + $0x18] sm:$0xf]
    %v3329 = vld [vmem:[%s3 + $0x1c] sm:$0xf]
    %v3330 = vld [vmem:[%s3 + $0x20] sm:$0xf]
    %v3331 = vld [vmem:[%s3 + $0x24] sm:$0xf]
    %v3332 = vld [vmem:[%s3 + $0x28] sm:$0xf]
    %v3333 = vld [vmem:[%s3 + $0x2c] sm:$0xf]
    %v3334 = vld [vmem:[%s3 + $0x30] sm:$0xf]
    %v3335 = vld [vmem:[%s3 + $0x34] sm:$0xf]
    %v3336 = vld [vmem:[%s3 + $0x38] sm:$0xf]
    %v3337 = vld [vmem:[%s3 + $0x3c] sm:$0xf]
    %v3354 = vunpack.c.l.b16 %v3322
    %v3355 = vunpack.c.l.b16 %v3323
    %v3356 = vunpack.c.l.b16 %v3324
    %v3357 = vunpack.c.l.b16 %v3325
    %v3358 = vunpack.c.l.b16 %v3326
    %v3359 = vunpack.c.l.b16 %v3327
    %v3360 = vunpack.c.l.b16 %v3328
    %v3361 = vunpack.c.l.b16 %v3329
    %v3362 = vunpack.c.l.b16 %v3330
    %v3363 = vunpack.c.l.b16 %v3331
    %v3364 = vunpack.c.l.b16 %v3332
    %v3365 = vunpack.c.l.b16 %v3333
    %v3366 = vunpack.c.l.b16 %v3334
    %v3367 = vunpack.c.l.b16 %v3335
    %v3368 = vunpack.c.l.b16 %v3336
    %v3369 = vunpack.c.l.b16 %v3337
    %v3370 = vpack.c.b16 %v3355, %v3354
    %v3371 = vpack.c.b16 %v3357, %v3356
    %v3372 = vpack.c.b16 %v3359, %v3358
    %v3373 = vpack.c.b16 %v3361, %v3360
    %v3374 = vpack.c.b16 %v3363, %v3362
    %v3375 = vpack.c.b16 %v3365, %v3364
    %v3376 = vpack.c.b16 %v3367, %v3366
    %v3377 = vpack.c.b16 %v3369, %v3368
    %3386 = vmatprep.subr.bf16.mxu0 0
    %3387 = vmatpush1.bf16.msra.mxu0 %v3377
    %3388 = vmatprep.subr.bf16.mxu0 0
    %3389 = vmatpush1.bf16.msra.mxu0 %v3376
    %3390 = vmatprep.subr.bf16.mxu0 0
    %3391 = vmatpush1.bf16.msra.mxu0 %v3375
    %3392 = vmatprep.subr.bf16.mxu0 0
    %3393 = vmatpush1.bf16.msra.mxu0 %v3374
    %3394 = vmatprep.subr.bf16.mxu0 0
    %3395 = vmatpush1.bf16.msra.mxu0 %v3373
    %3396 = vmatprep.subr.bf16.mxu0 0
    %3397 = vmatpush1.bf16.msra.mxu0 %v3372
    %3398 = vmatprep.subr.bf16.mxu0 0
    %3399 = vmatpush1.bf16.msra.mxu0 %v3371
    %3400 = vmatprep.subr.bf16.mxu0 0
    %3401 = vmatpush1.bf16.msra.mxu0 %v3370
    %3402 = vmatprep.subr.bf16.mxu0 0
    %3403 = vmatpush2.bf16.msra.mxu0 0
    %3404 = vmatprep.subr.bf16.mxu0 0
    %3405 = vmatpush2.bf16.msra.mxu0 0
    %3406 = vmatprep.subr.bf16.mxu0 0
    %3407 = vmatpush2.bf16.msra.mxu0 0
    %3408 = vmatprep.subr.bf16.mxu0 0
    %3409 = vmatpush2.bf16.msra.mxu0 0
    %3410 = vmatprep.subr.bf16.mxu0 0
    %3411 = vmatpush2.bf16.msra.mxu0 0
    %3412 = vmatprep.subr.bf16.mxu0 0
    %3413 = vmatpush2.bf16.msra.mxu0 0
    %3414 = vmatprep.subr.bf16.mxu0 0
    %3415 = vmatpush2.bf16.msra.mxu0 0
    %3416 = vmatprep.subr.bf16.mxu0 0
    %3417 = vmatpush2.bf16.msra.mxu0 0
    %3418 = vmatprep.mubr.bf16.mxu0 0
    %3419 = vmatmul.mubr.bf16.gmra.mxu0 %v3308
    %v3420 = vpop.f32.mrf.mxu0
    %v3421 = vadd.f32 0.0, %v3420
    %v3422 = vpop.f32.mrf.mxu0
    %v3423 = vpop.f32.mrf.mxu0
    %v3424 = vadd.f32 0.0, %v3423
    %v3425 = vpop.f32.mrf.mxu0
    %3426 = vmatprep.mubr.bf16.mxu0 0
    %3427 = vmatmul.mubr.bf16.gmra.mxu0 %v3311
    %v3428 = vpop.f32.mrf.mxu0
    %v3429 = vadd.f32 0.0, %v3428
    %v3430 = vpop.f32.mrf.mxu0
    %v3431 = vpop.f32.mrf.mxu0
    %v3432 = vadd.f32 0.0, %v3431
    %v3433 = vpop.f32.mrf.mxu0
    %3434 = vmatprep.mubr.bf16.mxu0 0
    %3435 = vmatmul.mubr.bf16.gmra.mxu0 %v3314
    %v3436 = vpop.f32.mrf.mxu0
    %v3437 = vadd.f32 0.0, %v3436
    %v3438 = vpop.f32.mrf.mxu0
    %v3439 = vpop.f32.mrf.mxu0
    %v3440 = vadd.f32 0.0, %v3439
    %v3441 = vpop.f32.mrf.mxu0
    %3442 = vmatprep.mubr.bf16.mxu0 0
    %3443 = vmatmul.mubr.bf16.gmra.mxu0 %v3317
    %v3444 = vpop.f32.mrf.mxu0
    %v3445 = vadd.f32 0.0, %v3444
    %v3446 = vpop.f32.mrf.mxu0
    %v3447 = vpop.f32.mrf.mxu0
    %v3448 = vadd.f32 0.0, %v3447
    %v3449 = vpop.f32.mrf.mxu0
    %3450 = vmatprep.mubr.bf16.mxu0 0
    %3451 = vmatmul.mubr.bf16.gmra.mxu0 %v3320
    %v3452 = vpop.f32.mrf.mxu0
    %v3453 = vadd.f32 0.0, %v3452
    %v3454 = vpop.f32.mrf.mxu0
    %v3455 = vpop.f32.mrf.mxu0
    %v3456 = vadd.f32 0.0, %v3455
    %v3457 = vpop.f32.mrf.mxu0
    %3458 = vdwg.mxu0
    %v3459 = vld [vmem:[%s7 + $0x2] ss:$0 sm:$0xff]
    %v3460 = vld [vmem:[%s7 + $0x3] ss:$0 sm:$0xff]
    %v3461 = vsel %vm512, %v3421, 0.0
    %v3462 = vsel %vm512, %v3424, 0.0
    %v3463 = vadd.f32 %v3461, %v3462
    %v3464 = vsel %vm512, %v3429, 0.0
    %v3465 = vadd.f32 %v3463, %v3464
    %v3466 = vsel %vm512, %v3432, 0.0
    %v3467 = vadd.f32 %v3465, %v3466
    %v3468 = vsel %vm512, %v3437, 0.0
    %v3469 = vadd.f32 %v3467, %v3468
    %v3470 = vsel %vm512, %v3440, 0.0
    %v3471 = vadd.f32 %v3469, %v3470
    %v3472 = vsel %vm512, %v3445, 0.0
    %v3473 = vadd.f32 %v3471, %v3472
    %v3474 = vsel %vm512, %v3448, 0.0
    %v3475 = vadd.f32 %v3473, %v3474
    %v3476 = vsel %vm512, %v3453, 0.0
    %v3477 = vadd.f32 %v3475, %v3476
    %v3478 = vsel %vm512, %v3456, 0.0
    %v3479 = vadd.f32 %v3477, %v3478
    %v3480 = vrot.slane %v3479, 4
    %v3481 = vadd.f32 %v3479, %v3480
    %v3482 = vrot.slane %v3481, 2
    %v3483 = vadd.f32 %v3481, %v3482
    %v3484 = vrot.slane %v3483, 1
    %v3485 = vadd.f32 %v3483, %v3484
    %v3486 = vmul.f32 %v3485, 0.0125
    %v3487 = vsub.f32 %v3421, %v3486
    %v3488 = vsub.f32 %v3424, %v3486
    %v3489 = vsub.f32 %v3429, %v3486
    %v3490 = vsub.f32 %v3432, %v3486
    %v3491 = vsub.f32 %v3437, %v3486
    %v3492 = vsub.f32 %v3440, %v3486
    %v3493 = vsub.f32 %v3445, %v3486
    %v3494 = vsub.f32 %v3448, %v3486
    %v3495 = vsub.f32 %v3453, %v3486
    %v3496 = vsub.f32 %v3456, %v3486
    %v3497 = vmul.f32 %v3487, %v3487
    %v3498 = vmul.f32 %v3488, %v3488
    %v3499 = vmul.f32 %v3489, %v3489
    %v3500 = vmul.f32 %v3490, %v3490
    %v3501 = vmul.f32 %v3491, %v3491
    %v3502 = vmul.f32 %v3492, %v3492
    %v3503 = vmul.f32 %v3493, %v3493
    %v3504 = vmul.f32 %v3494, %v3494
    %v3505 = vmul.f32 %v3495, %v3495
    %v3506 = vmul.f32 %v3496, %v3496
    %v3507 = vsel %vm512, %v3497, 0.0
    %v3508 = vsel %vm512, %v3498, 0.0
    %v3509 = vadd.f32 %v3507, %v3508
    %v3510 = vsel %vm512, %v3499, 0.0
    %v3511 = vadd.f32 %v3509, %v3510
    %v3512 = vsel %vm512, %v3500, 0.0
    %v3513 = vadd.f32 %v3511, %v3512
    %v3514 = vsel %vm512, %v3501, 0.0
    %v3515 = vadd.f32 %v3513, %v3514
    %v3516 = vsel %vm512, %v3502, 0.0
    %v3517 = vadd.f32 %v3515, %v3516
    %v3518 = vsel %vm512, %v3503, 0.0
    %v3519 = vadd.f32 %v3517, %v3518
    %v3520 = vsel %vm512, %v3504, 0.0
    %v3521 = vadd.f32 %v3519, %v3520
    %v3522 = vsel %vm512, %v3505, 0.0
    %v3523 = vadd.f32 %v3521, %v3522
    %v3524 = vsel %vm512, %v3506, 0.0
    %v3525 = vadd.f32 %v3523, %v3524
    %v3526 = vrot.slane %v3525, 4
    %v3527 = vadd.f32 %v3525, %v3526
    %v3528 = vrot.slane %v3527, 2
    %v3529 = vadd.f32 %v3527, %v3528
    %v3530 = vrot.slane %v3529, 1
    %v3531 = vadd.f32 %v3529, %v3530
    %v3532 = vmul.f32 %v3531, 0.0125
    %v3533 = vadd.f32 %v3532, 1e-05
    %v3534 = vrsqrt.pop %v3533
    %v3535 = vmul.f32 %v3487, %v3534
    %v3536 = vmul.f32 %v3488, %v3534
    %v3537 = vmul.f32 %v3489, %v3534
    %v3538 = vmul.f32 %v3490, %v3534
    %v3539 = vmul.f32 %v3491, %v3534
    %v3540 = vmul.f32 %v3492, %v3534
    %v3541 = vmul.f32 %v3493, %v3534
    %v3542 = vmul.f32 %v3494, %v3534
    %v3543 = vmul.f32 %v3495, %v3534
    %v3544 = vmul.f32 %v3496, %v3534
    %v3545 = vmul.f32 %v3535, %v3459
    %v3546 = vmul.f32 %v3536, %v3459
    %v3547 = vmul.f32 %v3537, %v3459
    %v3548 = vmul.f32 %v3538, %v3459
    %v3549 = vmul.f32 %v3539, %v3459
    %v3550 = vmul.f32 %v3540, %v3459
    %v3551 = vmul.f32 %v3541, %v3459
    %v3552 = vmul.f32 %v3542, %v3459
    %v3553 = vmul.f32 %v3543, %v3459
    %v3554 = vmul.f32 %v3544, %v3459
    %v3555 = vadd.f32 %v3545, %v3460
    %v3556 = vadd.f32 %v3546, %v3460
    %v3557 = vadd.f32 %v3547, %v3460
    %v3558 = vadd.f32 %v3548, %v3460
    %v3559 = vadd.f32 %v3549, %v3460
    %v3560 = vadd.f32 %v3550, %v3460
    %v3561 = vadd.f32 %v3551, %v3460
    %v3562 = vadd.f32 %v3552, %v3460
    %v3563 = vadd.f32 %v3553, %v3460
    %v3564 = vadd.f32 %v3554, %v3460
    %vm3565 = vcmp.gt.f32.partialorder %v3555, 0.0
    %vm3566 = vcmp.gt.f32.partialorder %v3556, 0.0
    %vm3567 = vcmp.gt.f32.partialorder %v3557, 0.0
    %vm3568 = vcmp.gt.f32.partialorder %v3558, 0.0
    %vm3569 = vcmp.gt.f32.partialorder %v3559, 0.0
    %vm3570 = vcmp.gt.f32.partialorder %v3560, 0.0
    %vm3571 = vcmp.gt.f32.partialorder %v3561, 0.0
    %vm3572 = vcmp.gt.f32.partialorder %v3562, 0.0
    %vm3573 = vcmp.gt.f32.partialorder %v3563, 0.0
    %vm3574 = vcmp.gt.f32.partialorder %v3564, 0.0
    %v3575 = vmul.f32 %v3555, 0.2
    %v3576 = vmul.f32 %v3556, 0.2
    %v3577 = vmul.f32 %v3557, 0.2
    %v3578 = vmul.f32 %v3558, 0.2
    %v3579 = vmul.f32 %v3559, 0.2
    %v3580 = vmul.f32 %v3560, 0.2
    %v3581 = vmul.f32 %v3561, 0.2
    %v3582 = vmul.f32 %v3562, 0.2
    %v3583 = vmul.f32 %v3563, 0.2
    %v3584 = vmul.f32 %v3564, 0.2
    %v3585 = vsel %vm3565, %v3555, %v3575
    %v3586 = vsel %vm3566, %v3556, %v3576
    %v3587 = vsel %vm3567, %v3557, %v3577
    %v3588 = vsel %vm3568, %v3558, %v3578
    %v3589 = vsel %vm3569, %v3559, %v3579
    %v3590 = vsel %vm3570, %v3560, %v3580
    %v3591 = vsel %vm3571, %v3561, %v3581
    %v3592 = vsel %vm3572, %v3562, %v3582
    %v3593 = vsel %vm3573, %v3563, %v3583
    %v3594 = vsel %vm3574, %v3564, %v3584
    %v3595 = vpack.c.bf16 %v3586, %v3585
    %v3596 = vpack.c.bf16 %v3588, %v3587
    %v3597 = vpack.c.bf16 %v3590, %v3589
    %v3598 = vpack.c.bf16 %v3592, %v3591
    %v3599 = vpack.c.bf16 %v3594, %v3593
    %vm3600 = vcmp.ne.s32.totalorder %v218, 20
    %vm3601 = vcmp.ne.s32.totalorder %v219, 20
    %vm3602 = vcmp.ne.s32.totalorder %v220, 20
    %vm3603 = vcmp.ne.s32.totalorder %v221, 20
    %vm3604 = vcmp.ne.s32.totalorder %v222, 20
    %vm3605 = vmand %vm282, %vm3600
    %vm3606 = vmand %vm285, %vm3601
    %vm3607 = vmand %vm288, %vm3602
    %vm3608 = vmand %vm291, %vm3603
    %vm3609 = vmand %vm294, %vm3604
    %v3610 = vsel %vm3605, 1.0, 0.0
    %v3611 = vsel %vm3606, 1.0, 0.0
    %v3612 = vsel %vm3607, 1.0, 0.0
    %v3613 = vsel %vm3608, 1.0, 0.0
    %v3614 = vsel %vm3609, 1.0, 0.0
    %v3615 = vpack.c.bf16 %v3611, %v3610
    %v3616 = vpack.c.bf16 %v3613, %v3612
    %v3617 = vpack.c.bf16 %v3614, %v3614
    %vm3618 = vcmask 654336
    %v3620 = vsel %vm3618, %v3615, 0
    %v3623 = vsel %vm3618, %v3616, 0
    %v3626 = vsel %vm3618, %v3617, 0
    %3628 = vmatprep.subr.bf16.mxu0 0
    %3629 = vmatpush1.bf16.msra.mxu0 0
    %3630 = vmatprep.subr.bf16.mxu0 0
    %3631 = vmatpush1.bf16.msra.mxu0 0
    %3632 = vmatprep.subr.bf16.mxu0 0
    %3633 = vmatpush1.bf16.msra.mxu0 0
    %3634 = vmatprep.subr.bf16.mxu0 0
    %3635 = vmatpush1.bf16.msra.mxu0 %v3599
    %3636 = vmatprep.subr.bf16.mxu0 0
    %3637 = vmatpush1.bf16.msra.mxu0 %v3598
    %3638 = vmatprep.subr.bf16.mxu0 0
    %3639 = vmatpush1.bf16.msra.mxu0 %v3597
    %3640 = vmatprep.subr.bf16.mxu0 0
    %3641 = vmatpush1.bf16.msra.mxu0 %v3596
    %3642 = vmatprep.subr.bf16.mxu0 0
    %3643 = vmatpush1.bf16.msra.mxu0 %v3595
    %3644 = vmatprep.subr.bf16.mxu0 0
    %3645 = vmatpush2.bf16.msra.mxu0 0
    %3646 = vmatprep.subr.bf16.mxu0 0
    %3647 = vmatpush2.bf16.msra.mxu0 0
    %3648 = vmatprep.subr.bf16.mxu0 0
    %3649 = vmatpush2.bf16.msra.mxu0 0
    %3650 = vmatprep.subr.bf16.mxu0 0
    %3651 = vmatpush2.bf16.msra.mxu0 0
    %3652 = vmatprep.subr.bf16.mxu0 0
    %3653 = vmatpush2.bf16.msra.mxu0 0
    %3654 = vmatprep.subr.bf16.mxu0 0
    %3655 = vmatpush2.bf16.msra.mxu0 0
    %3656 = vmatprep.subr.bf16.mxu0 0
    %3657 = vmatpush2.bf16.msra.mxu0 0
    %3658 = vmatprep.subr.bf16.mxu0 0
    %3659 = vmatpush2.bf16.msra.mxu0 0
    %3660 = vmatprep.mubr.bf16.mxu0 0
    %3661 = vmatmul.mubr.bf16.gmra.mxu0 %v3620
    %v3662 = vpop.f32.mrf.mxu0
    %v3663 = vadd.f32 0.0, %v3662
    %v3664 = vpop.f32.mrf.mxu0
    %v3665 = vpop.f32.mrf.mxu0
    %v3666 = vadd.f32 0.0, %v3665
    %v3667 = vpop.f32.mrf.mxu0
    %3668 = vmatprep.mubr.bf16.mxu0 0
    %3669 = vmatmul.mubr.bf16.gmra.mxu0 %v3623
    %v3670 = vpop.f32.mrf.mxu0
    %v3671 = vadd.f32 0.0, %v3670
    %v3672 = vpop.f32.mrf.mxu0
    %v3673 = vpop.f32.mrf.mxu0
    %v3674 = vadd.f32 0.0, %v3673
    %v3675 = vpop.f32.mrf.mxu0
    %3676 = vmatprep.mubr.bf16.mxu0 0
    %3677 = vmatmul.mubr.bf16.gmra.mxu0 %v3626
    %v3678 = vpop.f32.mrf.mxu0
    %v3679 = vadd.f32 0.0, %v3678
    %v3680 = vpop.f32.mrf.mxu0
    %v3681 = vpop.f32.mrf.mxu0
    %v3682 = vpop.f32.mrf.mxu0
    %3683 = vdwg.mxu0
    %v3684 = vpack.c.bf16 %v3666, %v3663
    %v3685 = vpack.c.bf16 %v3674, %v3671
    %v3686 = vpack.c.bf16 %v3679, %v3679
    %v3687 = vpack.c.bf16 %v854, %v854
    %v3689 = vsel %vm3618, %v902, 0
    %v3692 = vsel %vm3618, %v905, 0
    %v3695 = vsel %vm3618, %v3687, 0
    %3697 = vmatprep.subr.bf16.mxu0 0
    %3698 = vmatpush1.bf16.msra.mxu0 0
    %3699 = vmatprep.subr.bf16.mxu0 0
    %3700 = vmatpush1.bf16.msra.mxu0 0
    %3701 = vmatprep.subr.bf16.mxu0 0
    %3702 = vmatpush1.bf16.msra.mxu0 0
    %3703 = vmatprep.subr.bf16.mxu0 0
    %3704 = vmatpush1.bf16.msra.mxu0 %v3599
    %3705 = vmatprep.subr.bf16.mxu0 0
    %3706 = vmatpush1.bf16.msra.mxu0 %v3598
    %3707 = vmatprep.subr.bf16.mxu0 0
    %3708 = vmatpush1.bf16.msra.mxu0 %v3597
    %3709 = vmatprep.subr.bf16.mxu0 0
    %3710 = vmatpush1.bf16.msra.mxu0 %v3596
    %3711 = vmatprep.subr.bf16.mxu0 0
    %3712 = vmatpush1.bf16.msra.mxu0 %v3595
    %3713 = vmatprep.subr.bf16.mxu0 0
    %3714 = vmatpush2.bf16.msra.mxu0 0
    %3715 = vmatprep.subr.bf16.mxu0 0
    %3716 = vmatpush2.bf16.msra.mxu0 0
    %3717 = vmatprep.subr.bf16.mxu0 0
    %3718 = vmatpush2.bf16.msra.mxu0 0
    %3719 = vmatprep.subr.bf16.mxu0 0
    %3720 = vmatpush2.bf16.msra.mxu0 0
    %3721 = vmatprep.subr.bf16.mxu0 0
    %3722 = vmatpush2.bf16.msra.mxu0 0
    %3723 = vmatprep.subr.bf16.mxu0 0
    %3724 = vmatpush2.bf16.msra.mxu0 0
    %3725 = vmatprep.subr.bf16.mxu0 0
    %3726 = vmatpush2.bf16.msra.mxu0 0
    %3727 = vmatprep.subr.bf16.mxu0 0
    %3728 = vmatpush2.bf16.msra.mxu0 0
    %3729 = vmatprep.mubr.bf16.mxu0 0
    %3730 = vmatmul.mubr.bf16.gmra.mxu0 %v3689
    %v3731 = vpop.f32.mrf.mxu0
    %v3732 = vadd.f32 0.0, %v3731
    %v3733 = vpop.f32.mrf.mxu0
    %v3734 = vpop.f32.mrf.mxu0
    %v3735 = vadd.f32 0.0, %v3734
    %v3736 = vpop.f32.mrf.mxu0
    %3737 = vmatprep.mubr.bf16.mxu0 0
    %3738 = vmatmul.mubr.bf16.gmra.mxu0 %v3692
    %v3739 = vpop.f32.mrf.mxu0
    %v3740 = vadd.f32 0.0, %v3739
    %v3741 = vpop.f32.mrf.mxu0
    %v3742 = vpop.f32.mrf.mxu0
    %v3743 = vadd.f32 0.0, %v3742
    %v3744 = vpop.f32.mrf.mxu0
    %3745 = vmatprep.mubr.bf16.mxu0 0
    %3746 = vmatmul.mubr.bf16.gmra.mxu0 %v3695
    %v3747 = vpop.f32.mrf.mxu0
    %v3748 = vadd.f32 0.0, %v3747
    %v3749 = vpop.f32.mrf.mxu0
    %v3750 = vpop.f32.mrf.mxu0
    %v3751 = vpop.f32.mrf.mxu0
    %3752 = vdwg.mxu0
    %v3753 = vpack.c.bf16 %v3735, %v3732
    %v3754 = vpack.c.bf16 %v3743, %v3740
    %v3755 = vpack.c.bf16 %v3748, %v3748
    %v3756 = vpack.c.bf16 %v1290, %v1290
    %v3758 = vsel %vm3618, %v1338, 0
    %v3761 = vsel %vm3618, %v1341, 0
    %v3764 = vsel %vm3618, %v3756, 0
    %3766 = vmatprep.subr.bf16.mxu0 0
    %3767 = vmatpush1.bf16.msra.mxu0 0
    %3768 = vmatprep.subr.bf16.mxu0 0
    %3769 = vmatpush1.bf16.msra.mxu0 0
    %3770 = vmatprep.subr.bf16.mxu0 0
    %3771 = vmatpush1.bf16.msra.mxu0 0
    %3772 = vmatprep.subr.bf16.mxu0 0
    %3773 = vmatpush1.bf16.msra.mxu0 %v3599
    %3774 = vmatprep.subr.bf16.mxu0 0
    %3775 = vmatpush1.bf16.msra.mxu0 %v3598
    %3776 = vmatprep.subr.bf16.mxu0 0
    %3777 = vmatpush1.bf16.msra.mxu0 %v3597
    %3778 = vmatprep.subr.bf16.mxu0 0
    %3779 = vmatpush1.bf16.msra.mxu0 %v3596
    %3780 = vmatprep.subr.bf16.mxu0 0
    %3781 = vmatpush1.bf16.msra.mxu0 %v3595
    %3782 = vmatprep.subr.bf16.mxu0 0
    %3783 = vmatpush2.bf16.msra.mxu0 0
    %3784 = vmatprep.subr.bf16.mxu0 0
    %3785 = vmatpush2.bf16.msra.mxu0 0
    %3786 = vmatprep.subr.bf16.mxu0 0
    %3787 = vmatpush2.bf16.msra.mxu0 0
    %3788 = vmatprep.subr.bf16.mxu0 0
    %3789 = vmatpush2.bf16.msra.mxu0 0
    %3790 = vmatprep.subr.bf16.mxu0 0
    %3791 = vmatpush2.bf16.msra.mxu0 0
    %3792 = vmatprep.subr.bf16.mxu0 0
    %3793 = vmatpush2.bf16.msra.mxu0 0
    %3794 = vmatprep.subr.bf16.mxu0 0
    %3795 = vmatpush2.bf16.msra.mxu0 0
    %3796 = vmatprep.subr.bf16.mxu0 0
    %3797 = vmatpush2.bf16.msra.mxu0 0
    %3798 = vmatprep.mubr.bf16.mxu0 0
    %3799 = vmatmul.mubr.bf16.gmra.mxu0 %v3758
    %v3800 = vpop.f32.mrf.mxu0
    %v3801 = vadd.f32 0.0, %v3800
    %v3802 = vpop.f32.mrf.mxu0
    %v3803 = vpop.f32.mrf.mxu0
    %v3804 = vadd.f32 0.0, %v3803
    %v3805 = vpop.f32.mrf.mxu0
    %3806 = vmatprep.mubr.bf16.mxu0 0
    %3807 = vmatmul.mubr.bf16.gmra.mxu0 %v3761
    %v3808 = vpop.f32.mrf.mxu0
    %v3809 = vadd.f32 0.0, %v3808
    %v3810 = vpop.f32.mrf.mxu0
    %v3811 = vpop.f32.mrf.mxu0
    %v3812 = vadd.f32 0.0, %v3811
    %v3813 = vpop.f32.mrf.mxu0
    %3814 = vmatprep.mubr.bf16.mxu0 0
    %3815 = vmatmul.mubr.bf16.gmra.mxu0 %v3764
    %v3816 = vpop.f32.mrf.mxu0
    %v3817 = vadd.f32 0.0, %v3816
    %v3818 = vpop.f32.mrf.mxu0
    %v3819 = vpop.f32.mrf.mxu0
    %v3820 = vpop.f32.mrf.mxu0
    %3821 = vdwg.mxu0
    %v3822 = vpack.c.bf16 %v3804, %v3801
    %v3823 = vpack.c.bf16 %v3812, %v3809
    %v3824 = vpack.c.bf16 %v3817, %v3817
    %vm3825 = vcmp.ne.s32.totalorder %v218, 19
    %vm3826 = vcmp.ne.s32.totalorder %v219, 19
    %vm3827 = vcmp.ne.s32.totalorder %v220, 19
    %vm3828 = vcmp.ne.s32.totalorder %v221, 19
    %vm3829 = vcmp.ne.s32.totalorder %v222, 19
    %vm3830 = vmand %vm1654, %vm3825
    %vm3831 = vmand %vm1657, %vm3826
    %vm3832 = vmand %vm1660, %vm3827
    %vm3833 = vmand %vm1663, %vm3828
    %vm3834 = vmand %vm1666, %vm3829
    %v3835 = vsel %vm3830, 1.0, 0.0
    %v3836 = vsel %vm3831, 1.0, 0.0
    %v3837 = vsel %vm3832, 1.0, 0.0
    %v3838 = vsel %vm3833, 1.0, 0.0
    %v3839 = vsel %vm3834, 1.0, 0.0
    %v3840 = vpack.c.bf16 %v3836, %v3835
    %v3841 = vpack.c.bf16 %v3838, %v3837
    %v3842 = vpack.c.bf16 %v3839, %v3839
    %v3844 = vsel %vm3618, %v3840, 0
    %v3847 = vsel %vm3618, %v3841, 0
    %v3850 = vsel %vm3618, %v3842, 0
    %3852 = vmatprep.subr.bf16.mxu0 0
    %3853 = vmatpush1.bf16.msra.mxu0 0
    %3854 = vmatprep.subr.bf16.mxu0 0
    %3855 = vmatpush1.bf16.msra.mxu0 0
    %3856 = vmatprep.subr.bf16.mxu0 0
    %3857 = vmatpush1.bf16.msra.mxu0 0
    %3858 = vmatprep.subr.bf16.mxu0 0
    %3859 = vmatpush1.bf16.msra.mxu0 %v3599
    %3860 = vmatprep.subr.bf16.mxu0 0
    %3861 = vmatpush1.bf16.msra.mxu0 %v3598
    %3862 = vmatprep.subr.bf16.mxu0 0
    %3863 = vmatpush1.bf16.msra.mxu0 %v3597
    %3864 = vmatprep.subr.bf16.mxu0 0
    %3865 = vmatpush1.bf16.msra.mxu0 %v3596
    %3866 = vmatprep.subr.bf16.mxu0 0
    %3867 = vmatpush1.bf16.msra.mxu0 %v3595
    %3868 = vmatprep.subr.bf16.mxu0 0
    %3869 = vmatpush2.bf16.msra.mxu0 0
    %3870 = vmatprep.subr.bf16.mxu0 0
    %3871 = vmatpush2.bf16.msra.mxu0 0
    %3872 = vmatprep.subr.bf16.mxu0 0
    %3873 = vmatpush2.bf16.msra.mxu0 0
    %3874 = vmatprep.subr.bf16.mxu0 0
    %3875 = vmatpush2.bf16.msra.mxu0 0
    %3876 = vmatprep.subr.bf16.mxu0 0
    %3877 = vmatpush2.bf16.msra.mxu0 0
    %3878 = vmatprep.subr.bf16.mxu0 0
    %3879 = vmatpush2.bf16.msra.mxu0 0
    %3880 = vmatprep.subr.bf16.mxu0 0
    %3881 = vmatpush2.bf16.msra.mxu0 0
    %3882 = vmatprep.subr.bf16.mxu0 0
    %3883 = vmatpush2.bf16.msra.mxu0 0
    %3884 = vmatprep.mubr.bf16.mxu0 0
    %3885 = vmatmul.mubr.bf16.gmra.mxu0 %v3844
    %v3886 = vpop.f32.mrf.mxu0
    %v3887 = vadd.f32 0.0, %v3886
    %v3888 = vpop.f32.mrf.mxu0
    %v3889 = vpop.f32.mrf.mxu0
    %v3890 = vadd.f32 0.0, %v3889
    %v3891 = vpop.f32.mrf.mxu0
    %3892 = vmatprep.mubr.bf16.mxu0 0
    %3893 = vmatmul.mubr.bf16.gmra.mxu0 %v3847
    %v3894 = vpop.f32.mrf.mxu0
    %v3895 = vadd.f32 0.0, %v3894
    %v3896 = vpop.f32.mrf.mxu0
    %v3897 = vpop.f32.mrf.mxu0
    %v3898 = vadd.f32 0.0, %v3897
    %v3899 = vpop.f32.mrf.mxu0
    %3900 = vmatprep.mubr.bf16.mxu0 0
    %3901 = vmatmul.mubr.bf16.gmra.mxu0 %v3850
    %v3902 = vpop.f32.mrf.mxu0
    %v3903 = vadd.f32 0.0, %v3902
    %v3904 = vpop.f32.mrf.mxu0
    %v3905 = vpop.f32.mrf.mxu0
    %v3906 = vpop.f32.mrf.mxu0
    %3907 = vdwg.mxu0
    %v3908 = vpack.c.bf16 %v3890, %v3887
    %v3909 = vpack.c.bf16 %v3898, %v3895
    %v3910 = vpack.c.bf16 %v3903, %v3903
    %3914 = vrot.lane.b32.xlu0 %v3753, 64
    %v3915 = vpop.permute.xlu0 %3914
    %3916 = vrot.lane.b32.xlu0 %v3754, 64
    %v3917 = vpop.permute.xlu0 %3916
    %3918 = vrot.lane.b32.xlu0 %v3755, 64
    %v3919 = vpop.permute.xlu0 %3918
    %3923 = vrot.lane.b32.xlu0 %v3908, 64
    %v3924 = vpop.permute.xlu0 %3923
    %3925 = vrot.lane.b32.xlu0 %v3909, 64
    %v3926 = vpop.permute.xlu0 %3925
    %3927 = vrot.lane.b32.xlu0 %v3910, 64
    %v3928 = vpop.permute.xlu0 %3927
    %v3931 = vsel %vm512, %v3684, %v3915
    %v3935 = vsel %vm512, %v3685, %v3917
    %v3939 = vsel %vm512, %v3686, %v3919
    %v3943 = vsel %vm512, %v3822, %v3924
    %v3947 = vsel %vm512, %v3823, %v3926
    %v3951 = vsel %vm512, %v3824, %v3928
    %v3953 = vld [vmem:[%s4] sm:$0xf]
    %v3954 = vld [vmem:[%s4 + $0x4] sm:$0xf]
    %v3955 = vld [vmem:[%s4 + $0x8] sm:$0xf]
    %v3956 = vld [vmem:[%s4 + $0xc] sm:$0xf]
    %v3957 = vld [vmem:[%s4 + $0x10] sm:$0xf]
    %v3958 = vld [vmem:[%s4 + $0x14] sm:$0xf]
    %v3959 = vld [vmem:[%s4 + $0x18] sm:$0xf]
    %v3960 = vld [vmem:[%s4 + $0x1c] sm:$0xf]
    %v3961 = vld [vmem:[%s4 + $0x20] sm:$0xf]
    %v3962 = vld [vmem:[%s4 + $0x24] sm:$0xf]
    %v3963 = vld [vmem:[%s4 + $0x28] sm:$0xf]
    %v3964 = vld [vmem:[%s4 + $0x2c] sm:$0xf]
    %v3965 = vld [vmem:[%s4 + $0x30] sm:$0xf]
    %v3966 = vld [vmem:[%s4 + $0x34] sm:$0xf]
    %v3967 = vld [vmem:[%s4 + $0x38] sm:$0xf]
    %v3968 = vld [vmem:[%s4 + $0x3c] sm:$0xf]
    %v3969 = vld [vmem:[%s4 + $0x40] sm:$0xf]
    %v3970 = vld [vmem:[%s4 + $0x44] sm:$0xf]
    %v3971 = vld [vmem:[%s4 + $0x48] sm:$0xf]
    %v3972 = vld [vmem:[%s4 + $0x4c] sm:$0xf]
    %v3973 = vld [vmem:[%s4 + $0x50] sm:$0xf]
    %v3974 = vld [vmem:[%s4 + $0x54] sm:$0xf]
    %v3975 = vld [vmem:[%s4 + $0x58] sm:$0xf]
    %v3976 = vld [vmem:[%s4 + $0x5c] sm:$0xf]
    %v3977 = vld [vmem:[%s4 + $0x60] sm:$0xf]
    %v3978 = vld [vmem:[%s4 + $0x64] sm:$0xf]
    %v3979 = vld [vmem:[%s4 + $0x68] sm:$0xf]
    %v3980 = vld [vmem:[%s4 + $0x6c] sm:$0xf]
    %v3981 = vld [vmem:[%s4 + $0x70] sm:$0xf]
    %v3982 = vld [vmem:[%s4 + $0x74] sm:$0xf]
    %v3983 = vld [vmem:[%s4 + $0x78] sm:$0xf]
    %v3984 = vld [vmem:[%s4 + $0x7c] sm:$0xf]
    %v4017 = vunpack.c.l.b16 %v3953
    %v4018 = vunpack.c.l.b16 %v3954
    %v4019 = vunpack.c.l.b16 %v3955
    %v4020 = vunpack.c.l.b16 %v3956
    %v4021 = vunpack.c.l.b16 %v3957
    %v4022 = vunpack.c.l.b16 %v3958
    %v4023 = vunpack.c.l.b16 %v3959
    %v4024 = vunpack.c.l.b16 %v3960
    %v4025 = vunpack.c.l.b16 %v3961
    %v4026 = vunpack.c.l.b16 %v3962
    %v4027 = vunpack.c.l.b16 %v3963
    %v4028 = vunpack.c.l.b16 %v3964
    %v4029 = vunpack.c.l.b16 %v3965
    %v4030 = vunpack.c.l.b16 %v3966
    %v4031 = vunpack.c.l.b16 %v3967
    %v4032 = vunpack.c.l.b16 %v3968
    %v4033 = vunpack.c.l.b16 %v3969
    %v4034 = vunpack.c.l.b16 %v3970
    %v4035 = vunpack.c.l.b16 %v3971
    %v4036 = vunpack.c.l.b16 %v3972
    %v4037 = vunpack.c.l.b16 %v3973
    %v4038 = vunpack.c.l.b16 %v3974
    %v4039 = vunpack.c.l.b16 %v3975
    %v4040 = vunpack.c.l.b16 %v3976
    %v4041 = vunpack.c.l.b16 %v3977
    %v4042 = vunpack.c.l.b16 %v3978
    %v4043 = vunpack.c.l.b16 %v3979
    %v4044 = vunpack.c.l.b16 %v3980
    %v4045 = vunpack.c.l.b16 %v3981
    %v4046 = vunpack.c.l.b16 %v3982
    %v4047 = vunpack.c.l.b16 %v3983
    %v4048 = vunpack.c.l.b16 %v3984
    %v4049 = vpack.c.b16 %v4018, %v4017
    %v4050 = vpack.c.b16 %v4020, %v4019
    %v4051 = vpack.c.b16 %v4022, %v4021
    %v4052 = vpack.c.b16 %v4024, %v4023
    %v4053 = vpack.c.b16 %v4026, %v4025
    %v4054 = vpack.c.b16 %v4028, %v4027
    %v4055 = vpack.c.b16 %v4030, %v4029
    %v4056 = vpack.c.b16 %v4032, %v4031
    %v4057 = vpack.c.b16 %v4034, %v4033
    %v4058 = vpack.c.b16 %v4036, %v4035
    %v4059 = vpack.c.b16 %v4038, %v4037
    %v4060 = vpack.c.b16 %v4040, %v4039
    %v4061 = vpack.c.b16 %v4042, %v4041
    %v4062 = vpack.c.b16 %v4044, %v4043
    %v4063 = vpack.c.b16 %v4046, %v4045
    %v4064 = vpack.c.b16 %v4048, %v4047
    %4081 = vmatprep.subr.bf16.mxu0 0
    %4082 = vmatpush1.bf16.msra.mxu0 %v4056
    %4083 = vmatprep.subr.bf16.mxu0 0
    %4084 = vmatpush1.bf16.msra.mxu0 %v4055
    %4085 = vmatprep.subr.bf16.mxu0 0
    %4086 = vmatpush1.bf16.msra.mxu0 %v4054
    %4087 = vmatprep.subr.bf16.mxu0 0
    %4088 = vmatpush1.bf16.msra.mxu0 %v4053
    %4089 = vmatprep.subr.bf16.mxu0 0
    %4090 = vmatpush1.bf16.msra.mxu0 %v4052
    %4091 = vmatprep.subr.bf16.mxu0 0
    %4092 = vmatpush1.bf16.msra.mxu0 %v4051
    %4093 = vmatprep.subr.bf16.mxu0 0
    %4094 = vmatpush1.bf16.msra.mxu0 %v4050
    %4095 = vmatprep.subr.bf16.mxu0 0
    %4096 = vmatpush1.bf16.msra.mxu0 %v4049
    %4097 = vmatprep.subr.bf16.mxu0 0
    %4098 = vmatpush2.bf16.msra.mxu0 %v4064
    %4099 = vmatprep.subr.bf16.mxu0 0
    %4100 = vmatpush2.bf16.msra.mxu0 %v4063
    %4101 = vmatprep.subr.bf16.mxu0 0
    %4102 = vmatpush2.bf16.msra.mxu0 %v4062
    %4103 = vmatprep.subr.bf16.mxu0 0
    %4104 = vmatpush2.bf16.msra.mxu0 %v4061
    %4105 = vmatprep.subr.bf16.mxu0 0
    %4106 = vmatpush2.bf16.msra.mxu0 %v4060
    %4107 = vmatprep.subr.bf16.mxu0 0
    %4108 = vmatpush2.bf16.msra.mxu0 %v4059
    %4109 = vmatprep.subr.bf16.mxu0 0
    %4110 = vmatpush2.bf16.msra.mxu0 %v4058
    %4111 = vmatprep.subr.bf16.mxu0 0
    %4112 = vmatpush2.bf16.msra.mxu0 %v4057
    %4113 = vmatprep.mubr.bf16.mxu0 %v3943
    %4114 = vmatmul.mubr.bf16.gmra.mxu0 %v3931
    %v4115 = vpop.f32.mrf.mxu0
    %v4116 = vadd.f32 0.0, %v4115
    %v4117 = vpop.f32.mrf.mxu0
    %v4118 = vpop.f32.mrf.mxu0
    %v4119 = vadd.f32 0.0, %v4118
    %v4120 = vpop.f32.mrf.mxu0
    %4121 = vmatprep.mubr.bf16.mxu0 %v3947
    %4122 = vmatmul.mubr.bf16.gmra.mxu0 %v3935
    %v4123 = vpop.f32.mrf.mxu0
    %v4124 = vadd.f32 0.0, %v4123
    %v4125 = vpop.f32.mrf.mxu0
    %v4126 = vpop.f32.mrf.mxu0
    %v4127 = vadd.f32 0.0, %v4126
    %v4128 = vpop.f32.mrf.mxu0
    %4129 = vmatprep.mubr.bf16.mxu0 %v3951
    %4130 = vmatmul.mubr.bf16.gmra.mxu0 %v3939
    %v4131 = vpop.f32.mrf.mxu0
    %v4132 = vadd.f32 0.0, %v4131
    %v4133 = vpop.f32.mrf.mxu0
    %v4134 = vpop.f32.mrf.mxu0
    %v4135 = vpop.f32.mrf.mxu0
    %4136 = vdwg.mxu0
    %v4137 = vld [vmem:[%s7 + $0x4] ss:$0 sm:$0xff]
    %v4138 = vld [vmem:[%s7 + $0x5] ss:$0 sm:$0xff]
    %v4139 = vadd.f32 %v4116, %v4119
    %v4140 = vadd.f32 %v4139, %v4124
    %v4141 = vadd.f32 %v4140, %v4127
    %v4142 = vadd.f32 %v4141, %v4132
    %v4143 = vrot.slane %v4142, 4
    %v4144 = vadd.f32 %v4142, %v4143
    %v4145 = vrot.slane %v4144, 2
    %v4146 = vadd.f32 %v4144, %v4145
    %v4147 = vrot.slane %v4146, 1
    %v4148 = vadd.f32 %v4146, %v4147
    %v4149 = vmul.f32 %v4148, 0.025
    %v4150 = vsub.f32 %v4116, %v4149
    %v4151 = vsub.f32 %v4119, %v4149
    %v4152 = vsub.f32 %v4124, %v4149
    %v4153 = vsub.f32 %v4127, %v4149
    %v4154 = vsub.f32 %v4132, %v4149
    %v4155 = vmul.f32 %v4150, %v4150
    %v4156 = vmul.f32 %v4151, %v4151
    %v4157 = vmul.f32 %v4152, %v4152
    %v4158 = vmul.f32 %v4153, %v4153
    %v4159 = vmul.f32 %v4154, %v4154
    %v4160 = vadd.f32 %v4155, %v4156
    %v4161 = vadd.f32 %v4160, %v4157
    %v4162 = vadd.f32 %v4161, %v4158
    %v4163 = vadd.f32 %v4162, %v4159
    %v4164 = vrot.slane %v4163, 4
    %v4165 = vadd.f32 %v4163, %v4164
    %v4166 = vrot.slane %v4165, 2
    %v4167 = vadd.f32 %v4165, %v4166
    %v4168 = vrot.slane %v4167, 1
    %v4169 = vadd.f32 %v4167, %v4168
    %v4170 = vmul.f32 %v4169, 0.025
    %v4171 = vadd.f32 %v4170, 1e-05
    %v4172 = vrsqrt.pop %v4171
    %v4173 = vmul.f32 %v4150, %v4172
    %v4174 = vmul.f32 %v4151, %v4172
    %v4175 = vmul.f32 %v4152, %v4172
    %v4176 = vmul.f32 %v4153, %v4172
    %v4177 = vmul.f32 %v4154, %v4172
    %v4178 = vmul.f32 %v4173, %v4137
    %v4179 = vmul.f32 %v4174, %v4137
    %v4180 = vmul.f32 %v4175, %v4137
    %v4181 = vmul.f32 %v4176, %v4137
    %v4182 = vmul.f32 %v4177, %v4137
    %v4183 = vadd.f32 %v4178, %v4138
    %v4184 = vadd.f32 %v4179, %v4138
    %v4185 = vadd.f32 %v4180, %v4138
    %v4186 = vadd.f32 %v4181, %v4138
    %v4187 = vadd.f32 %v4182, %v4138
    %vm4188 = vcmp.gt.f32.partialorder %v4183, 0.0
    %vm4189 = vcmp.gt.f32.partialorder %v4184, 0.0
    %vm4190 = vcmp.gt.f32.partialorder %v4185, 0.0
    %vm4191 = vcmp.gt.f32.partialorder %v4186, 0.0
    %vm4192 = vcmp.gt.f32.partialorder %v4187, 0.0
    %v4193 = vmul.f32 %v4183, 0.2
    %v4194 = vmul.f32 %v4184, 0.2
    %v4195 = vmul.f32 %v4185, 0.2
    %v4196 = vmul.f32 %v4186, 0.2
    %v4197 = vmul.f32 %v4187, 0.2
    %v4198 = vsel %vm4188, %v4183, %v4193
    %v4199 = vsel %vm4189, %v4184, %v4194
    %v4200 = vsel %vm4190, %v4185, %v4195
    %v4201 = vsel %vm4191, %v4186, %v4196
    %v4202 = vsel %vm4192, %v4187, %v4197
    %v4203 = vpack.c.bf16 %v4199, %v4198
    %v4204 = vpack.c.bf16 %v4201, %v4200
    %v4205 = vpack.c.bf16 %v4202, %v4202
    %vm4206 = vcmp.ne.s32.totalorder %v218, 10
    %vm4207 = vcmp.ne.s32.totalorder %v219, 10
    %vm4208 = vcmp.ne.s32.totalorder %v220, 10
    %vm4209 = vmand %vm282, %vm4206
    %vm4210 = vmand %vm285, %vm4207
    %vm4211 = vmand %vm288, %vm4208
    %v4212 = vsel %vm4209, 1.0, 0.0
    %v4213 = vsel %vm4210, 1.0, 0.0
    %v4214 = vsel %vm4211, 1.0, 0.0
    %v4215 = vpack.c.bf16 %v4213, %v4212
    %v4216 = vpack.c.bf16 %v4214, %v4214
    %vm4217 = vcmask 326656
    %v4219 = vsel %vm4217, %v4215, 0
    %v4222 = vsel %vm4217, %v4216, 0
    %vm4224 = vcmask 1043456
    %v4226 = vsel %vm4224, %v4205, 0
    %4228 = vmatprep.subr.bf16.mxu0 0
    %4229 = vmatpush1.bf16.msra.mxu0 0
    %4230 = vmatprep.subr.bf16.mxu0 0
    %4231 = vmatpush1.bf16.msra.mxu0 0
    %4232 = vmatprep.subr.bf16.mxu0 0
    %4233 = vmatpush1.bf16.msra.mxu0 0
    %4234 = vmatprep.subr.bf16.mxu0 0
    %4235 = vmatpush1.bf16.msra.mxu0 0
    %4236 = vmatprep.subr.bf16.mxu0 0
    %4237 = vmatpush1.bf16.msra.mxu0 0
    %4238 = vmatprep.subr.bf16.mxu0 0
    %4239 = vmatpush1.bf16.msra.mxu0 %v4226
    %4240 = vmatprep.subr.bf16.mxu0 0
    %4241 = vmatpush1.bf16.msra.mxu0 %v4204
    %4242 = vmatprep.subr.bf16.mxu0 0
    %4243 = vmatpush1.bf16.msra.mxu0 %v4203
    %4244 = vmatprep.subr.bf16.mxu0 0
    %4245 = vmatpush2.bf16.msra.mxu0 0
    %4246 = vmatprep.subr.bf16.mxu0 0
    %4247 = vmatpush2.bf16.msra.mxu0 0
    %4248 = vmatprep.subr.bf16.mxu0 0
    %4249 = vmatpush2.bf16.msra.mxu0 0
    %4250 = vmatprep.subr.bf16.mxu0 0
    %4251 = vmatpush2.bf16.msra.mxu0 0
    %4252 = vmatprep.subr.bf16.mxu0 0
    %4253 = vmatpush2.bf16.msra.mxu0 0
    %4254 = vmatprep.subr.bf16.mxu0 0
    %4255 = vmatpush2.bf16.msra.mxu0 0
    %4256 = vmatprep.subr.bf16.mxu0 0
    %4257 = vmatpush2.bf16.msra.mxu0 0
    %4258 = vmatprep.subr.bf16.mxu0 0
    %4259 = vmatpush2.bf16.msra.mxu0 0
    %4260 = vmatprep.mubr.bf16.mxu0 0
    %4261 = vmatmul.mubr.bf16.gmra.mxu0 %v4219
    %v4262 = vpop.f32.mrf.mxu0
    %v4263 = vadd.f32 0.0, %v4262
    %v4264 = vpop.f32.mrf.mxu0
    %v4265 = vpop.f32.mrf.mxu0
    %v4266 = vadd.f32 0.0, %v4265
    %v4267 = vpop.f32.mrf.mxu0
    %4268 = vmatprep.mubr.bf16.mxu0 0
    %4269 = vmatmul.mubr.bf16.gmra.mxu0 %v4222
    %v4270 = vpop.f32.mrf.mxu0
    %v4271 = vadd.f32 0.0, %v4270
    %v4272 = vpop.f32.mrf.mxu0
    %v4273 = vpop.f32.mrf.mxu0
    %v4274 = vpop.f32.mrf.mxu0
    %4275 = vdwg.mxu0
    %v4276 = vpack.c.bf16 %v4266, %v4263
    %v4277 = vpack.c.bf16 %v4271, %v4271
    %v4278 = vpack.c.bf16 %v848, %v848
    %v4279 = vsel %vm4217, %v902, 0
    %v4282 = vsel %vm4217, %v4278, 0
    %4284 = vmatprep.subr.bf16.mxu0 0
    %4285 = vmatpush1.bf16.msra.mxu0 0
    %4286 = vmatprep.subr.bf16.mxu0 0
    %4287 = vmatpush1.bf16.msra.mxu0 0
    %4288 = vmatprep.subr.bf16.mxu0 0
    %4289 = vmatpush1.bf16.msra.mxu0 0
    %4290 = vmatprep.subr.bf16.mxu0 0
    %4291 = vmatpush1.bf16.msra.mxu0 0
    %4292 = vmatprep.subr.bf16.mxu0 0
    %4293 = vmatpush1.bf16.msra.mxu0 0
    %4294 = vmatprep.subr.bf16.mxu0 0
    %4295 = vmatpush1.bf16.msra.mxu0 %v4226
    %4296 = vmatprep.subr.bf16.mxu0 0
    %4297 = vmatpush1.bf16.msra.mxu0 %v4204
    %4298 = vmatprep.subr.bf16.mxu0 0
    %4299 = vmatpush1.bf16.msra.mxu0 %v4203
    %4300 = vmatprep.subr.bf16.mxu0 0
    %4301 = vmatpush2.bf16.msra.mxu0 0
    %4302 = vmatprep.subr.bf16.mxu0 0
    %4303 = vmatpush2.bf16.msra.mxu0 0
    %4304 = vmatprep.subr.bf16.mxu0 0
    %4305 = vmatpush2.bf16.msra.mxu0 0
    %4306 = vmatprep.subr.bf16.mxu0 0
    %4307 = vmatpush2.bf16.msra.mxu0 0
    %4308 = vmatprep.subr.bf16.mxu0 0
    %4309 = vmatpush2.bf16.msra.mxu0 0
    %4310 = vmatprep.subr.bf16.mxu0 0
    %4311 = vmatpush2.bf16.msra.mxu0 0
    %4312 = vmatprep.subr.bf16.mxu0 0
    %4313 = vmatpush2.bf16.msra.mxu0 0
    %4314 = vmatprep.subr.bf16.mxu0 0
    %4315 = vmatpush2.bf16.msra.mxu0 0
    %4316 = vmatprep.mubr.bf16.mxu0 0
    %4317 = vmatmul.mubr.bf16.gmra.mxu0 %v4279
    %v4318 = vpop.f32.mrf.mxu0
    %v4319 = vadd.f32 0.0, %v4318
    %v4320 = vpop.f32.mrf.mxu0
    %v4321 = vpop.f32.mrf.mxu0
    %v4322 = vadd.f32 0.0, %v4321
    %v4323 = vpop.f32.mrf.mxu0
    %4324 = vmatprep.mubr.bf16.mxu0 0
    %4325 = vmatmul.mubr.bf16.gmra.mxu0 %v4282
    %v4326 = vpop.f32.mrf.mxu0
    %v4327 = vadd.f32 0.0, %v4326
    %v4328 = vpop.f32.mrf.mxu0
    %v4329 = vpop.f32.mrf.mxu0
    %v4330 = vpop.f32.mrf.mxu0
    %4331 = vdwg.mxu0
    %v4332 = vpack.c.bf16 %v4322, %v4319
    %v4333 = vpack.c.bf16 %v4327, %v4327
    %v4334 = vpack.c.bf16 %v1284, %v1284
    %v4335 = vsel %vm4217, %v1338, 0
    %v4338 = vsel %vm4217, %v4334, 0
    %4340 = vmatprep.subr.bf16.mxu0 0
    %4341 = vmatpush1.bf16.msra.mxu0 0
    %4342 = vmatprep.subr.bf16.mxu0 0
    %4343 = vmatpush1.bf16.msra.mxu0 0
    %4344 = vmatprep.subr.bf16.mxu0 0
    %4345 = vmatpush1.bf16.msra.mxu0 0
    %4346 = vmatprep.subr.bf16.mxu0 0
    %4347 = vmatpush1.bf16.msra.mxu0 0
    %4348 = vmatprep.subr.bf16.mxu0 0
    %4349 = vmatpush1.bf16.msra.mxu0 0
    %4350 = vmatprep.subr.bf16.mxu0 0
    %4351 = vmatpush1.bf16.msra.mxu0 %v4226
    %4352 = vmatprep.subr.bf16.mxu0 0
    %4353 = vmatpush1.bf16.msra.mxu0 %v4204
    %4354 = vmatprep.subr.bf16.mxu0 0
    %4355 = vmatpush1.bf16.msra.mxu0 %v4203
    %4356 = vmatprep.subr.bf16.mxu0 0
    %4357 = vmatpush2.bf16.msra.mxu0 0
    %4358 = vmatprep.subr.bf16.mxu0 0
    %4359 = vmatpush2.bf16.msra.mxu0 0
    %4360 = vmatprep.subr.bf16.mxu0 0
    %4361 = vmatpush2.bf16.msra.mxu0 0
    %4362 = vmatprep.subr.bf16.mxu0 0
    %4363 = vmatpush2.bf16.msra.mxu0 0
    %4364 = vmatprep.subr.bf16.mxu0 0
    %4365 = vmatpush2.bf16.msra.mxu0 0
    %4366 = vmatprep.subr.bf16.mxu0 0
    %4367 = vmatpush2.bf16.msra.mxu0 0
    %4368 = vmatprep.subr.bf16.mxu0 0
    %4369 = vmatpush2.bf16.msra.mxu0 0
    %4370 = vmatprep.subr.bf16.mxu0 0
    %4371 = vmatpush2.bf16.msra.mxu0 0
    %4372 = vmatprep.mubr.bf16.mxu0 0
    %4373 = vmatmul.mubr.bf16.gmra.mxu0 %v4335
    %v4374 = vpop.f32.mrf.mxu0
    %v4375 = vadd.f32 0.0, %v4374
    %v4376 = vpop.f32.mrf.mxu0
    %v4377 = vpop.f32.mrf.mxu0
    %v4378 = vadd.f32 0.0, %v4377
    %v4379 = vpop.f32.mrf.mxu0
    %4380 = vmatprep.mubr.bf16.mxu0 0
    %4381 = vmatmul.mubr.bf16.gmra.mxu0 %v4338
    %v4382 = vpop.f32.mrf.mxu0
    %v4383 = vadd.f32 0.0, %v4382
    %v4384 = vpop.f32.mrf.mxu0
    %v4385 = vpop.f32.mrf.mxu0
    %v4386 = vpop.f32.mrf.mxu0
    %4387 = vdwg.mxu0
    %v4388 = vpack.c.bf16 %v4378, %v4375
    %v4389 = vpack.c.bf16 %v4383, %v4383
    %vm4390 = vcmp.ne.s32.totalorder %v218, 9
    %vm4391 = vcmp.ne.s32.totalorder %v219, 9
    %vm4392 = vcmp.ne.s32.totalorder %v220, 9
    %vm4393 = vmand %vm1654, %vm4390
    %vm4394 = vmand %vm1657, %vm4391
    %vm4395 = vmand %vm1660, %vm4392
    %v4396 = vsel %vm4393, 1.0, 0.0
    %v4397 = vsel %vm4394, 1.0, 0.0
    %v4398 = vsel %vm4395, 1.0, 0.0
    %v4399 = vpack.c.bf16 %v4397, %v4396
    %v4400 = vpack.c.bf16 %v4398, %v4398
    %v4402 = vsel %vm4217, %v4399, 0
    %v4405 = vsel %vm4217, %v4400, 0
    %4407 = vmatprep.subr.bf16.mxu0 0
    %4408 = vmatpush1.bf16.msra.mxu0 0
    %4409 = vmatprep.subr.bf16.mxu0 0
    %4410 = vmatpush1.bf16.msra.mxu0 0
    %4411 = vmatprep.subr.bf16.mxu0 0
    %4412 = vmatpush1.bf16.msra.mxu0 0
    %4413 = vmatprep.subr.bf16.mxu0 0
    %4414 = vmatpush1.bf16.msra.mxu0 0
    %4415 = vmatprep.subr.bf16.mxu0 0
    %4416 = vmatpush1.bf16.msra.mxu0 0
    %4417 = vmatprep.subr.bf16.mxu0 0
    %4418 = vmatpush1.bf16.msra.mxu0 %v4226
    %4419 = vmatprep.subr.bf16.mxu0 0
    %4420 = vmatpush1.bf16.msra.mxu0 %v4204
    %4421 = vmatprep.subr.bf16.mxu0 0
    %4422 = vmatpush1.bf16.msra.mxu0 %v4203
    %4423 = vmatprep.subr.bf16.mxu0 0
    %4424 = vmatpush2.bf16.msra.mxu0 0
    %4425 = vmatprep.subr.bf16.mxu0 0
    %4426 = vmatpush2.bf16.msra.mxu0 0
    %4427 = vmatprep.subr.bf16.mxu0 0
    %4428 = vmatpush2.bf16.msra.mxu0 0
    %4429 = vmatprep.subr.bf16.mxu0 0
    %4430 = vmatpush2.bf16.msra.mxu0 0
    %4431 = vmatprep.subr.bf16.mxu0 0
    %4432 = vmatpush2.bf16.msra.mxu0 0
    %4433 = vmatprep.subr.bf16.mxu0 0
    %4434 = vmatpush2.bf16.msra.mxu0 0
    %4435 = vmatprep.subr.bf16.mxu0 0
    %4436 = vmatpush2.bf16.msra.mxu0 0
    %4437 = vmatprep.subr.bf16.mxu0 0
    %4438 = vmatpush2.bf16.msra.mxu0 0
    %4439 = vmatprep.mubr.bf16.mxu0 0
    %4440 = vmatmul.mubr.bf16.gmra.mxu0 %v4402
    %v4441 = vpop.f32.mrf.mxu0
    %v4442 = vadd.f32 0.0, %v4441
    %v4443 = vpop.f32.mrf.mxu0
    %v4444 = vpop.f32.mrf.mxu0
    %v4445 = vadd.f32 0.0, %v4444
    %v4446 = vpop.f32.mrf.mxu0
    %4447 = vmatprep.mubr.bf16.mxu0 0
    %4448 = vmatmul.mubr.bf16.gmra.mxu0 %v4405
    %v4449 = vpop.f32.mrf.mxu0
    %v4450 = vadd.f32 0.0, %v4449
    %v4451 = vpop.f32.mrf.mxu0
    %v4452 = vpop.f32.mrf.mxu0
    %v4453 = vpop.f32.mrf.mxu0
    %4454 = vdwg.mxu0
    %v4455 = vpack.c.bf16 %v4445, %v4442
    %v4456 = vpack.c.bf16 %v4450, %v4450
    %v4457 = vld [vmem:[#allocation4] sm:$0xff]
    %v4458 = vld [vmem:[#allocation4 + $0x8] sm:$0xff]
    %v4459 = vld [vmem:[#allocation4 + $0x10] sm:$0xff]
    %v4460 = vld [vmem:[#allocation4 + $0x18] sm:$0xff]
    %v4461 = vld [vmem:[#allocation4 + $0x20] sm:$0xff]
    %v4462 = vld [vmem:[#allocation4 + $0x28] sm:$0xff]
    %v4463 = vld [vmem:[#allocation4 + $0x30] sm:$0xff]
    %v4464 = vld [vmem:[#allocation4 + $0x38] sm:$0xff]
    %v4465 = vld [vmem:[#allocation4 + $0x40] sm:$0xff]
    %v4466 = vld [vmem:[#allocation4 + $0x48] sm:$0xff]
    %v4467 = vld [vmem:[#allocation4 + $0x50] sm:$0xff]
    %v4468 = vld [vmem:[#allocation4 + $0x58] sm:$0xff]
    %v4469 = vld [vmem:[#allocation4 + $0x60] sm:$0xff]
    %v4470 = vld [vmem:[#allocation4 + $0x68] sm:$0xff]
    %v4471 = vld [vmem:[#allocation4 + $0x70] sm:$0xff]
    %v4472 = vld [vmem:[#allocation4 + $0x78] sm:$0xff]
    %v4473 = vld [vmem:[#allocation4 + $0x80] sm:$0xff]
    %v4474 = vld [vmem:[#allocation4 + $0x88] sm:$0xff]
    %v4475 = vld [vmem:[#allocation4 + $0x90] sm:$0xff]
    %v4476 = vld [vmem:[#allocation4 + $0x98] sm:$0xff]
    %v4477 = vld [vmem:[#allocation4 + $0xa0] sm:$0xff]
    %v4478 = vld [vmem:[#allocation4 + $0xa8] sm:$0xff]
    %v4479 = vld [vmem:[#allocation4 + $0xb0] sm:$0xff]
    %v4480 = vld [vmem:[#allocation4 + $0xb8] sm:$0xff]
    %v4481 = vld [vmem:[#allocation4 + $0xc0] sm:$0xff]
    %v4482 = vld [vmem:[#allocation4 + $0xc8] sm:$0xff]
    %v4483 = vld [vmem:[#allocation4 + $0xd0] sm:$0xff]
    %v4484 = vld [vmem:[#allocation4 + $0xd8] sm:$0xff]
    %v4485 = vld [vmem:[#allocation4 + $0xe0] sm:$0xff]
    %v4486 = vld [vmem:[#allocation4 + $0xe8] sm:$0xff]
    %v4487 = vld [vmem:[#allocation4 + $0xf0] sm:$0xff]
    %v4488 = vld [vmem:[#allocation4 + $0xf8] sm:$0xff]
    %v4489 = vld [vmem:[#allocation4 + $0x100] sm:$0xff]
    %v4490 = vld [vmem:[#allocation4 + $0x108] sm:$0xff]
    %v4491 = vld [vmem:[#allocation4 + $0x110] sm:$0xff]
    %v4492 = vld [vmem:[#allocation4 + $0x118] sm:$0xff]
    %v4493 = vld [vmem:[#allocation4 + $0x120] sm:$0xff]
    %v4494 = vld [vmem:[#allocation4 + $0x128] sm:$0xff]
    %v4495 = vld [vmem:[#allocation4 + $0x130] sm:$0xff]
    %v4496 = vld [vmem:[#allocation4 + $0x138] sm:$0xff]
    %v4497 = vld [vmem:[#allocation4 + $0x140] sm:$0xff]
    %v4498 = vld [vmem:[#allocation4 + $0x148] sm:$0xff]
    %v4499 = vld [vmem:[#allocation4 + $0x150] sm:$0xff]
    %v4500 = vld [vmem:[#allocation4 + $0x158] sm:$0xff]
    %v4501 = vld [vmem:[#allocation4 + $0x160] sm:$0xff]
    %v4502 = vld [vmem:[#allocation4 + $0x168] sm:$0xff]
    %v4503 = vld [vmem:[#allocation4 + $0x170] sm:$0xff]
    %v4504 = vld [vmem:[#allocation4 + $0x178] sm:$0xff]
    %v4505 = vld [vmem:[#allocation4 + $0x180] sm:$0xff]
    %v4506 = vld [vmem:[#allocation4 + $0x188] sm:$0xff]
    %v4507 = vld [vmem:[#allocation4 + $0x190] sm:$0xff]
    %v4508 = vld [vmem:[#allocation4 + $0x198] sm:$0xff]
    %v4509 = vld [vmem:[#allocation4 + $0x1a0] sm:$0xff]
    %v4510 = vld [vmem:[#allocation4 + $0x1a8] sm:$0xff]
    %v4511 = vld [vmem:[#allocation4 + $0x1b0] sm:$0xff]
    %v4512 = vld [vmem:[#allocation4 + $0x1b8] sm:$0xff]
    %v4513 = vld [vmem:[#allocation4 + $0x1c0] sm:$0xff]
    %v4514 = vld [vmem:[#allocation4 + $0x1c8] sm:$0xff]
    %v4515 = vld [vmem:[#allocation4 + $0x1d0] sm:$0xff]
    %v4516 = vld [vmem:[#allocation4 + $0x1d8] sm:$0xff]
    %v4517 = vld [vmem:[#allocation4 + $0x1e0] sm:$0xff]
    %v4518 = vld [vmem:[#allocation4 + $0x1e8] sm:$0xff]
    %v4519 = vld [vmem:[#allocation4 + $0x1f0] sm:$0xff]
    %v4520 = vld [vmem:[#allocation4 + $0x1f8] sm:$0xff]
    %v4521 = vld [vmem:[#allocation4 + $0x200] sm:$0xff]
    %v4522 = vld [vmem:[#allocation4 + $0x208] sm:$0xff]
    %v4523 = vld [vmem:[#allocation4 + $0x210] sm:$0xff]
    %v4524 = vld [vmem:[#allocation4 + $0x218] sm:$0xff]
    %v4525 = vld [vmem:[#allocation4 + $0x220] sm:$0xff]
    %v4526 = vld [vmem:[#allocation4 + $0x228] sm:$0xff]
    %v4527 = vld [vmem:[#allocation4 + $0x230] sm:$0xff]
    %v4528 = vld [vmem:[#allocation4 + $0x238] sm:$0xff]
    %v4529 = vld [vmem:[#allocation4 + $0x240] sm:$0xff]
    %v4530 = vld [vmem:[#allocation4 + $0x248] sm:$0xff]
    %v4531 = vld [vmem:[#allocation4 + $0x250] sm:$0xff]
    %v4532 = vld [vmem:[#allocation4 + $0x258] sm:$0xff]
    %v4533 = vld [vmem:[#allocation4 + $0x260] sm:$0xff]
    %v4534 = vld [vmem:[#allocation4 + $0x268] sm:$0xff]
    %v4535 = vld [vmem:[#allocation4 + $0x270] sm:$0xff]
    %v4536 = vld [vmem:[#allocation4 + $0x278] sm:$0xff]
    %v4537 = vld [vmem:[#allocation4 + $0x280] sm:$0xff]
    %v4538 = vld [vmem:[#allocation4 + $0x288] sm:$0xff]
    %v4539 = vld [vmem:[#allocation4 + $0x290] sm:$0xff]
    %v4540 = vld [vmem:[#allocation4 + $0x298] sm:$0xff]
    %v4541 = vld [vmem:[#allocation4 + $0x2a0] sm:$0xff]
    %v4542 = vld [vmem:[#allocation4 + $0x2a8] sm:$0xff]
    %v4543 = vld [vmem:[#allocation4 + $0x2b0] sm:$0xff]
    %v4544 = vld [vmem:[#allocation4 + $0x2b8] sm:$0xff]
    %v4545 = vld [vmem:[#allocation4 + $0x2c0] sm:$0xff]
    %v4546 = vld [vmem:[#allocation4 + $0x2c8] sm:$0xff]
    %v4547 = vld [vmem:[#allocation4 + $0x2d0] sm:$0xff]
    %v4548 = vld [vmem:[#allocation4 + $0x2d8] sm:$0xff]
    %v4549 = vld [vmem:[#allocation4 + $0x2e0] sm:$0xff]
    %v4550 = vld [vmem:[#allocation4 + $0x2e8] sm:$0xff]
    %v4551 = vld [vmem:[#allocation4 + $0x2f0] sm:$0xff]
    %v4552 = vld [vmem:[#allocation4 + $0x2f8] sm:$0xff]
    %v4553 = vld [vmem:[#allocation4 + $0x300] sm:$0xff]
    %v4554 = vld [vmem:[#allocation4 + $0x308] sm:$0xff]
    %v4555 = vld [vmem:[#allocation4 + $0x310] sm:$0xff]
    %v4556 = vld [vmem:[#allocation4 + $0x318] sm:$0xff]
    %v4557 = vld [vmem:[#allocation4 + $0x320] sm:$0xff]
    %v4558 = vld [vmem:[#allocation4 + $0x328] sm:$0xff]
    %v4559 = vld [vmem:[#allocation4 + $0x330] sm:$0xff]
    %v4560 = vld [vmem:[#allocation4 + $0x338] sm:$0xff]
    %v4561 = vld [vmem:[#allocation4 + $0x340] sm:$0xff]
    %v4562 = vld [vmem:[#allocation4 + $0x348] sm:$0xff]
    %v4563 = vld [vmem:[#allocation4 + $0x350] sm:$0xff]
    %v4564 = vld [vmem:[#allocation4 + $0x358] sm:$0xff]
    %v4565 = vld [vmem:[#allocation4 + $0x360] sm:$0xff]
    %v4566 = vld [vmem:[#allocation4 + $0x368] sm:$0xff]
    %v4567 = vld [vmem:[#allocation4 + $0x370] sm:$0xff]
    %v4568 = vld [vmem:[#allocation4 + $0x378] sm:$0xff]
    %v4569 = vld [vmem:[#allocation4 + $0x380] sm:$0xff]
    %v4570 = vld [vmem:[#allocation4 + $0x388] sm:$0xff]
    %v4571 = vld [vmem:[#allocation4 + $0x390] sm:$0xff]
    %v4572 = vld [vmem:[#allocation4 + $0x398] sm:$0xff]
    %v4573 = vld [vmem:[#allocation4 + $0x3a0] sm:$0xff]
    %v4574 = vld [vmem:[#allocation4 + $0x3a8] sm:$0xff]
    %v4575 = vld [vmem:[#allocation4 + $0x3b0] sm:$0xff]
    %v4576 = vld [vmem:[#allocation4 + $0x3b8] sm:$0xff]
    %v4577 = vld [vmem:[#allocation4 + $0x3c0] sm:$0xff]
    %v4578 = vld [vmem:[#allocation4 + $0x3c8] sm:$0xff]
    %v4579 = vld [vmem:[#allocation4 + $0x3d0] sm:$0xff]
    %v4580 = vld [vmem:[#allocation4 + $0x3d8] sm:$0xff]
    %v4581 = vld [vmem:[#allocation4 + $0x3e0] sm:$0xff]
    %v4582 = vld [vmem:[#allocation4 + $0x3e8] sm:$0xff]
    %v4583 = vld [vmem:[#allocation4 + $0x3f0] sm:$0xff]
    %v4584 = vld [vmem:[#allocation4 + $0x3f8] sm:$0xff]
    %v4713 = vunpack.c.l.b16 %v4457
    %v4714 = vunpack.c.h.b16 %v4457
    %v4715 = vunpack.c.l.b16 %v4458
    %v4716 = vunpack.c.h.b16 %v4458
    %v4717 = vunpack.c.l.b16 %v4459
    %v4718 = vunpack.c.h.b16 %v4459
    %v4719 = vunpack.c.l.b16 %v4460
    %v4720 = vunpack.c.h.b16 %v4460
    %v4721 = vunpack.c.l.b16 %v4461
    %v4722 = vunpack.c.h.b16 %v4461
    %v4723 = vunpack.c.l.b16 %v4462
    %v4724 = vunpack.c.h.b16 %v4462
    %v4725 = vunpack.c.l.b16 %v4463
    %v4726 = vunpack.c.h.b16 %v4463
    %v4727 = vunpack.c.l.b16 %v4464
    %v4728 = vunpack.c.h.b16 %v4464
    %v4729 = vunpack.c.l.b16 %v4465
    %v4730 = vunpack.c.h.b16 %v4465
    %v4731 = vunpack.c.l.b16 %v4466
    %v4732 = vunpack.c.h.b16 %v4466
    %v4733 = vunpack.c.l.b16 %v4467
    %v4734 = vunpack.c.h.b16 %v4467
    %v4735 = vunpack.c.l.b16 %v4468
    %v4736 = vunpack.c.h.b16 %v4468
    %v4737 = vunpack.c.l.b16 %v4469
    %v4738 = vunpack.c.h.b16 %v4469
    %v4739 = vunpack.c.l.b16 %v4470
    %v4740 = vunpack.c.h.b16 %v4470
    %v4741 = vunpack.c.l.b16 %v4471
    %v4742 = vunpack.c.h.b16 %v4471
    %v4743 = vunpack.c.l.b16 %v4472
    %v4744 = vunpack.c.h.b16 %v4472
    %v4745 = vunpack.c.l.b16 %v4473
    %v4746 = vunpack.c.h.b16 %v4473
    %v4747 = vunpack.c.l.b16 %v4474
    %v4748 = vunpack.c.h.b16 %v4474
    %v4749 = vunpack.c.l.b16 %v4475
    %v4750 = vunpack.c.h.b16 %v4475
    %v4751 = vunpack.c.l.b16 %v4476
    %v4752 = vunpack.c.h.b16 %v4476
    %v4753 = vunpack.c.l.b16 %v4477
    %v4754 = vunpack.c.h.b16 %v4477
    %v4755 = vunpack.c.l.b16 %v4478
    %v4756 = vunpack.c.h.b16 %v4478
    %v4757 = vunpack.c.l.b16 %v4479
    %v4758 = vunpack.c.h.b16 %v4479
    %v4759 = vunpack.c.l.b16 %v4480
    %v4760 = vunpack.c.h.b16 %v4480
    %v4761 = vunpack.c.l.b16 %v4481
    %v4762 = vunpack.c.h.b16 %v4481
    %v4763 = vunpack.c.l.b16 %v4482
    %v4764 = vunpack.c.h.b16 %v4482
    %v4765 = vunpack.c.l.b16 %v4483
    %v4766 = vunpack.c.h.b16 %v4483
    %v4767 = vunpack.c.l.b16 %v4484
    %v4768 = vunpack.c.h.b16 %v4484
    %v4769 = vunpack.c.l.b16 %v4485
    %v4770 = vunpack.c.h.b16 %v4485
    %v4771 = vunpack.c.l.b16 %v4486
    %v4772 = vunpack.c.h.b16 %v4486
    %v4773 = vunpack.c.l.b16 %v4487
    %v4774 = vunpack.c.h.b16 %v4487
    %v4775 = vunpack.c.l.b16 %v4488
    %v4776 = vunpack.c.h.b16 %v4488
    %v4777 = vunpack.c.l.b16 %v4489
    %v4778 = vunpack.c.h.b16 %v4489
    %v4779 = vunpack.c.l.b16 %v4490
    %v4780 = vunpack.c.h.b16 %v4490
    %v4781 = vunpack.c.l.b16 %v4491
    %v4782 = vunpack.c.h.b16 %v4491
    %v4783 = vunpack.c.l.b16 %v4492
    %v4784 = vunpack.c.h.b16 %v4492
    %v4785 = vunpack.c.l.b16 %v4493
    %v4786 = vunpack.c.h.b16 %v4493
    %v4787 = vunpack.c.l.b16 %v4494
    %v4788 = vunpack.c.h.b16 %v4494
    %v4789 = vunpack.c.l.b16 %v4495
    %v4790 = vunpack.c.h.b16 %v4495
    %v4791 = vunpack.c.l.b16 %v4496
    %v4792 = vunpack.c.h.b16 %v4496
    %v4793 = vunpack.c.l.b16 %v4497
    %v4794 = vunpack.c.h.b16 %v4497
    %v4795 = vunpack.c.l.b16 %v4498
    %v4796 = vunpack.c.h.b16 %v4498
    %v4797 = vunpack.c.l.b16 %v4499
    %v4798 = vunpack.c.h.b16 %v4499
    %v4799 = vunpack.c.l.b16 %v4500
    %v4800 = vunpack.c.h.b16 %v4500
    %v4801 = vunpack.c.l.b16 %v4501
    %v4802 = vunpack.c.h.b16 %v4501
    %v4803 = vunpack.c.l.b16 %v4502
    %v4804 = vunpack.c.h.b16 %v4502
    %v4805 = vunpack.c.l.b16 %v4503
    %v4806 = vunpack.c.h.b16 %v4503
    %v4807 = vunpack.c.l.b16 %v4504
    %v4808 = vunpack.c.h.b16 %v4504
    %v4809 = vunpack.c.l.b16 %v4505
    %v4810 = vunpack.c.h.b16 %v4505
    %v4811 = vunpack.c.l.b16 %v4506
    %v4812 = vunpack.c.h.b16 %v4506
    %v4813 = vunpack.c.l.b16 %v4507
    %v4814 = vunpack.c.h.b16 %v4507
    %v4815 = vunpack.c.l.b16 %v4508
    %v4816 = vunpack.c.h.b16 %v4508
    %v4817 = vunpack.c.l.b16 %v4509
    %v4818 = vunpack.c.h.b16 %v4509
    %v4819 = vunpack.c.l.b16 %v4510
    %v4820 = vunpack.c.h.b16 %v4510
    %v4821 = vunpack.c.l.b16 %v4511
    %v4822 = vunpack.c.h.b16 %v4511
    %v4823 = vunpack.c.l.b16 %v4512
    %v4824 = vunpack.c.h.b16 %v4512
    %v4825 = vunpack.c.l.b16 %v4513
    %v4826 = vunpack.c.h.b16 %v4513
    %v4827 = vunpack.c.l.b16 %v4514
    %v4828 = vunpack.c.h.b16 %v4514
    %v4829 = vunpack.c.l.b16 %v4515
    %v4830 = vunpack.c.h.b16 %v4515
    %v4831 = vunpack.c.l.b16 %v4516
    %v4832 = vunpack.c.h.b16 %v4516
    %v4833 = vunpack.c.l.b16 %v4517
    %v4834 = vunpack.c.h.b16 %v4517
    %v4835 = vunpack.c.l.b16 %v4518
    %v4836 = vunpack.c.h.b16 %v4518
    %v4837 = vunpack.c.l.b16 %v4519
    %v4838 = vunpack.c.h.b16 %v4519
    %v4839 = vunpack.c.l.b16 %v4520
    %v4840 = vunpack.c.h.b16 %v4520
    %v4841 = vunpack.c.l.b16 %v4521
    %v4842 = vunpack.c.h.b16 %v4521
    %v4843 = vunpack.c.l.b16 %v4522
    %v4844 = vunpack.c.h.b16 %v4522
    %v4845 = vunpack.c.l.b16 %v4523
    %v4846 = vunpack.c.h.b16 %v4523
    %v4847 = vunpack.c.l.b16 %v4524
    %v4848 = vunpack.c.h.b16 %v4524
    %v4849 = vunpack.c.l.b16 %v4525
    %v4850 = vunpack.c.h.b16 %v4525
    %v4851 = vunpack.c.l.b16 %v4526
    %v4852 = vunpack.c.h.b16 %v4526
    %v4853 = vunpack.c.l.b16 %v4527
    %v4854 = vunpack.c.h.b16 %v4527
    %v4855 = vunpack.c.l.b16 %v4528
    %v4856 = vunpack.c.h.b16 %v4528
    %v4857 = vunpack.c.l.b16 %v4529
    %v4858 = vunpack.c.h.b16 %v4529
    %v4859 = vunpack.c.l.b16 %v4530
    %v4860 = vunpack.c.h.b16 %v4530
    %v4861 = vunpack.c.l.b16 %v4531
    %v4862 = vunpack.c.h.b16 %v4531
    %v4863 = vunpack.c.l.b16 %v4532
    %v4864 = vunpack.c.h.b16 %v4532
    %v4865 = vunpack.c.l.b16 %v4533
    %v4866 = vunpack.c.h.b16 %v4533
    %v4867 = vunpack.c.l.b16 %v4534
    %v4868 = vunpack.c.h.b16 %v4534
    %v4869 = vunpack.c.l.b16 %v4535
    %v4870 = vunpack.c.h.b16 %v4535
    %v4871 = vunpack.c.l.b16 %v4536
    %v4872 = vunpack.c.h.b16 %v4536
    %v4873 = vunpack.c.l.b16 %v4537
    %v4874 = vunpack.c.h.b16 %v4537
    %v4875 = vunpack.c.l.b16 %v4538
    %v4876 = vunpack.c.h.b16 %v4538
    %v4877 = vunpack.c.l.b16 %v4539
    %v4878 = vunpack.c.h.b16 %v4539
    %v4879 = vunpack.c.l.b16 %v4540
    %v4880 = vunpack.c.h.b16 %v4540
    %v4881 = vunpack.c.l.b16 %v4541
    %v4882 = vunpack.c.h.b16 %v4541
    %v4883 = vunpack.c.l.b16 %v4542
    %v4884 = vunpack.c.h.b16 %v4542
    %v4885 = vunpack.c.l.b16 %v4543
    %v4886 = vunpack.c.h.b16 %v4543
    %v4887 = vunpack.c.l.b16 %v4544
    %v4888 = vunpack.c.h.b16 %v4544
    %v4889 = vunpack.c.l.b16 %v4545
    %v4890 = vunpack.c.h.b16 %v4545
    %v4891 = vunpack.c.l.b16 %v4546
    %v4892 = vunpack.c.h.b16 %v4546
    %v4893 = vunpack.c.l.b16 %v4547
    %v4894 = vunpack.c.h.b16 %v4547
    %v4895 = vunpack.c.l.b16 %v4548
    %v4896 = vunpack.c.h.b16 %v4548
    %v4897 = vunpack.c.l.b16 %v4549
    %v4898 = vunpack.c.h.b16 %v4549
    %v4899 = vunpack.c.l.b16 %v4550
    %v4900 = vunpack.c.h.b16 %v4550
    %v4901 = vunpack.c.l.b16 %v4551
    %v4902 = vunpack.c.h.b16 %v4551
    %v4903 = vunpack.c.l.b16 %v4552
    %v4904 = vunpack.c.h.b16 %v4552
    %v4905 = vunpack.c.l.b16 %v4553
    %v4906 = vunpack.c.h.b16 %v4553
    %v4907 = vunpack.c.l.b16 %v4554
    %v4908 = vunpack.c.h.b16 %v4554
    %v4909 = vunpack.c.l.b16 %v4555
    %v4910 = vunpack.c.h.b16 %v4555
    %v4911 = vunpack.c.l.b16 %v4556
    %v4912 = vunpack.c.h.b16 %v4556
    %v4913 = vunpack.c.l.b16 %v4557
    %v4914 = vunpack.c.h.b16 %v4557
    %v4915 = vunpack.c.l.b16 %v4558
    %v4916 = vunpack.c.h.b16 %v4558
    %v4917 = vunpack.c.l.b16 %v4559
    %v4918 = vunpack.c.h.b16 %v4559
    %v4919 = vunpack.c.l.b16 %v4560
    %v4920 = vunpack.c.h.b16 %v4560
    %v4921 = vunpack.c.l.b16 %v4561
    %v4922 = vunpack.c.h.b16 %v4561
    %v4923 = vunpack.c.l.b16 %v4562
    %v4924 = vunpack.c.h.b16 %v4562
    %v4925 = vunpack.c.l.b16 %v4563
    %v4926 = vunpack.c.h.b16 %v4563
    %v4927 = vunpack.c.l.b16 %v4564
    %v4928 = vunpack.c.h.b16 %v4564
    %v4929 = vunpack.c.l.b16 %v4565
    %v4930 = vunpack.c.h.b16 %v4565
    %v4931 = vunpack.c.l.b16 %v4566
    %v4932 = vunpack.c.h.b16 %v4566
    %v4933 = vunpack.c.l.b16 %v4567
    %v4934 = vunpack.c.h.b16 %v4567
    %v4935 = vunpack.c.l.b16 %v4568
    %v4936 = vunpack.c.h.b16 %v4568
    %v4937 = vunpack.c.l.b16 %v4569
    %v4938 = vunpack.c.h.b16 %v4569
    %v4939 = vunpack.c.l.b16 %v4570
    %v4940 = vunpack.c.h.b16 %v4570
    %v4941 = vunpack.c.l.b16 %v4571
    %v4942 = vunpack.c.h.b16 %v4571
    %v4943 = vunpack.c.l.b16 %v4572
    %v4944 = vunpack.c.h.b16 %v4572
    %v4945 = vunpack.c.l.b16 %v4573
    %v4946 = vunpack.c.h.b16 %v4573
    %v4947 = vunpack.c.l.b16 %v4574
    %v4948 = vunpack.c.h.b16 %v4574
    %v4949 = vunpack.c.l.b16 %v4575
    %v4950 = vunpack.c.h.b16 %v4575
    %v4951 = vunpack.c.l.b16 %v4576
    %v4952 = vunpack.c.h.b16 %v4576
    %v4953 = vunpack.c.l.b16 %v4577
    %v4954 = vunpack.c.h.b16 %v4577
    %v4955 = vunpack.c.l.b16 %v4578
    %v4956 = vunpack.c.h.b16 %v4578
    %v4957 = vunpack.c.l.b16 %v4579
    %v4958 = vunpack.c.h.b16 %v4579
    %v4959 = vunpack.c.l.b16 %v4580
    %v4960 = vunpack.c.h.b16 %v4580
    %v4961 = vunpack.c.l.b16 %v4581
    %v4962 = vunpack.c.h.b16 %v4581
    %v4963 = vunpack.c.l.b16 %v4582
    %v4964 = vunpack.c.h.b16 %v4582
    %v4965 = vunpack.c.l.b16 %v4583
    %v4966 = vunpack.c.h.b16 %v4583
    %v4967 = vunpack.c.l.b16 %v4584
    %v4968 = vunpack.c.h.b16 %v4584
    %v4969 = vpack.c.b16 %v4717, %v4713
    %v4970 = vpack.c.b16 %v4718, %v4714
    %v4971 = vpack.c.b16 %v4719, %v4715
    %v4972 = vpack.c.b16 %v4720, %v4716
    %v4973 = vpack.c.b16 %v4725, %v4721
    %v4974 = vpack.c.b16 %v4726, %v4722
    %v4975 = vpack.c.b16 %v4727, %v4723
    %v4976 = vpack.c.b16 %v4728, %v4724
    %v4977 = vpack.c.b16 %v4733, %v4729
    %v4978 = vpack.c.b16 %v4734, %v4730
    %v4979 = vpack.c.b16 %v4735, %v4731
    %v4980 = vpack.c.b16 %v4736, %v4732
    %v4981 = vpack.c.b16 %v4741, %v4737
    %v4982 = vpack.c.b16 %v4742, %v4738
    %v4983 = vpack.c.b16 %v4743, %v4739
    %v4984 = vpack.c.b16 %v4744, %v4740
    %v4985 = vpack.c.b16 %v4749, %v4745
    %v4986 = vpack.c.b16 %v4750, %v4746
    %v4987 = vpack.c.b16 %v4751, %v4747
    %v4988 = vpack.c.b16 %v4752, %v4748
    %v4989 = vpack.c.b16 %v4757, %v4753
    %v4990 = vpack.c.b16 %v4758, %v4754
    %v4991 = vpack.c.b16 %v4759, %v4755
    %v4992 = vpack.c.b16 %v4760, %v4756
    %v4993 = vpack.c.b16 %v4765, %v4761
    %v4994 = vpack.c.b16 %v4766, %v4762
    %v4995 = vpack.c.b16 %v4767, %v4763
    %v4996 = vpack.c.b16 %v4768, %v4764
    %v4997 = vpack.c.b16 %v4773, %v4769
    %v4998 = vpack.c.b16 %v4774, %v4770
    %v4999 = vpack.c.b16 %v4775, %v4771
    %v5000 = vpack.c.b16 %v4776, %v4772
    %v5001 = vpack.c.b16 %v4781, %v4777
    %v5002 = vpack.c.b16 %v4782, %v4778
    %v5003 = vpack.c.b16 %v4783, %v4779
    %v5004 = vpack.c.b16 %v4784, %v4780
    %v5005 = vpack.c.b16 %v4789, %v4785
    %v5006 = vpack.c.b16 %v4790, %v4786
    %v5007 = vpack.c.b16 %v4791, %v4787
    %v5008 = vpack.c.b16 %v4792, %v4788
    %v5009 = vpack.c.b16 %v4797, %v4793
    %v5010 = vpack.c.b16 %v4798, %v4794
    %v5011 = vpack.c.b16 %v4799, %v4795
    %v5012 = vpack.c.b16 %v4800, %v4796
    %v5013 = vpack.c.b16 %v4805, %v4801
    %v5014 = vpack.c.b16 %v4806, %v4802
    %v5015 = vpack.c.b16 %v4807, %v4803
    %v5016 = vpack.c.b16 %v4808, %v4804
    %v5017 = vpack.c.b16 %v4813, %v4809
    %v5018 = vpack.c.b16 %v4814, %v4810
    %v5019 = vpack.c.b16 %v4815, %v4811
    %v5020 = vpack.c.b16 %v4816, %v4812
    %v5021 = vpack.c.b16 %v4821, %v4817
    %v5022 = vpack.c.b16 %v4822, %v4818
    %v5023 = vpack.c.b16 %v4823, %v4819
    %v5024 = vpack.c.b16 %v4824, %v4820
    %v5025 = vpack.c.b16 %v4829, %v4825
    %v5026 = vpack.c.b16 %v4830, %v4826
    %v5027 = vpack.c.b16 %v4831, %v4827
    %v5028 = vpack.c.b16 %v4832, %v4828
    %v5029 = vpack.c.b16 %v4837, %v4833
    %v5030 = vpack.c.b16 %v4838, %v4834
    %v5031 = vpack.c.b16 %v4839, %v4835
    %v5032 = vpack.c.b16 %v4840, %v4836
    %v5033 = vpack.c.b16 %v4845, %v4841
    %v5034 = vpack.c.b16 %v4846, %v4842
    %v5035 = vpack.c.b16 %v4847, %v4843
    %v5036 = vpack.c.b16 %v4848, %v4844
    %v5037 = vpack.c.b16 %v4853, %v4849
    %v5038 = vpack.c.b16 %v4854, %v4850
    %v5039 = vpack.c.b16 %v4855, %v4851
    %v5040 = vpack.c.b16 %v4856, %v4852
    %v5041 = vpack.c.b16 %v4861, %v4857
    %v5042 = vpack.c.b16 %v4862, %v4858
    %v5043 = vpack.c.b16 %v4863, %v4859
    %v5044 = vpack.c.b16 %v4864, %v4860
    %v5045 = vpack.c.b16 %v4869, %v4865
    %v5046 = vpack.c.b16 %v4870, %v4866
    %v5047 = vpack.c.b16 %v4871, %v4867
    %v5048 = vpack.c.b16 %v4872, %v4868
    %v5049 = vpack.c.b16 %v4877, %v4873
    %v5050 = vpack.c.b16 %v4878, %v4874
    %v5051 = vpack.c.b16 %v4879, %v4875
    %v5052 = vpack.c.b16 %v4880, %v4876
    %v5053 = vpack.c.b16 %v4885, %v4881
    %v5054 = vpack.c.b16 %v4886, %v4882
    %v5055 = vpack.c.b16 %v4887, %v4883
    %v5056 = vpack.c.b16 %v4888, %v4884
    %v5057 = vpack.c.b16 %v4893, %v4889
    %v5058 = vpack.c.b16 %v4894, %v4890
    %v5059 = vpack.c.b16 %v4895, %v4891
    %v5060 = vpack.c.b16 %v4896, %v4892
    %v5061 = vpack.c.b16 %v4901, %v4897
    %v5062 = vpack.c.b16 %v4902, %v4898
    %v5063 = vpack.c.b16 %v4903, %v4899
    %v5064 = vpack.c.b16 %v4904, %v4900
    %v5065 = vpack.c.b16 %v4909, %v4905
    %v5066 = vpack.c.b16 %v4910, %v4906
    %v5067 = vpack.c.b16 %v4911, %v4907
    %v5068 = vpack.c.b16 %v4912, %v4908
    %v5069 = vpack.c.b16 %v4917, %v4913
    %v5070 = vpack.c.b16 %v4918, %v4914
    %v5071 = vpack.c.b16 %v4919, %v4915
    %v5072 = vpack.c.b16 %v4920, %v4916
    %v5073 = vpack.c.b16 %v4925, %v4921
    %v5074 = vpack.c.b16 %v4926, %v4922
    %v5075 = vpack.c.b16 %v4927, %v4923
    %v5076 = vpack.c.b16 %v4928, %v4924
    %v5077 = vpack.c.b16 %v4933, %v4929
    %v5078 = vpack.c.b16 %v4934, %v4930
    %v5079 = vpack.c.b16 %v4935, %v4931
    %v5080 = vpack.c.b16 %v4936, %v4932
    %v5081 = vpack.c.b16 %v4941, %v4937
    %v5082 = vpack.c.b16 %v4942, %v4938
    %v5083 = vpack.c.b16 %v4943, %v4939
    %v5084 = vpack.c.b16 %v4944, %v4940
    %v5085 = vpack.c.b16 %v4949, %v4945
    %v5086 = vpack.c.b16 %v4950, %v4946
    %v5087 = vpack.c.b16 %v4951, %v4947
    %v5088 = vpack.c.b16 %v4952, %v4948
    %v5089 = vpack.c.b16 %v4957, %v4953
    %v5090 = vpack.c.b16 %v4958, %v4954
    %v5091 = vpack.c.b16 %v4959, %v4955
    %v5092 = vpack.c.b16 %v4960, %v4956
    %v5093 = vpack.c.b16 %v4965, %v4961
    %v5094 = vpack.c.b16 %v4966, %v4962
    %v5095 = vpack.c.b16 %v4967, %v4963
    %v5096 = vpack.c.b16 %v4968, %v4964
    %5225 = vmatprep.subr.bf16.mxu0 %v4998
    %5226 = vmatpush1.bf16.msra.mxu0 %v4997
    %5227 = vmatprep.subr.bf16.mxu0 %v4994
    %5228 = vmatpush1.bf16.msra.mxu0 %v4993
    %5229 = vmatprep.subr.bf16.mxu0 %v4990
    %5230 = vmatpush1.bf16.msra.mxu0 %v4989
    %5231 = vmatprep.subr.bf16.mxu0 %v4986
    %5232 = vmatpush1.bf16.msra.mxu0 %v4985
    %5233 = vmatprep.subr.bf16.mxu0 %v4982
    %5234 = vmatpush1.bf16.msra.mxu0 %v4981
    %5235 = vmatprep.subr.bf16.mxu0 %v4978
    %5236 = vmatpush1.bf16.msra.mxu0 %v4977
    %5237 = vmatprep.subr.bf16.mxu0 %v4974
    %5238 = vmatpush1.bf16.msra.mxu0 %v4973
    %5239 = vmatprep.subr.bf16.mxu0 %v4970
    %5240 = vmatpush1.bf16.msra.mxu0 %v4969
    %5241 = vmatprep.subr.bf16.mxu0 %v5030
    %5242 = vmatpush2.bf16.msra.mxu0 %v5029
    %5243 = vmatprep.subr.bf16.mxu0 %v5026
    %5244 = vmatpush2.bf16.msra.mxu0 %v5025
    %5245 = vmatprep.subr.bf16.mxu0 %v5022
    %5246 = vmatpush2.bf16.msra.mxu0 %v5021
    %5247 = vmatprep.subr.bf16.mxu0 %v5018
    %5248 = vmatpush2.bf16.msra.mxu0 %v5017
    %5249 = vmatprep.subr.bf16.mxu0 %v5014
    %5250 = vmatpush2.bf16.msra.mxu0 %v5013
    %5251 = vmatprep.subr.bf16.mxu0 %v5010
    %5252 = vmatpush2.bf16.msra.mxu0 %v5009
    %5253 = vmatprep.subr.bf16.mxu0 %v5006
    %5254 = vmatpush2.bf16.msra.mxu0 %v5005
    %5255 = vmatprep.subr.bf16.mxu0 %v5002
    %5256 = vmatpush2.bf16.msra.mxu0 %v5001
    %5257 = vmatprep.mubr.bf16.mxu0 %v4332
    %5258 = vmatmul.mubr.bf16.gmra.mxu0 %v4276
    %v5259 = vpop.f32.mrf.mxu0
    %v5260 = vadd.f32 0.0, %v5259
    %v5261 = vpop.f32.mrf.mxu0
    %v5262 = vadd.f32 0.0, %v5261
    %v5263 = vpop.f32.mrf.mxu0
    %v5264 = vadd.f32 0.0, %v5263
    %v5265 = vpop.f32.mrf.mxu0
    %v5266 = vadd.f32 0.0, %v5265
    %5267 = vmatprep.mubr.bf16.mxu0 %v4333
    %5268 = vmatmul.mubr.bf16.gmra.mxu0 %v4277
    %v5269 = vpop.f32.mrf.mxu0
    %v5270 = vadd.f32 0.0, %v5269
    %v5271 = vpop.f32.mrf.mxu0
    %v5272 = vadd.f32 0.0, %v5271
    %v5273 = vpop.f32.mrf.mxu0
    %v5274 = vpop.f32.mrf.mxu0
    %5275 = vdwg.mxu0
    %5276 = vmatprep.subr.bf16.mxu0 %v5062
    %5277 = vmatpush1.bf16.msra.mxu0 %v5061
    %5278 = vmatprep.subr.bf16.mxu0 %v5058
    %5279 = vmatpush1.bf16.msra.mxu0 %v5057
    %5280 = vmatprep.subr.bf16.mxu0 %v5054
    %5281 = vmatpush1.bf16.msra.mxu0 %v5053
    %5282 = vmatprep.subr.bf16.mxu0 %v5050
    %5283 = vmatpush1.bf16.msra.mxu0 %v5049
    %5284 = vmatprep.subr.bf16.mxu0 %v5046
    %5285 = vmatpush1.bf16.msra.mxu0 %v5045
    %5286 = vmatprep.subr.bf16.mxu0 %v5042
    %5287 = vmatpush1.bf16.msra.mxu0 %v5041
    %5288 = vmatprep.subr.bf16.mxu0 %v5038
    %5289 = vmatpush1.bf16.msra.mxu0 %v5037
    %5290 = vmatprep.subr.bf16.mxu0 %v5034
    %5291 = vmatpush1.bf16.msra.mxu0 %v5033
    %5292 = vmatprep.subr.bf16.mxu0 %v5094
    %5293 = vmatpush2.bf16.msra.mxu0 %v5093
    %5294 = vmatprep.subr.bf16.mxu0 %v5090
    %5295 = vmatpush2.bf16.msra.mxu0 %v5089
    %5296 = vmatprep.subr.bf16.mxu0 %v5086
    %5297 = vmatpush2.bf16.msra.mxu0 %v5085
    %5298 = vmatprep.subr.bf16.mxu0 %v5082
    %5299 = vmatpush2.bf16.msra.mxu0 %v5081
    %5300 = vmatprep.subr.bf16.mxu0 %v5078
    %5301 = vmatpush2.bf16.msra.mxu0 %v5077
    %5302 = vmatprep.subr.bf16.mxu0 %v5074
    %5303 = vmatpush2.bf16.msra.mxu0 %v5073
    %5304 = vmatprep.subr.bf16.mxu0 %v5070
    %5305 = vmatpush2.bf16.msra.mxu0 %v5069
    %5306 = vmatprep.subr.bf16.mxu0 %v5066
    %5307 = vmatpush2.bf16.msra.mxu0 %v5065
    %5308 = vmatprep.mubr.bf16.mxu0 %v4455
    %5309 = vmatmul.mubr.bf16.gmra.mxu0 %v4388
    %v5310 = vpop.f32.mrf.mxu0
    %v5311 = vadd.f32 %v5260, %v5310
    %v5312 = vpop.f32.mrf.mxu0
    %v5313 = vadd.f32 %v5262, %v5312
    %v5314 = vpop.f32.mrf.mxu0
    %v5315 = vadd.f32 %v5264, %v5314
    %v5316 = vpop.f32.mrf.mxu0
    %v5317 = vadd.f32 %v5266, %v5316
    %5318 = vmatprep.mubr.bf16.mxu0 %v4456
    %5319 = vmatmul.mubr.bf16.gmra.mxu0 %v4389
    %v5320 = vpop.f32.mrf.mxu0
    %v5321 = vadd.f32 %v5270, %v5320
    %v5322 = vpop.f32.mrf.mxu0
    %v5323 = vadd.f32 %v5272, %v5322
    %v5324 = vpop.f32.mrf.mxu0
    %v5325 = vpop.f32.mrf.mxu0
    %5326 = vdwg.mxu0
    %5327 = vmatprep.subr.bf16.mxu0 %v5000
    %5328 = vmatpush1.bf16.msra.mxu0 %v4999
    %5329 = vmatprep.subr.bf16.mxu0 %v4996
    %5330 = vmatpush1.bf16.msra.mxu0 %v4995
    %5331 = vmatprep.subr.bf16.mxu0 %v4992
    %5332 = vmatpush1.bf16.msra.mxu0 %v4991
    %5333 = vmatprep.subr.bf16.mxu0 %v4988
    %5334 = vmatpush1.bf16.msra.mxu0 %v4987
    %5335 = vmatprep.subr.bf16.mxu0 %v4984
    %5336 = vmatpush1.bf16.msra.mxu0 %v4983
    %5337 = vmatprep.subr.bf16.mxu0 %v4980
    %5338 = vmatpush1.bf16.msra.mxu0 %v4979
    %5339 = vmatprep.subr.bf16.mxu0 %v4976
    %5340 = vmatpush1.bf16.msra.mxu0 %v4975
    %5341 = vmatprep.subr.bf16.mxu0 %v4972
    %5342 = vmatpush1.bf16.msra.mxu0 %v4971
    %5343 = vmatprep.subr.bf16.mxu0 %v5032
    %5344 = vmatpush2.bf16.msra.mxu0 %v5031
    %5345 = vmatprep.subr.bf16.mxu0 %v5028
    %5346 = vmatpush2.bf16.msra.mxu0 %v5027
    %5347 = vmatprep.subr.bf16.mxu0 %v5024
    %5348 = vmatpush2.bf16.msra.mxu0 %v5023
    %5349 = vmatprep.subr.bf16.mxu0 %v5020
    %5350 = vmatpush2.bf16.msra.mxu0 %v5019
    %5351 = vmatprep.subr.bf16.mxu0 %v5016
    %5352 = vmatpush2.bf16.msra.mxu0 %v5015
    %5353 = vmatprep.subr.bf16.mxu0 %v5012
    %5354 = vmatpush2.bf16.msra.mxu0 %v5011
    %5355 = vmatprep.subr.bf16.mxu0 %v5008
    %5356 = vmatpush2.bf16.msra.mxu0 %v5007
    %5357 = vmatprep.subr.bf16.mxu0 %v5004
    %5358 = vmatpush2.bf16.msra.mxu0 %v5003
    %5359 = vmatprep.mubr.bf16.mxu0 %v4332
    %5360 = vmatmul.mubr.bf16.gmra.mxu0 %v4276
    %v5361 = vpop.f32.mrf.mxu0
    %v5362 = vadd.f32 0.0, %v5361
    %v5363 = vpop.f32.mrf.mxu0
    %v5364 = vadd.f32 0.0, %v5363
    %v5365 = vpop.f32.mrf.mxu0
    %v5366 = vadd.f32 0.0, %v5365
    %v5367 = vpop.f32.mrf.mxu0
    %v5368 = vadd.f32 0.0, %v5367
    %5369 = vmatprep.mubr.bf16.mxu0 %v4333
    %5370 = vmatmul.mubr.bf16.gmra.mxu0 %v4277
    %v5371 = vpop.f32.mrf.mxu0
    %v5372 = vadd.f32 0.0, %v5371
    %v5373 = vpop.f32.mrf.mxu0
    %v5374 = vadd.f32 0.0, %v5373
    %v5375 = vpop.f32.mrf.mxu0
    %v5376 = vpop.f32.mrf.mxu0
    %5377 = vdwg.mxu0
    %5378 = vmatprep.subr.bf16.mxu0 %v5064
    %5379 = vmatpush1.bf16.msra.mxu0 %v5063
    %5380 = vmatprep.subr.bf16.mxu0 %v5060
    %5381 = vmatpush1.bf16.msra.mxu0 %v5059
    %5382 = vmatprep.subr.bf16.mxu0 %v5056
    %5383 = vmatpush1.bf16.msra.mxu0 %v5055
    %5384 = vmatprep.subr.bf16.mxu0 %v5052
    %5385 = vmatpush1.bf16.msra.mxu0 %v5051
    %5386 = vmatprep.subr.bf16.mxu0 %v5048
    %5387 = vmatpush1.bf16.msra.mxu0 %v5047
    %5388 = vmatprep.subr.bf16.mxu0 %v5044
    %5389 = vmatpush1.bf16.msra.mxu0 %v5043
    %5390 = vmatprep.subr.bf16.mxu0 %v5040
    %5391 = vmatpush1.bf16.msra.mxu0 %v5039
    %5392 = vmatprep.subr.bf16.mxu0 %v5036
    %5393 = vmatpush1.bf16.msra.mxu0 %v5035
    %5394 = vmatprep.subr.bf16.mxu0 %v5096
    %5395 = vmatpush2.bf16.msra.mxu0 %v5095
    %5396 = vmatprep.subr.bf16.mxu0 %v5092
    %5397 = vmatpush2.bf16.msra.mxu0 %v5091
    %5398 = vmatprep.subr.bf16.mxu0 %v5088
    %5399 = vmatpush2.bf16.msra.mxu0 %v5087
    %5400 = vmatprep.subr.bf16.mxu0 %v5084
    %5401 = vmatpush2.bf16.msra.mxu0 %v5083
    %5402 = vmatprep.subr.bf16.mxu0 %v5080
    %5403 = vmatpush2.bf16.msra.mxu0 %v5079
    %5404 = vmatprep.subr.bf16.mxu0 %v5076
    %5405 = vmatpush2.bf16.msra.mxu0 %v5075
    %5406 = vmatprep.subr.bf16.mxu0 %v5072
    %5407 = vmatpush2.bf16.msra.mxu0 %v5071
    %5408 = vmatprep.subr.bf16.mxu0 %v5068
    %5409 = vmatpush2.bf16.msra.mxu0 %v5067
    %5410 = vmatprep.mubr.bf16.mxu0 %v4455
    %5411 = vmatmul.mubr.bf16.gmra.mxu0 %v4388
    %v5412 = vpop.f32.mrf.mxu0
    %v5413 = vadd.f32 %v5362, %v5412
    %v5414 = vpop.f32.mrf.mxu0
    %v5415 = vadd.f32 %v5364, %v5414
    %v5416 = vpop.f32.mrf.mxu0
    %v5417 = vadd.f32 %v5366, %v5416
    %v5418 = vpop.f32.mrf.mxu0
    %v5419 = vadd.f32 %v5368, %v5418
    %5420 = vmatprep.mubr.bf16.mxu0 %v4456
    %5421 = vmatmul.mubr.bf16.gmra.mxu0 %v4389
    %v5422 = vpop.f32.mrf.mxu0
    %v5423 = vadd.f32 %v5372, %v5422
    %v5424 = vpop.f32.mrf.mxu0
    %v5425 = vadd.f32 %v5374, %v5424
    %v5426 = vpop.f32.mrf.mxu0
    %v5427 = vpop.f32.mrf.mxu0
    %5428 = vdwg.mxu0
    %s5429 = scalar_lea.vmem %s7, 6
    %v5430 = vld [vmem:[%s5429] ss:$8 sm:$0xf]
    %s5431 = scalar_lea.vmem %s7, 7
    %v5432 = vld [vmem:[%s5431] ss:$8 sm:$0xf]
    %v5433 = vadd.f32 %v5311, %v5315
    %v5434 = vsel %vm4224, %v5321, 0.0
    %v5435 = vadd.f32 %v5433, %v5434
    %v5436 = vrot.slane %v5435, 4
    %v5437 = vadd.f32 %v5435, %v5436
    %v5438 = vrot.slane %v5437, 2
    %v5439 = vadd.f32 %v5437, %v5438
    %v5440 = vrot.slane %v5439, 1
    %v5441 = vadd.f32 %v5439, %v5440
    %v5442 = vadd.f32 %v5313, %v5317
    %v5443 = vsel %vm4224, %v5323, 0.0
    %v5444 = vadd.f32 %v5442, %v5443
    %v5445 = vrot.slane %v5444, 4
    %v5446 = vadd.f32 %v5444, %v5445
    %v5447 = vrot.slane %v5446, 2
    %v5448 = vadd.f32 %v5446, %v5447
    %v5449 = vrot.slane %v5448, 1
    %v5450 = vadd.f32 %v5448, %v5449
    %v5451 = vadd.f32 %v5413, %v5417
    %v5452 = vsel %vm4224, %v5423, 0.0
    %v5453 = vadd.f32 %v5451, %v5452
    %v5454 = vrot.slane %v5453, 4
    %v5455 = vadd.f32 %v5453, %v5454
    %v5456 = vrot.slane %v5455, 2
    %v5457 = vadd.f32 %v5455, %v5456
    %v5458 = vrot.slane %v5457, 1
    %v5459 = vadd.f32 %v5457, %v5458
    %v5460 = vadd.f32 %v5415, %v5419
    %v5461 = vsel %vm4224, %v5425, 0.0
    %v5462 = vadd.f32 %v5460, %v5461
    %v5463 = vrot.slane %v5462, 4
    %v5464 = vadd.f32 %v5462, %v5463
    %v5465 = vrot.slane %v5464, 2
    %v5466 = vadd.f32 %v5464, %v5465
    %v5467 = vrot.slane %v5466, 1
    %v5468 = vadd.f32 %v5466, %v5467
    %v5469 = vmul.f32 %v5441, 0.05
    %v5470 = vmul.f32 %v5450, 0.05
    %v5471 = vmul.f32 %v5459, 0.05
    %v5472 = vmul.f32 %v5468, 0.05
    %v5473 = vsub.f32 %v5311, %v5469
    %v5474 = vsub.f32 %v5313, %v5470
    %v5475 = vsub.f32 %v5413, %v5471
    %v5476 = vsub.f32 %v5415, %v5472
    %v5477 = vsub.f32 %v5315, %v5469
    %v5478 = vsub.f32 %v5317, %v5470
    %v5479 = vsub.f32 %v5417, %v5471
    %v5480 = vsub.f32 %v5419, %v5472
    %v5481 = vsub.f32 %v5321, %v5469
    %v5482 = vsub.f32 %v5323, %v5470
    %v5483 = vsub.f32 %v5423, %v5471
    %v5484 = vsub.f32 %v5425, %v5472
    %v5485 = vmul.f32 %v5473, %v5473
    %v5486 = vmul.f32 %v5474, %v5474
    %v5487 = vmul.f32 %v5475, %v5475
    %v5488 = vmul.f32 %v5476, %v5476
    %v5489 = vmul.f32 %v5477, %v5477
    %v5490 = vmul.f32 %v5478, %v5478
    %v5491 = vmul.f32 %v5479, %v5479
    %v5492 = vmul.f32 %v5480, %v5480
    %v5493 = vmul.f32 %v5481, %v5481
    %v5494 = vmul.f32 %v5482, %v5482
    %v5495 = vmul.f32 %v5483, %v5483
    %v5496 = vmul.f32 %v5484, %v5484
    %v5497 = vadd.f32 %v5485, %v5489
    %v5498 = vsel %vm4224, %v5493, 0.0
    %v5499 = vadd.f32 %v5497, %v5498
    %v5500 = vrot.slane %v5499, 4
    %v5501 = vadd.f32 %v5499, %v5500
    %v5502 = vrot.slane %v5501, 2
    %v5503 = vadd.f32 %v5501, %v5502
    %v5504 = vrot.slane %v5503, 1
    %v5505 = vadd.f32 %v5503, %v5504
    %v5506 = vadd.f32 %v5486, %v5490
    %v5507 = vsel %vm4224, %v5494, 0.0
    %v5508 = vadd.f32 %v5506, %v5507
    %v5509 = vrot.slane %v5508, 4
    %v5510 = vadd.f32 %v5508, %v5509
    %v5511 = vrot.slane %v5510, 2
    %v5512 = vadd.f32 %v5510, %v5511
    %v5513 = vrot.slane %v5512, 1
    %v5514 = vadd.f32 %v5512, %v5513
    %v5515 = vadd.f32 %v5487, %v5491
    %v5516 = vsel %vm4224, %v5495, 0.0
    %v5517 = vadd.f32 %v5515, %v5516
    %v5518 = vrot.slane %v5517, 4
    %v5519 = vadd.f32 %v5517, %v5518
    %v5520 = vrot.slane %v5519, 2
    %v5521 = vadd.f32 %v5519, %v5520
    %v5522 = vrot.slane %v5521, 1
    %v5523 = vadd.f32 %v5521, %v5522
    %v5524 = vadd.f32 %v5488, %v5492
    %v5525 = vsel %vm4224, %v5496, 0.0
    %v5526 = vadd.f32 %v5524, %v5525
    %v5527 = vrot.slane %v5526, 4
    %v5528 = vadd.f32 %v5526, %v5527
    %v5529 = vrot.slane %v5528, 2
    %v5530 = vadd.f32 %v5528, %v5529
    %v5531 = vrot.slane %v5530, 1
    %v5532 = vadd.f32 %v5530, %v5531
    %v5533 = vmul.f32 %v5505, 0.05
    %v5534 = vmul.f32 %v5514, 0.05
    %v5535 = vmul.f32 %v5523, 0.05
    %v5536 = vmul.f32 %v5532, 0.05
    %v5537 = vadd.f32 %v5533, 1e-05
    %v5538 = vadd.f32 %v5534, 1e-05
    %v5539 = vadd.f32 %v5535, 1e-05
    %v5540 = vadd.f32 %v5536, 1e-05
    %v5541 = vrsqrt.pop %v5537
    %v5542 = vrsqrt.pop %v5538
    %v5543 = vrsqrt.pop %v5539
    %v5544 = vrsqrt.pop %v5540
    %v5545 = vmul.f32 %v5473, %v5541
    %v5546 = vmul.f32 %v5474, %v5542
    %v5547 = vmul.f32 %v5475, %v5543
    %v5548 = vmul.f32 %v5476, %v5544
    %v5549 = vmul.f32 %v5477, %v5541
    %v5550 = vmul.f32 %v5478, %v5542
    %v5551 = vmul.f32 %v5479, %v5543
    %v5552 = vmul.f32 %v5480, %v5544
    %v5553 = vmul.f32 %v5481, %v5541
    %v5554 = vmul.f32 %v5482, %v5542
    %v5555 = vmul.f32 %v5483, %v5543
    %v5556 = vmul.f32 %v5484, %v5544
    %v5558 = vlaneseq
    %v5559 = vshrl.u32 %v5558, 7
    %v5560 = vsub.s32 0, %v5559
    %v5561 = vrot.slane %v5430, %v5560
    %v5562 = vlaneseq
    %v5563 = vshrl.u32 %v5562, 7
    %v5564 = vsub.s32 1, %v5563
    %v5565 = vrot.slane %v5430, %v5564
    %v5566 = vlaneseq
    %v5567 = vshrl.u32 %v5566, 7
    %v5568 = vsub.s32 2, %v5567
    %v5569 = vrot.slane %v5430, %v5568
    %v5570 = vlaneseq
    %v5571 = vshrl.u32 %v5570, 7
    %v5572 = vsub.s32 3, %v5571
    %v5573 = vrot.slane %v5430, %v5572
    %v5578 = vmul.f32 %v5545, %v5561
    %v5579 = vmul.f32 %v5546, %v5565
    %v5580 = vmul.f32 %v5547, %v5569
    %v5581 = vmul.f32 %v5548, %v5573
    %v5582 = vmul.f32 %v5549, %v5561
    %v5583 = vmul.f32 %v5550, %v5565
    %v5584 = vmul.f32 %v5551, %v5569
    %v5585 = vmul.f32 %v5552, %v5573
    %v5586 = vmul.f32 %v5553, %v5561
    %v5587 = vmul.f32 %v5554, %v5565
    %v5588 = vmul.f32 %v5555, %v5569
    %v5589 = vmul.f32 %v5556, %v5573
    %v5591 = vlaneseq
    %v5592 = vshrl.u32 %v5591, 7
    %v5593 = vsub.s32 0, %v5592
    %v5594 = vrot.slane %v5432, %v5593
    %v5595 = vlaneseq
    %v5596 = vshrl.u32 %v5595, 7
    %v5597 = vsub.s32 1, %v5596
    %v5598 = vrot.slane %v5432, %v5597
    %v5599 = vlaneseq
    %v5600 = vshrl.u32 %v5599, 7
    %v5601 = vsub.s32 2, %v5600
    %v5602 = vrot.slane %v5432, %v5601
    %v5603 = vlaneseq
    %v5604 = vshrl.u32 %v5603, 7
    %v5605 = vsub.s32 3, %v5604
    %v5606 = vrot.slane %v5432, %v5605
    %v5611 = vadd.f32 %v5578, %v5594
    %v5612 = vadd.f32 %v5579, %v5598
    %v5613 = vadd.f32 %v5580, %v5602
    %v5614 = vadd.f32 %v5581, %v5606
    %v5615 = vadd.f32 %v5582, %v5594
    %v5616 = vadd.f32 %v5583, %v5598
    %v5617 = vadd.f32 %v5584, %v5602
    %v5618 = vadd.f32 %v5585, %v5606
    %v5619 = vadd.f32 %v5586, %v5594
    %v5620 = vadd.f32 %v5587, %v5598
    %v5621 = vadd.f32 %v5588, %v5602
    %v5622 = vadd.f32 %v5589, %v5606
    %vm5623 = vcmp.gt.f32.partialorder %v5611, 0.0
    %vm5624 = vcmp.gt.f32.partialorder %v5612, 0.0
    %vm5625 = vcmp.gt.f32.partialorder %v5613, 0.0
    %vm5626 = vcmp.gt.f32.partialorder %v5614, 0.0
    %vm5627 = vcmp.gt.f32.partialorder %v5615, 0.0
    %vm5628 = vcmp.gt.f32.partialorder %v5616, 0.0
    %vm5629 = vcmp.gt.f32.partialorder %v5617, 0.0
    %vm5630 = vcmp.gt.f32.partialorder %v5618, 0.0
    %vm5631 = vcmp.gt.f32.partialorder %v5619, 0.0
    %vm5632 = vcmp.gt.f32.partialorder %v5620, 0.0
    %vm5633 = vcmp.gt.f32.partialorder %v5621, 0.0
    %vm5634 = vcmp.gt.f32.partialorder %v5622, 0.0
    %v5635 = vmul.f32 %v5611, 0.2
    %v5636 = vmul.f32 %v5612, 0.2
    %v5637 = vmul.f32 %v5613, 0.2
    %v5638 = vmul.f32 %v5614, 0.2
    %v5639 = vmul.f32 %v5615, 0.2
    %v5640 = vmul.f32 %v5616, 0.2
    %v5641 = vmul.f32 %v5617, 0.2
    %v5642 = vmul.f32 %v5618, 0.2
    %v5643 = vmul.f32 %v5619, 0.2
    %v5644 = vmul.f32 %v5620, 0.2
    %v5645 = vmul.f32 %v5621, 0.2
    %v5646 = vmul.f32 %v5622, 0.2
    %v5647 = vsel %vm5623, %v5611, %v5635
    %v5648 = vsel %vm5624, %v5612, %v5636
    %v5649 = vsel %vm5625, %v5613, %v5637
    %v5650 = vsel %vm5626, %v5614, %v5638
    %v5651 = vsel %vm5627, %v5615, %v5639
    %v5652 = vsel %vm5628, %v5616, %v5640
    %v5653 = vsel %vm5629, %v5617, %v5641
    %v5654 = vsel %vm5630, %v5618, %v5642
    %v5655 = vsel %vm5631, %v5619, %v5643
    %v5656 = vsel %vm5632, %v5620, %v5644
    %v5657 = vsel %vm5633, %v5621, %v5645
    %v5658 = vsel %vm5634, %v5622, %v5646
    %5659 = vst [vmem:[%s8] sm:$0xff] %v5647
    %5660 = vst [vmem:[%s8 + $0x8] sm:$0xff] %v5648
    %5661 = vst [vmem:[%s8 + $0x10] sm:$0xff] %v5649
    %5662 = vst [vmem:[%s8 + $0x18] sm:$0xff] %v5650
    %5663 = vst [vmem:[%s8 + $0x20] sm:$0xff] %v5651
    %5664 = vst [vmem:[%s8 + $0x28] sm:$0xff] %v5652
    %5665 = vst [vmem:[%s8 + $0x30] sm:$0xff] %v5653
    %5666 = vst [vmem:[%s8 + $0x38] sm:$0xff] %v5654
    %5667 = vst [vmem:[%s8 + $0x40] sm:$0xf] %v5655
    %5668 = vst [vmem:[%s8 + $0x48] sm:$0xf] %v5656
    %5669 = vst [vmem:[%s8 + $0x50] sm:$0xf] %v5657
    %5670 = vst [vmem:[%s8 + $0x58] sm:$0xf] %v5658
    %v5671 = vld [vmem:[#allocation6] sm:$0xff]
    %v5672 = vld [vmem:[#allocation6 + $0x8] sm:$0xff]
    %v5673 = vld [vmem:[#allocation6 + $0x10] sm:$0xff]
    %v5674 = vld [vmem:[#allocation6 + $0x18] sm:$0xff]
    %v5675 = vld [vmem:[#allocation6 + $0x20] sm:$0x3]
    %v5676 = vld [vmem:[#allocation6 + $0x28] sm:$0x3]
    %v5677 = vld [vmem:[#allocation6 + $0x30] sm:$0x3]
    %v5678 = vld [vmem:[#allocation6 + $0x38] sm:$0x3]
    %v5687 = vrot.slane %v5671, 6
    %v5688 = vrot.slane %v5672, 6
    %v5689 = vrot.slane %v5673, 6
    %v5690 = vrot.slane %v5674, 6
    %v5691 = vrot.slane %v5675, 6
    %v5692 = vsel %vm102, %v5687, %v5691
    %v5693 = vrot.slane %v5676, 6
    %v5694 = vsel %vm102, %v5688, %v5693
    %v5695 = vrot.slane %v5677, 6
    %v5696 = vsel %vm102, %v5689, %v5695
    %v5697 = vrot.slane %v5678, 6
    %v5698 = vsel %vm102, %v5690, %v5697
    %v5707 = vsel %vm102, %v5675, %v5687
    %v5708 = vsel %vm102, %v5676, %v5688
    %v5709 = vsel %vm102, %v5677, %v5689
    %v5710 = vsel %vm102, %v5678, %v5690
    %v5711 = vmul.f32 %v5647, %v5671
    %v5712 = vmul.f32 %v5648, %v5672
    %v5713 = vmul.f32 %v5649, %v5673
    %v5714 = vmul.f32 %v5650, %v5674
    %v5715 = vmul.f32 %v5651, %v5707
    %v5716 = vmul.f32 %v5652, %v5708
    %v5717 = vmul.f32 %v5653, %v5709
    %v5718 = vmul.f32 %v5654, %v5710
    %v5719 = vmul.f32 %v5655, %v5692
    %v5720 = vmul.f32 %v5656, %v5694
    %v5721 = vmul.f32 %v5657, %v5696
    %v5722 = vmul.f32 %v5658, %v5698
    %v5723 = vmul.u32 %v218, 10
    %vm5724 = vcmp.ge.s32.totalorder %v239, %v5723
    %v5725 = vadd.s32 %v218, 1
    %v5726 = vmul.u32 %v5725, 10
    %vm5727 = vcmp.lt.s32.totalorder %v239, %v5726
    %vm5728 = vmand %vm5724, %vm5727
    %v5729 = vsel %vm5728, 1.0, 0.0
    %vm5730 = vcmask 162816
    %v5732 = vsel %vm5730, %v5729, 0
    %v5735 = vsel %vm4224, %v5719, 0
    %v5738 = vsel %vm4224, %v5720, 0
    %v5741 = vsel %vm4224, %v5721, 0
    %v5744 = vsel %vm4224, %v5722, 0
    %5746 = vmatprep.subr.mxu0 0.0
    %5747 = vmatpush1.msra.mxu0 0.0
    %5748 = vmatprep.subr.mxu0 0.0
    %5749 = vmatpush1.msra.mxu0 0.0
    %5750 = vmatprep.subr.mxu0 0.0
    %5751 = vmatpush1.msra.mxu0 0.0
    %5752 = vmatprep.subr.mxu0 0.0
    %5753 = vmatpush1.msra.mxu0 0.0
    %5754 = vmatprep.subr.mxu0 0.0
    %5755 = vmatpush1.msra.mxu0 0.0
    %5756 = vmatprep.subr.mxu0 0.0
    %5757 = vmatpush1.msra.mxu0 0.0
    %5758 = vmatprep.subr.mxu0 0.0
    %5759 = vmatpush1.msra.mxu0 0.0
    %5760 = vmatprep.subr.mxu0 0.0
    %5761 = vmatpush1.msra.mxu0 0.0
    %5762 = vmatprep.subr.mxu0 0.0
    %5763 = vmatpush1.msra.mxu0 0.0
    %5764 = vmatprep.subr.mxu0 0.0
    %5765 = vmatpush1.msra.mxu0 0.0
    %5766 = vmatprep.subr.mxu0 0.0
    %5767 = vmatpush1.msra.mxu0 0.0
    %5768 = vmatprep.subr.mxu0 0.0
    %5769 = vmatpush1.msra.mxu0 0.0
    %5770 = vmatprep.subr.mxu0 0.0
    %5771 = vmatpush1.msra.mxu0 0.0
    %5772 = vmatprep.subr.mxu0 %v5738
    %5773 = vmatpush1.msra.mxu0 %v5735
    %5774 = vmatprep.subr.mxu0 %v5716
    %5775 = vmatpush1.msra.mxu0 %v5715
    %5776 = vmatprep.subr.mxu0 %v5712
    %5777 = vmatpush1.msra.mxu0 %v5711
    %5778 = vmatprep.subr.mxu0 0.0
    %5779 = vmatpush2.msra.mxu0 0.0
    %5780 = vmatprep.subr.mxu0 0.0
    %5781 = vmatpush2.msra.mxu0 0.0
    %5782 = vmatprep.subr.mxu0 0.0
    %5783 = vmatpush2.msra.mxu0 0.0
    %5784 = vmatprep.subr.mxu0 0.0
    %5785 = vmatpush2.msra.mxu0 0.0
    %5786 = vmatprep.subr.mxu0 0.0
    %5787 = vmatpush2.msra.mxu0 0.0
    %5788 = vmatprep.subr.mxu0 0.0
    %5789 = vmatpush2.msra.mxu0 0.0
    %5790 = vmatprep.subr.mxu0 0.0
    %5791 = vmatpush2.msra.mxu0 0.0
    %5792 = vmatprep.subr.mxu0 0.0
    %5793 = vmatpush2.msra.mxu0 0.0
    %5794 = vmatprep.subr.mxu0 0.0
    %5795 = vmatpush2.msra.mxu0 0.0
    %5796 = vmatprep.subr.mxu0 0.0
    %5797 = vmatpush2.msra.mxu0 0.0
    %5798 = vmatprep.subr.mxu0 0.0
    %5799 = vmatpush2.msra.mxu0 0.0
    %5800 = vmatprep.subr.mxu0 0.0
    %5801 = vmatpush2.msra.mxu0 0.0
    %5802 = vmatprep.subr.mxu0 0.0
    %5803 = vmatpush2.msra.mxu0 0.0
    %5804 = vmatprep.subr.mxu0 0.0
    %5805 = vmatpush2.msra.mxu0 0.0
    %5806 = vmatprep.subr.mxu0 0.0
    %5807 = vmatpush2.msra.mxu0 0.0
    %5808 = vmatprep.subr.mxu0 0.0
    %5809 = vmatpush2.msra.mxu0 0.0
    %5810 = vmatprep.mubr.f32.mxu0 0.0
    %5811 = vmatmul.mubr.f32.gmra.mxu0 %v5732
    %v5812 = vpop.f32.mrf.mxu0
    %v5813 = vadd.f32 0.0, %v5812
    %v5814 = vpop.f32.mrf.mxu0
    %v5815 = vadd.f32 0.0, %v5814
    %5816 = vdwg.mxu0
    %5817 = vmatprep.subr.mxu0 0.0
    %5818 = vmatpush1.msra.mxu0 0.0
    %5819 = vmatprep.subr.mxu0 0.0
    %5820 = vmatpush1.msra.mxu0 0.0
    %5821 = vmatprep.subr.mxu0 0.0
    %5822 = vmatpush1.msra.mxu0 0.0
    %5823 = vmatprep.subr.mxu0 0.0
    %5824 = vmatpush1.msra.mxu0 0.0
    %5825 = vmatprep.subr.mxu0 0.0
    %5826 = vmatpush1.msra.mxu0 0.0
    %5827 = vmatprep.subr.mxu0 0.0
    %5828 = vmatpush1.msra.mxu0 0.0
    %5829 = vmatprep.subr.mxu0 0.0
    %5830 = vmatpush1.msra.mxu0 0.0
    %5831 = vmatprep.subr.mxu0 0.0
    %5832 = vmatpush1.msra.mxu0 0.0
    %5833 = vmatprep.subr.mxu0 0.0
    %5834 = vmatpush1.msra.mxu0 0.0
    %5835 = vmatprep.subr.mxu0 0.0
    %5836 = vmatpush1.msra.mxu0 0.0
    %5837 = vmatprep.subr.mxu0 0.0
    %5838 = vmatpush1.msra.mxu0 0.0
    %5839 = vmatprep.subr.mxu0 0.0
    %5840 = vmatpush1.msra.mxu0 0.0
    %5841 = vmatprep.subr.mxu0 0.0
    %5842 = vmatpush1.msra.mxu0 0.0
    %5843 = vmatprep.subr.mxu0 %v5744
    %5844 = vmatpush1.msra.mxu0 %v5741
    %5845 = vmatprep.subr.mxu0 %v5718
    %5846 = vmatpush1.msra.mxu0 %v5717
    %5847 = vmatprep.subr.mxu0 %v5714
    %5848 = vmatpush1.msra.mxu0 %v5713
    %5849 = vmatprep.subr.mxu0 0.0
    %5850 = vmatpush2.msra.mxu0 0.0
    %5851 = vmatprep.subr.mxu0 0.0
    %5852 = vmatpush2.msra.mxu0 0.0
    %5853 = vmatprep.subr.mxu0 0.0
    %5854 = vmatpush2.msra.mxu0 0.0
    %5855 = vmatprep.subr.mxu0 0.0
    %5856 = vmatpush2.msra.mxu0 0.0
    %5857 = vmatprep.subr.mxu0 0.0
    %5858 = vmatpush2.msra.mxu0 0.0
    %5859 = vmatprep.subr.mxu0 0.0
    %5860 = vmatpush2.msra.mxu0 0.0
    %5861 = vmatprep.subr.mxu0 0.0
    %5862 = vmatpush2.msra.mxu0 0.0
    %5863 = vmatprep.subr.mxu0 0.0
    %5864 = vmatpush2.msra.mxu0 0.0
    %5865 = vmatprep.subr.mxu0 0.0
    %5866 = vmatpush2.msra.mxu0 0.0
    %5867 = vmatprep.subr.mxu0 0.0
    %5868 = vmatpush2.msra.mxu0 0.0
    %5869 = vmatprep.subr.mxu0 0.0
    %5870 = vmatpush2.msra.mxu0 0.0
    %5871 = vmatprep.subr.mxu0 0.0
    %5872 = vmatpush2.msra.mxu0 0.0
    %5873 = vmatprep.subr.mxu0 0.0
    %5874 = vmatpush2.msra.mxu0 0.0
    %5875 = vmatprep.subr.mxu0 0.0
    %5876 = vmatpush2.msra.mxu0 0.0
    %5877 = vmatprep.subr.mxu0 0.0
    %5878 = vmatpush2.msra.mxu0 0.0
    %5879 = vmatprep.subr.mxu0 0.0
    %5880 = vmatpush2.msra.mxu0 0.0
    %5881 = vmatprep.mubr.f32.mxu0 0.0
    %5882 = vmatmul.mubr.f32.gmra.mxu0 %v5732
    %v5883 = vpop.f32.mrf.mxu0
    %v5884 = vadd.f32 0.0, %v5883
    %v5885 = vpop.f32.mrf.mxu0
    %v5886 = vadd.f32 0.0, %v5885
    %5887 = vdwg.mxu0
    %v5888 = vsel %vm102, %v5813, 0.0
    %v5889 = vsel %vm102, %v5815, 0.0
    %v5890 = vadd.f32 %v5888, %v5889
    %v5891 = vsel %vm102, %v5884, 0.0
    %v5892 = vadd.f32 %v5890, %v5891
    %v5893 = vsel %vm102, %v5886, 0.0
    %v5894 = vadd.f32 %v5892, %v5893
    %5895 = vadd.xlane.f32.xlu0 %v5894
    %v5896 = vpop.xlane.xlu0 %5895
    %v5897 = vsub.f32 0.0, %v5896
    %v5898 = vmul.f32 %v5897, 1.442695
    %v5899 = vpow.pop %v5898
    %v5900 = vadd.f32 %v5899, 1.0
    %v5901 = vrcp.pop %v5900
    %v5902 = vmul.f32 1.0, %v5901
    %vm5903 = vcmask 1024
    %5904 = vst.msk [vmem:[%s9] sm:$0x3] %vm5903, %v5902
    // Predicated region
    $region46: #{discriminator_forward.1} parent=1 // pred_check
      _
    $region47: #{discriminator_forward.1} parent=1 // pred_check_branch
      %5906 = sbr.rel (0) target = $region49
    $region48: #{discriminator_forward.1} parent=1 // pred_region
      _
    $region49: #{discriminator_forward.1} parent=1 // pred_fallthru
      _
    // Predicated region
    $region50: #{discriminator_forward.1} parent=1 // pred_check
      _
    $region51: #{discriminator_forward.1} parent=1 // pred_check_branch
      %5908 = sbr.rel (0) target = $region53
    $region52: #{discriminator_forward.1} parent=1 // pred_region
      _
    $region53: #{discriminator_forward.1} parent=1 // pred_fallthru
      _
    // Predicated region
    $region54: #{discriminator_forward.1} parent=1 // pred_check
      _
    $region55: #{discriminator_forward.1} parent=1 // pred_check_branch
      %5910 = sbr.rel (0) target = $region57
    $region56: #{discriminator_forward.1} parent=1 // pred_region
      _
    $region57: #{discriminator_forward.1} parent=1 // pred_fallthru
      _
    // Predicated region
    $region58: #{discriminator_forward.1} parent=1 // pred_check
      _
    $region59: #{discriminator_forward.1} parent=1 // pred_check_branch
      %5912 = sbr.rel (0) target = $region61
    $region60: #{discriminator_forward.1} parent=1 // pred_region
      _
    $region61: #{discriminator_forward.1} parent=1 // pred_fallthru
      _
    %5913 = vsyncpa [#allocation3], 1
    %5914 = vsyncpa [#allocation5], 1

</llo_original>
